<compile_context>
chip_gen: v7x
topology: tpu7x:2x2x1
jax: 0.10.0
libtpu: 0.0.40
codegen_flags: <defaults>
</compile_context>

<pallas_src>
import numpy as np

import jax
import jax.numpy as jnp
from jax.experimental import pallas as pl
from jax.experimental.pallas import tpu as pltpu


# ----------------------------- window construction (glue, deterministic) -----

def _gaussian_1d(window_size: int, sigma: float = 1.5) -> np.ndarray:
    xs = np.arange(window_size, dtype=np.float64)
    g = np.exp(-((xs - window_size // 2) ** 2) / (2.0 * sigma ** 2))
    return (g / g.sum()).astype(np.float32)


def _band_matrix(size: int, g: np.ndarray) -> np.ndarray:
    """M[o, i] = g[i - o + pad]; M @ x == zero-padded 'same' cross-correlation."""
    ws = g.shape[0]
    pad = ws // 2
    M = np.zeros((size, size), dtype=np.float32)
    for o in range(size):
        for k in range(ws):
            i = o + k - pad
            if 0 <= i < size:
                M[o, i] += g[k]
    return M


def _num_tensorcores() -> int:
    """2 TCs/chip on v7x, 1 on v5e/v6e.  Conservative fallback = 1."""
    try:
        kind = jax.devices()[0].device_kind.lower()
    except Exception:
        return 1
    return 2 if ("v7" in kind or "7x" in kind) else 1


def _pick_batch(nc: int, D: int, HW: int, num_tc: int) -> int:
    """Volumes per grid step.

    Single-TC chips: the grid is a serial loop, so take the fewest / fattest
    steps that fit the per-step VMEM working-set budget.  Multi-TC (v7x):
    additionally keep G = nc // Bv a multiple of num_tc so both cores get
    equal work.  Prefer 8-aligned sublane slices (Bv*D % 8 == 0).
    """
    divisors = [b for b in range(1, nc + 1) if nc % b == 0]
    budget = 12 * 1024 * 1024  # conservative per-step working-set target

    def fits(b):
        work = b * D * HW * 4                       # one f32 input block
        # x1+x2 double-buffered + bf16 z scratch + f32 zb / c intermediates
        step_bytes = 2 * 2 * work + (5 * work) // 2 + 4 * 5 * work
        return step_bytes <= budget

    aligned = [b for b in divisors if fits(b) and (b * D) % 8 == 0]
    good = aligned or [b for b in divisors if fits(b)] or [1]

    if num_tc > 1:
        balanced = [b for b in good if (nc // b) % num_tc == 0]
        good = balanced or good
    return max(good)


# ----------------------------- Pallas kernel ---------------------------------

def _make_ssim3d_kernel(bv: int, d: int, hw: int):
    C1 = 0.01 ** 2
    C2 = 0.03 ** 2
    bvd = bv * d

    def kernel(x1_ref, x2_ref, bt_ref, mdb_ref, out_ref, z_ref):
        x1 = x1_ref[...]                       # (Bv*D, HW) f32
        x2 = x2_ref[...]                       # (Bv*D, HW) f32

        # Write the five conv operands into the bf16 VMEM scratch (8-aligned
        # static row slices) -- avoids the concat materialization copy.
        z_ref[0 * bvd:1 * bvd, :] = x1.astype(jnp.bfloat16)
        z_ref[1 * bvd:2 * bvd, :] = x2.astype(jnp.bfloat16)
        z_ref[2 * bvd:3 * bvd, :] = (x1 * x1).astype(jnp.bfloat16)
        z_ref[3 * bvd:4 * bvd, :] = (x2 * x2).astype(jnp.bfloat16)
        z_ref[4 * bvd:5 * bvd, :] = (x1 * x2).astype(jnp.bfloat16)

        # Conv over (H, W): one (5*Bv*D, HW) @ (HW, HW) bf16 matmul, f32 acc.
        zb = jnp.dot(z_ref[...], bt_ref[...],
                     preferred_element_type=jnp.float32)

        # Conv over D: batched matmul with the shared (D, D) band matrix
        # broadcast over the 5*Bv batch axis (only useful FLOPs on the MXU).
        zb3 = zb.reshape(5 * bv, d, hw).astype(jnp.bfloat16)
        c = jnp.einsum("bod,bdl->bol", mdb_ref[...], zb3,
                       preferred_element_type=jnp.float32)   # (5*Bv, D, HW) f32

        mu1 = c[0 * bv:1 * bv]
        mu2 = c[1 * bv:2 * bv]
        e11 = c[2 * bv:3 * bv]
        e22 = c[3 * bv:4 * bv]
        e12 = c[4 * bv:5 * bv]

        mu1_sq = mu1 * mu1
        mu2_sq = mu2 * mu2
        mu1_mu2 = mu1 * mu2
        sigma1_sq = e11 - mu1_sq
        sigma2_sq = e22 - mu2_sq
        sigma12 = e12 - mu1_mu2

        num = (2.0 * mu1_mu2 + C1) * (2.0 * sigma12 + C2)
        den = (mu1_sq + mu2_sq + C1) * (sigma1_sq + sigma2_sq + C2)
        # Exact reciprocal still runs on the (otherwise idle) EUP slot.
        ssim_map = num * pl.reciprocal(den, approx=False)

        # Per-grid-step partial sum; reduced outside the kernel.
        out_ref[...] = jnp.sum(ssim_map, keepdims=True)

    return kernel


# ----------------------------- module wrapper --------------------------------

class SSIM3D:
    """Pallas port of the PyTorch SSIM3D module (size_average=True path)."""

    def __init__(self, window_size: int = 11, size_average: bool = True):
        self.window_size = window_size
        self.size_average = size_average
        self._g = _gaussian_1d(window_size, 1.5)
        # TODO(synk): size_average=False branch (ssim_map.mean(1).mean(1).mean(1))
        # is not implemented; only the default size_average=True path is kernelized.

    def __call__(self, img1, img2):
        return 1.0 - self._ssim(img1, img2)

    def _ssim(self, img1, img2):
        N, C, D, H, W = img1.shape
        HW = H * W
        nc = N * C
        g = self._g
        MD = _band_matrix(D, g)
        MH = _band_matrix(H, g)
        MW = _band_matrix(W, g)

        num_tc = _num_tensorcores()
        Bv = _pick_batch(nc, D, HW, num_tc)
        G = nc // Bv
        BvD = Bv * D

        # Right factor: conv over (H, W).
        # TODO(synk): for large H*W (e.g. 64^3 volumes) this (H*W)^2 constant
        # outgrows VMEM (hits v7x's 64 MiB first); switch to fully separable
        # H-conv then W-conv there.
        Bt = np.ascontiguousarray(np.kron(MH, MW).T)                # (HW, HW)
        # Left factor: shared D-conv matrix broadcast over the 5*Bv batch axis.
        MDB = np.ascontiguousarray(
            np.broadcast_to(MD, (5 * Bv, D, D)).copy())             # (5*Bv, D, D)

        x1 = jnp.asarray(img1, jnp.float32).reshape(nc * D, HW)
        x2 = jnp.asarray(img2, jnp.float32).reshape(nc * D, HW)
        bt = jnp.asarray(Bt, jnp.bfloat16)      # bf16: MXU truncates anyway
        mdb = jnp.asarray(MDB, jnp.bfloat16)

        # Explicit VMEM limit only when blocks grow toward the scoped default.
        work = BvD * HW * 4
        est = (2 * 2 * work + (5 * work) // 2 + 4 * 5 * work
               + 2 * (HW * HW * 2 + 5 * Bv * D * D * 2))
        cp_kwargs = dict(dimension_semantics=("parallel",))
        if est > 12 * 1024 * 1024:
            cp_kwargs["vmem_limit_bytes"] = min(int(est * 1.5), 48 * 1024 * 1024)
        compiler_params = pltpu.CompilerParams(**cp_kwargs)

        kernel = _make_ssim3d_kernel(Bv, D, HW)

        def run(single_buffer_consts: bool):
            const_kw = ({"pipeline_mode": pl.Buffered(1)}
                        if single_buffer_consts else {})
            in_specs = [
                pl.BlockSpec((BvD, HW), lambda i: (i, 0)),
                pl.BlockSpec((BvD, HW), lambda i: (i, 0)),
                pl.BlockSpec((HW, HW), lambda i: (0, 0), **const_kw),
                pl.BlockSpec((5 * Bv, D, D), lambda i: (0, 0, 0), **const_kw),
            ]
            call = pl.pallas_call(
                kernel,
                out_shape=jax.ShapeDtypeStruct((G, 1, 1), jnp.float32),
                grid=(G,),
                in_specs=in_specs,
                out_specs=pl.BlockSpec((1, 1, 1), lambda i: (i, 0, 0)),
                scratch_shapes=[pltpu.VMEM((5 * BvD, HW), jnp.bfloat16)],
                compiler_params=compiler_params,
            )
            return call(x1, x2, bt, mdb)

        try:
            # Grid-invariant constants single-buffered (no pointless 2x VMEM).
            partials = jax.block_until_ready(run(True))
        except Exception:
            # Fallback for JAX versions without Buffered(1) support here.
            partials = run(False)

        return jnp.sum(partials) / float(nc * D * H * W)


# ----------------------------- pure-JAX reference (for a sanity check) -------

def _ssim3d_reference(img1, img2, window_size=11):
    N, C, D, H, W = img1.shape
    g = _gaussian_1d(window_size, 1.5)
    w3 = np.einsum('i,j,k->ijk', g, g, g).astype(np.float32)
    w = jnp.asarray(np.tile(w3[None, None], (C, 1, 1, 1, 1)))
    pad = window_size // 2

    def conv(x):
        return jax.lax.conv_general_dilated(
            x, w, window_strides=(1, 1, 1), padding=[(pad, pad)] * 3,
            dimension_numbers=('NCDHW', 'OIDHW', 'NCDHW'),
            feature_group_count=C)

    i1 = jnp.asarray(img1, jnp.float32)
    i2 = jnp.asarray(img2, jnp.float32)
    mu1, mu2 = conv(i1), conv(i2)
    mu1_sq, mu2_sq, mu1_mu2 = mu1 * mu1, mu2 * mu2, mu1 * mu2
    sigma1_sq = conv(i1 * i1) - mu1_sq
    sigma2_sq = conv(i2 * i2) - mu2_sq
    sigma12 = conv(i1 * i2) - mu1_mu2
    C1, C2 = 0.01 ** 2, 0.03 ** 2
    ssim_map = ((2 * mu1_mu2 + C1) * (2 * sigma12 + C2)) / (
        (mu1_sq + mu2_sq + C1) * (sigma1_sq + sigma2_sq + C2))
    return 1.0 - ssim_map.mean()


# ----------------------------- demo -------------------------------------------

if __name__ == "__main__":
    key = jax.random.PRNGKey(0)
    k1, k2 = jax.random.split(key)
    N, C, D, H, W = 2, 3, 16, 16, 16
    img1 = jax.random.uniform(k1, (N, C, D, H, W), dtype=jnp.float32)
    img2 = jax.random.uniform(k2, (N, C, D, H, W), dtype=jnp.float32)

    ssim = SSIM3D(window_size=11, size_average=True)
    out = jax.block_until_ready(ssim(img1, img2))

    ref = jax.block_until_ready(_ssim3d_reference(img1, img2, window_size=11))
    assert abs(float(out) - float(ref)) < 1e-2, (float(out), float(ref))

    print("KERNEL_OK")
</pallas_src>

<mosaic_0001>
module attributes {stable_mosaic.version = 11 : i64} {
  func.func @kernel(%arg0: i32, %arg1: memref<96x256xf32, #tpu.memory_space<vmem>>, %arg2: memref<96x256xf32, #tpu.memory_space<vmem>>, %arg3: memref<256x256xbf16, #tpu.memory_space<vmem>>, %arg4: memref<30x16x16xbf16, #tpu.memory_space<vmem>>, %arg5: memref<1x1x1xf32, #tpu.memory_space<vmem>>, %arg6: memref<480x256xbf16, #tpu.memory_space<vmem>>) attributes {dimension_semantics = [#tpu.dimension_semantics<parallel>], iteration_bounds = array<i64: 1>, scalar_prefetch = 0 : i64, scratch_operands = 1 : i64, tpu.core_type = #tpu.core_type<tc>, window_params = [{transform_indices = @transform_0, window_bounds = array<i64: 96, 256>}, {transform_indices = @transform_1, window_bounds = array<i64: 96, 256>}, {pipeline_mode = #tpu.pipeline_mode<synchronous>, transform_indices = @transform_2, window_bounds = array<i64: 256, 256>}, {pipeline_mode = #tpu.pipeline_mode<synchronous>, transform_indices = @transform_3, window_bounds = array<i64: 30, 16, 16>}, {transform_indices = @transform_4, window_bounds = array<i64: 1, 1, 1>}]} {
    %c0 = arith.constant 0 : index
    %c0_0 = arith.constant 0 : index
    %0 = vector.load %arg1[%c0, %c0_0] : memref<96x256xf32, #tpu.memory_space<vmem>>, vector<96x256xf32>
    %c0_1 = arith.constant 0 : index
    %c0_2 = arith.constant 0 : index
    %1 = vector.load %arg2[%c0_1, %c0_2] : memref<96x256xf32, #tpu.memory_space<vmem>>, vector<96x256xf32>
    %2 = arith.truncf %0 : vector<96x256xf32> to vector<96x256xbf16>
    %c0_3 = arith.constant 0 : index
    %c0_4 = arith.constant 0 : index
    %3 = vector.load %arg6[%c0_3, %c0_4] : memref<480x256xbf16, #tpu.memory_space<vmem>>, vector<96x256xbf16>
    tpu.vector_store %arg6[%c0_3, %c0_4], %2 {strides = array<i32>} : memref<480x256xbf16, #tpu.memory_space<vmem>>, vector<96x256xbf16>,
    %4 = arith.truncf %1 : vector<96x256xf32> to vector<96x256xbf16>
    %c96 = arith.constant 96 : index
    %c0_5 = arith.constant 0 : index
    %5 = vector.load %arg6[%c96, %c0_5] : memref<480x256xbf16, #tpu.memory_space<vmem>>, vector<96x256xbf16>
    tpu.vector_store %arg6[%c96, %c0_5], %4 {strides = array<i32>} : memref<480x256xbf16, #tpu.memory_space<vmem>>, vector<96x256xbf16>,
    %6 = arith.mulf %0, %0 : vector<96x256xf32>
    %7 = arith.truncf %6 : vector<96x256xf32> to vector<96x256xbf16>
    %c192 = arith.constant 192 : index
    %c0_6 = arith.constant 0 : index
    %8 = vector.load %arg6[%c192, %c0_6] : memref<480x256xbf16, #tpu.memory_space<vmem>>, vector<96x256xbf16>
    tpu.vector_store %arg6[%c192, %c0_6], %7 {strides = array<i32>} : memref<480x256xbf16, #tpu.memory_space<vmem>>, vector<96x256xbf16>,
    %9 = arith.mulf %1, %1 : vector<96x256xf32>
    %10 = arith.truncf %9 : vector<96x256xf32> to vector<96x256xbf16>
    %c288 = arith.constant 288 : index
    %c0_7 = arith.constant 0 : index
    %11 = vector.load %arg6[%c288, %c0_7] : memref<480x256xbf16, #tpu.memory_space<vmem>>, vector<96x256xbf16>
    tpu.vector_store %arg6[%c288, %c0_7], %10 {strides = array<i32>} : memref<480x256xbf16, #tpu.memory_space<vmem>>, vector<96x256xbf16>,
    %12 = arith.mulf %0, %1 : vector<96x256xf32>
    %13 = arith.truncf %12 : vector<96x256xf32> to vector<96x256xbf16>
    %c384 = arith.constant 384 : index
    %c0_8 = arith.constant 0 : index
    %14 = vector.load %arg6[%c384, %c0_8] : memref<480x256xbf16, #tpu.memory_space<vmem>>, vector<96x256xbf16>
    tpu.vector_store %arg6[%c384, %c0_8], %13 {strides = array<i32>} : memref<480x256xbf16, #tpu.memory_space<vmem>>, vector<96x256xbf16>,
    %c0_9 = arith.constant 0 : index
    %c0_10 = arith.constant 0 : index
    %15 = vector.load %arg6[%c0_9, %c0_10] : memref<480x256xbf16, #tpu.memory_space<vmem>>, vector<480x256xbf16>
    %c0_11 = arith.constant 0 : index
    %c0_12 = arith.constant 0 : index
    %16 = vector.load %arg3[%c0_11, %c0_12] : memref<256x256xbf16, #tpu.memory_space<vmem>>, vector<256x256xbf16>
    %cst = arith.constant dense<0.000000e+00> : vector<480x256xf32>
    %17 = tpu.matmul %15, %16, %cst {dimension_numbers = #tpu.dot_dimension_numbers<[1], [0], [0], [1], [0, 0, 1, 1], [], []>} : vector<480x256xbf16>, vector<256x256xbf16>, vector<480x256xf32> -> vector<480x256xf32>
    %18 = vector.shape_cast %17 : vector<480x256xf32> to vector<30x16x256xf32>
    %19 = arith.truncf %18 : vector<30x16x256xf32> to vector<30x16x256xbf16>
    %c0_13 = arith.constant 0 : index
    %c0_14 = arith.constant 0 : index
    %c0_15 = arith.constant 0 : index
    %20 = vector.load %arg4[%c0_13, %c0_14, %c0_15] : memref<30x16x16xbf16, #tpu.memory_space<vmem>>, vector<30x16x16xbf16>
    "tpu.trace_start"() <{level = 10 : i32, message = "bod,bdl->bol"}> : () -> ()
    %cst_16 = arith.constant dense<0.000000e+00> : vector<30x16x256xf32>
    %21 = tpu.matmul %20, %19, %cst_16 {dimension_numbers = #tpu.dot_dimension_numbers<[2], [1], [1], [2], [0, 0, 0, 1, 1, 2], [0], [0]>} : vector<30x16x16xbf16>, vector<30x16x256xbf16>, vector<30x16x256xf32> -> vector<30x16x256xf32>
    "tpu.trace_stop"() : () -> ()
    %22 = vector.extract_strided_slice %21 {offsets = [0, 0, 0], sizes = [6, 16, 256], strides = [1, 1, 1]} : vector<30x16x256xf32> to vector<6x16x256xf32>
    %23 = vector.extract_strided_slice %21 {offsets = [6, 0, 0], sizes = [6, 16, 256], strides = [1, 1, 1]} : vector<30x16x256xf32> to vector<6x16x256xf32>
    %24 = vector.extract_strided_slice %21 {offsets = [12, 0, 0], sizes = [6, 16, 256], strides = [1, 1, 1]} : vector<30x16x256xf32> to vector<6x16x256xf32>
    %25 = vector.extract_strided_slice %21 {offsets = [18, 0, 0], sizes = [6, 16, 256], strides = [1, 1, 1]} : vector<30x16x256xf32> to vector<6x16x256xf32>
    %26 = vector.extract_strided_slice %21 {offsets = [24, 0, 0], sizes = [6, 16, 256], strides = [1, 1, 1]} : vector<30x16x256xf32> to vector<6x16x256xf32>
    %27 = arith.mulf %22, %22 : vector<6x16x256xf32>
    %28 = arith.mulf %23, %23 : vector<6x16x256xf32>
    %29 = arith.mulf %22, %23 : vector<6x16x256xf32>
    %30 = arith.subf %24, %27 : vector<6x16x256xf32>
    %31 = arith.subf %25, %28 : vector<6x16x256xf32>
    %32 = arith.subf %26, %29 : vector<6x16x256xf32>
    %cst_17 = arith.constant 2.000000e+00 : f32
    %33 = vector.broadcast %cst_17 : f32 to vector<6x16x256xf32>
    %34 = arith.mulf %33, %29 : vector<6x16x256xf32>
    %cst_18 = arith.constant 9.99999974E-5 : f32
    %35 = vector.broadcast %cst_18 : f32 to vector<6x16x256xf32>
    %36 = arith.addf %34, %35 : vector<6x16x256xf32>
    %cst_19 = arith.constant 2.000000e+00 : f32
    %37 = vector.broadcast %cst_19 : f32 to vector<6x16x256xf32>
    %38 = arith.mulf %37, %32 : vector<6x16x256xf32>
    %cst_20 = arith.constant 8.99999984E-4 : f32
    %39 = vector.broadcast %cst_20 : f32 to vector<6x16x256xf32>
    %40 = arith.addf %38, %39 : vector<6x16x256xf32>
    %41 = arith.mulf %36, %40 : vector<6x16x256xf32>
    %42 = arith.addf %27, %28 : vector<6x16x256xf32>
    %cst_21 = arith.constant 9.99999974E-5 : f32
    %43 = vector.broadcast %cst_21 : f32 to vector<6x16x256xf32>
    %44 = arith.addf %42, %43 : vector<6x16x256xf32>
    %45 = arith.addf %30, %31 : vector<6x16x256xf32>
    %cst_22 = arith.constant 8.99999984E-4 : f32
    %46 = vector.broadcast %cst_22 : f32 to vector<6x16x256xf32>
    %47 = arith.addf %45, %46 : vector<6x16x256xf32>
    %48 = arith.mulf %44, %47 : vector<6x16x256xf32>
    %49 = tpu.reciprocal %48 : vector<6x16x256xf32> -> vector<6x16x256xf32>
    %50 = arith.mulf %41, %49 : vector<6x16x256xf32>
    %51 = vector.shape_cast %50 : vector<6x16x256xf32> to vector<1x6x16x256xf32>
    %cst_23 = arith.constant dense<0.000000e+00> : vector<1xf32>
    %52 = vector.multi_reduction <add>, %51, %cst_23 [1, 2, 3] : vector<1x6x16x256xf32> to vector<1xf32>
    %53 = vector.shape_cast %52 : vector<1xf32> to vector<1x1x1x1xf32>
    %54 = vector.extract %53[0, 0, 0, 0] : f32 from vector<1x1x1x1xf32>
    %55 = vector.broadcast %54 : f32 to vector<1x1x1xf32>
    %c0_24 = arith.constant 0 : index
    %c0_25 = arith.constant 0 : index
    %c0_26 = arith.constant 0 : index
    %56 = vector.load %arg5[%c0_24, %c0_25, %c0_26] : memref<1x1x1xf32, #tpu.memory_space<vmem>>, vector<1x1x1xf32>
    tpu.vector_store %arg5[%c0_24, %c0_25, %c0_26], %55 {strides = array<i32>} : memref<1x1x1xf32, #tpu.memory_space<vmem>>, vector<1x1x1xf32>,
    return
  }
  func.func @transform_0(%arg0: i32) -> (i32, i32) {
    %c0_i32 = arith.constant 0 : i32
    %c0_i32_0 = arith.constant 0 : i32
    return %arg0, %c0_i32 : i32, i32
  }
  func.func @transform_1(%arg0: i32) -> (i32, i32) {
    %c0_i32 = arith.constant 0 : i32
    %c0_i32_0 = arith.constant 0 : i32
    return %arg0, %c0_i32 : i32, i32
  }
  func.func @transform_2(%arg0: i32) -> (i32, i32) {
    %c0_i32 = arith.constant 0 : i32
    %c0_i32_0 = arith.constant 0 : i32
    %c0_i32_1 = arith.constant 0 : i32
    return %c0_i32, %c0_i32_0 : i32, i32
  }
  func.func @transform_3(%arg0: i32) -> (i32, i32, i32) {
    %c0_i32 = arith.constant 0 : i32
    %c0_i32_0 = arith.constant 0 : i32
    %c0_i32_1 = arith.constant 0 : i32
    %c0_i32_2 = arith.constant 0 : i32
    return %c0_i32, %c0_i32_0, %c0_i32_1 : i32, i32, i32
  }
  func.func @transform_4(%arg0: i32) -> (i32, i32, i32) {
    %c0_i32 = arith.constant 0 : i32
    %c0_i32_0 = arith.constant 0 : i32
    %c0_i32_1 = arith.constant 0 : i32
    return %arg0, %c0_i32, %c0_i32_0 : i32, i32, i32
  }
}

module attributes {stable_mosaic.version = 11 : i64} {
  func.func @kernel(%arg0: i32, %arg1: memref<96x256xf32, #tpu.memory_space<vmem>>, %arg2: memref<96x256xf32, #tpu.memory_space<vmem>>, %arg3: memref<256x256xbf16, #tpu.memory_space<vmem>>, %arg4: memref<30x16x16xbf16, #tpu.memory_space<vmem>>, %arg5: memref<1x1x1xf32, #tpu.memory_space<vmem>>, %arg6: memref<480x256xbf16, #tpu.memory_space<vmem>>) attributes {dimension_semantics = [#tpu.dimension_semantics<parallel>], iteration_bounds = array<i64: 1>, scalar_prefetch = 0 : i64, scratch_operands = 1 : i64, tpu.core_type = #tpu.core_type<tc>, window_params = [{transform_indices = @transform_0, window_bounds = array<i64: 96, 256>}, {transform_indices = @transform_1, window_bounds = array<i64: 96, 256>}, {pipeline_mode = #tpu.pipeline_mode<synchronous>, transform_indices = @transform_2, window_bounds = array<i64: 256, 256>}, {pipeline_mode = #tpu.pipeline_mode<synchronous>, transform_indices = @transform_3, window_bounds = array<i64: 30, 16, 16>}, {transform_indices = @transform_4, window_bounds = array<i64: 1, 1, 1>}]} {
    %c0 = arith.constant 0 : index
    %c0_0 = arith.constant 0 : index
    %0 = vector.load %arg1[%c0, %c0_0] : memref<96x256xf32, #tpu.memory_space<vmem>>, vector<96x256xf32>
    %c0_1 = arith.constant 0 : index
    %c0_2 = arith.constant 0 : index
    %1 = vector.load %arg2[%c0_1, %c0_2] : memref<96x256xf32, #tpu.memory_space<vmem>>, vector<96x256xf32>
    %2 = arith.truncf %0 : vector<96x256xf32> to vector<96x256xbf16>
    %c0_3 = arith.constant 0 : index
    %c0_4 = arith.constant 0 : index
    %3 = vector.load %arg6[%c0_3, %c0_4] : memref<480x256xbf16, #tpu.memory_space<vmem>>, vector<96x256xbf16>
    tpu.vector_store %arg6[%c0_3, %c0_4], %2 {strides = array<i32>} : memref<480x256xbf16, #tpu.memory_space<vmem>>, vector<96x256xbf16>,
    %4 = arith.truncf %1 : vector<96x256xf32> to vector<96x256xbf16>
    %c96 = arith.constant 96 : index
    %c0_5 = arith.constant 0 : index
    %5 = vector.load %arg6[%c96, %c0_5] : memref<480x256xbf16, #tpu.memory_space<vmem>>, vector<96x256xbf16>
    tpu.vector_store %arg6[%c96, %c0_5], %4 {strides = array<i32>} : memref<480x256xbf16, #tpu.memory_space<vmem>>, vector<96x256xbf16>,
    %6 = arith.mulf %0, %0 : vector<96x256xf32>
    %7 = arith.truncf %6 : vector<96x256xf32> to vector<96x256xbf16>
    %c192 = arith.constant 192 : index
    %c0_6 = arith.constant 0 : index
    %8 = vector.load %arg6[%c192, %c0_6] : memref<480x256xbf16, #tpu.memory_space<vmem>>, vector<96x256xbf16>
    tpu.vector_store %arg6[%c192, %c0_6], %7 {strides = array<i32>} : memref<480x256xbf16, #tpu.memory_space<vmem>>, vector<96x256xbf16>,
    %9 = arith.mulf %1, %1 : vector<96x256xf32>
    %10 = arith.truncf %9 : vector<96x256xf32> to vector<96x256xbf16>
    %c288 = arith.constant 288 : index
    %c0_7 = arith.constant 0 : index
    %11 = vector.load %arg6[%c288, %c0_7] : memref<480x256xbf16, #tpu.memory_space<vmem>>, vector<96x256xbf16>
    tpu.vector_store %arg6[%c288, %c0_7], %10 {strides = array<i32>} : memref<480x256xbf16, #tpu.memory_space<vmem>>, vector<96x256xbf16>,
    %12 = arith.mulf %0, %1 : vector<96x256xf32>
    %13 = arith.truncf %12 : vector<96x256xf32> to vector<96x256xbf16>
    %c384 = arith.constant 384 : index
    %c0_8 = arith.constant 0 : index
    %14 = vector.load %arg6[%c384, %c0_8] : memref<480x256xbf16, #tpu.memory_space<vmem>>, vector<96x256xbf16>
    tpu.vector_store %arg6[%c384, %c0_8], %13 {strides = array<i32>} : memref<480x256xbf16, #tpu.memory_space<vmem>>, vector<96x256xbf16>,
    %c0_9 = arith.constant 0 : index
    %c0_10 = arith.constant 0 : index
    %15 = vector.load %arg6[%c0_9, %c0_10] : memref<480x256xbf16, #tpu.memory_space<vmem>>, vector<480x256xbf16>
    %c0_11 = arith.constant 0 : index
    %c0_12 = arith.constant 0 : index
    %16 = vector.load %arg3[%c0_11, %c0_12] : memref<256x256xbf16, #tpu.memory_space<vmem>>, vector<256x256xbf16>
    %cst = arith.constant dense<0.000000e+00> : vector<480x256xf32>
    %17 = tpu.matmul %15, %16, %cst {dimension_numbers = #tpu.dot_dimension_numbers<[1], [0], [0], [1], [0, 0, 1, 1], [], []>} : vector<480x256xbf16>, vector<256x256xbf16>, vector<480x256xf32> -> vector<480x256xf32>
    %18 = vector.shape_cast %17 : vector<480x256xf32> to vector<30x16x256xf32>
    %19 = arith.truncf %18 : vector<30x16x256xf32> to vector<30x16x256xbf16>
    %c0_13 = arith.constant 0 : index
    %c0_14 = arith.constant 0 : index
    %c0_15 = arith.constant 0 : index
    %20 = vector.load %arg4[%c0_13, %c0_14, %c0_15] : memref<30x16x16xbf16, #tpu.memory_space<vmem>>, vector<30x16x16xbf16>
    "tpu.trace_start"() <{level = 10 : i32, message = "bod,bdl->bol"}> : () -> ()
    %cst_16 = arith.constant dense<0.000000e+00> : vector<30x16x256xf32>
    %21 = tpu.matmul %20, %19, %cst_16 {dimension_numbers = #tpu.dot_dimension_numbers<[2], [1], [1], [2], [0, 0, 0, 1, 1, 2], [0], [0]>} : vector<30x16x16xbf16>, vector<30x16x256xbf16>, vector<30x16x256xf32> -> vector<30x16x256xf32>
    "tpu.trace_stop"() : () -> ()
    %22 = vector.extract_strided_slice %21 {offsets = [0, 0, 0], sizes = [6, 16, 256], strides = [1, 1, 1]} : vector<30x16x256xf32> to vector<6x16x256xf32>
    %23 = vector.extract_strided_slice %21 {offsets = [6, 0, 0], sizes = [6, 16, 256], strides = [1, 1, 1]} : vector<30x16x256xf32> to vector<6x16x256xf32>
    %24 = vector.extract_strided_slice %21 {offsets = [12, 0, 0], sizes = [6, 16, 256], strides = [1, 1, 1]} : vector<30x16x256xf32> to vector<6x16x256xf32>
    %25 = vector.extract_strided_slice %21 {offsets = [18, 0, 0], sizes = [6, 16, 256], strides = [1, 1, 1]} : vector<30x16x256xf32> to vector<6x16x256xf32>
    %26 = vector.extract_strided_slice %21 {offsets = [24, 0, 0], sizes = [6, 16, 256], strides = [1, 1, 1]} : vector<30x16x256xf32> to vector<6x16x256xf32>
    %27 = arith.mulf %22, %22 : vector<6x16x256xf32>
    %28 = arith.mulf %23, %23 : vector<6x16x256xf32>
    %29 = arith.mulf %22, %23 : vector<6x16x256xf32>
    %30 = arith.subf %24, %27 : vector<6x16x256xf32>
    %31 = arith.subf %25, %28 : vector<6x16x256xf32>
    %32 = arith.subf %26, %29 : vector<6x16x256xf32>
    %cst_17 = arith.constant 2.000000e+00 : f32
    %33 = vector.broadcast %cst_17 : f32 to vector<6x16x256xf32>
    %34 = arith.mulf %33, %29 : vector<6x16x256xf32>
    %cst_18 = arith.constant 9.99999974E-5 : f32
    %35 = vector.broadcast %cst_18 : f32 to vector<6x16x256xf32>
    %36 = arith.addf %34, %35 : vector<6x16x256xf32>
    %cst_19 = arith.constant 2.000000e+00 : f32
    %37 = vector.broadcast %cst_19 : f32 to vector<6x16x256xf32>
    %38 = arith.mulf %37, %32 : vector<6x16x256xf32>
    %cst_20 = arith.constant 8.99999984E-4 : f32
    %39 = vector.broadcast %cst_20 : f32 to vector<6x16x256xf32>
    %40 = arith.addf %38, %39 : vector<6x16x256xf32>
    %41 = arith.mulf %36, %40 : vector<6x16x256xf32>
    %42 = arith.addf %27, %28 : vector<6x16x256xf32>
    %cst_21 = arith.constant 9.99999974E-5 : f32
    %43 = vector.broadcast %cst_21 : f32 to vector<6x16x256xf32>
    %44 = arith.addf %42, %43 : vector<6x16x256xf32>
    %45 = arith.addf %30, %31 : vector<6x16x256xf32>
    %cst_22 = arith.constant 8.99999984E-4 : f32
    %46 = vector.broadcast %cst_22 : f32 to vector<6x16x256xf32>
    %47 = arith.addf %45, %46 : vector<6x16x256xf32>
    %48 = arith.mulf %44, %47 : vector<6x16x256xf32>
    %49 = tpu.reciprocal %48 : vector<6x16x256xf32> -> vector<6x16x256xf32>
    %50 = arith.mulf %41, %49 : vector<6x16x256xf32>
    %51 = vector.shape_cast %50 : vector<6x16x256xf32> to vector<1x6x16x256xf32>
    %cst_23 = arith.constant dense<0.000000e+00> : vector<1xf32>
    %52 = vector.multi_reduction <add>, %51, %cst_23 [1, 2, 3] : vector<1x6x16x256xf32> to vector<1xf32>
    %53 = vector.shape_cast %52 : vector<1xf32> to vector<1x1x1x1xf32>
    %54 = vector.extract %53[0, 0, 0, 0] : f32 from vector<1x1x1x1xf32>
    %55 = vector.broadcast %54 : f32 to vector<1x1x1xf32>
    %c0_24 = arith.constant 0 : index
    %c0_25 = arith.constant 0 : index
    %c0_26 = arith.constant 0 : index
    %56 = vector.load %arg5[%c0_24, %c0_25, %c0_26] : memref<1x1x1xf32, #tpu.memory_space<vmem>>, vector<1x1x1xf32>
    tpu.vector_store %arg5[%c0_24, %c0_25, %c0_26], %55 {strides = array<i32>} : memref<1x1x1xf32, #tpu.memory_space<vmem>>, vector<1x1x1xf32>,
    return
  }
  func.func @transform_0(%arg0: i32) -> (i32, i32) {
    %c0_i32 = arith.constant 0 : i32
    %c0_i32_0 = arith.constant 0 : i32
    return %arg0, %c0_i32 : i32, i32
  }
  func.func @transform_1(%arg0: i32) -> (i32, i32) {
    %c0_i32 = arith.constant 0 : i32
    %c0_i32_0 = arith.constant 0 : i32
    return %arg0, %c0_i32 : i32, i32
  }
  func.func @transform_2(%arg0: i32) -> (i32, i32) {
    %c0_i32 = arith.constant 0 : i32
    %c0_i32_0 = arith.constant 0 : i32
    %c0_i32_1 = arith.constant 0 : i32
    return %c0_i32, %c0_i32_0 : i32, i32
  }
  func.func @transform_3(%arg0: i32) -> (i32, i32, i32) {
    %c0_i32 = arith.constant 0 : i32
    %c0_i32_0 = arith.constant 0 : i32
    %c0_i32_1 = arith.constant 0 : i32
    %c0_i32_2 = arith.constant 0 : i32
    return %c0_i32, %c0_i32_0, %c0_i32_1 : i32, i32, i32
  }
  func.func @transform_4(%arg0: i32) -> (i32, i32, i32) {
    %c0_i32 = arith.constant 0 : i32
    %c0_i32_0 = arith.constant 0 : i32
    %c0_i32_1 = arith.constant 0 : i32
    return %arg0, %c0_i32, %c0_i32_0 : i32, i32, i32
  }
}

</mosaic_0001>

<llo_original>
// kernel: tpu_custom_call.1
$region0: #{tpu_custom_call.1}
  #allocation0 [shape = 'u32[]', space=smem, size = 0x4, offset = 0x4, fixed_abs, tag = 'smem constant byte address 0x4 - core index']
  #allocation1 [shape = 'u32[144,128]{1,0:T(1,128)}', space=vmem, size = 0x12000, scoped, tag = 'internal scratch']
  #allocation2 [shape = 'bf16[480,256]{1,0:T(16,128)(2,1)}', space=vmem, size = 0x3c000, scoped, tag = 'scratch operand']
  %s0 = inlined_call_operand.hbm [shape: f32[96,256], index: 0, kind: input, shape index: {}]
  %s1 = inlined_call_operand.hbm [shape: f32[96,256], index: 1, kind: input, shape index: {}]
  %s2 = inlined_call_operand.vmem [shape: bf16[256,256], index: 2, kind: input, shape index: {}]
  %s3 = inlined_call_operand.vmem [shape: bf16[30,16,16], index: 3, kind: input, shape index: {}]
  %s4 = inlined_call_operand.hbm [shape: f32[1,1,1], index: 4, kind: output, shape index: {}]
  %s5 = sld [smem:[#allocation0]]
  $region34: #{tpu_custom_call.1} parent=0
    _
  %s7 = ssub.s32 1, %s5
  %s8 = scalar_select 0, %s7, %s5
  $region1: #{tpu_custom_call.1} parent=0
    #allocation3 [shape = 'u8[98304]{0}', space=vmem, size = 0x18000, scoped, tag = 'input window, operand 0, single buffered']
    #allocation4 [shape = 's32[1]{0}', space=sflag, size = 0x4, scoped, tag = 'scoped memory for tpu_custom_call.1']
    #allocation5 [shape = 's32[1]{0}', space=sflag, size = 0x4, scoped, tag = 'scoped memory for tpu_custom_call.1']
    #allocation6 [shape = 'u8[98304]{0}', space=vmem, size = 0x18000, scoped, tag = 'input window, operand 1, single buffered']
    #allocation7 [shape = 's32[1]{0}', space=sflag, size = 0x4, scoped, tag = 'scoped memory for tpu_custom_call.1']
    #allocation8 [shape = 'u8[512]{0}', space=vmem, size = 0x400, scoped, tag = 'output window, operand 0, single buffered']
    %9 = vsyncpa [#allocation4], 0
    %10 = vsyncpa [#allocation7], 0
    %11 = vsyncpa [#allocation5], 0
    // Predicated region
    $region2: #{tpu_custom_call.1} parent=1 // pred_check
      _
    $region3: #{tpu_custom_call.1} parent=1 // pred_check_branch
      %13 = sbr.rel (0) target = $region5
    $region4: #{tpu_custom_call.1} parent=1 // pred_region
      %s15 = ssub.s32 3072, 3072
      %16 = vsyncadd [#allocation4], %s15
      %s17 = sshll.u32 [#allocation3], 4
      %s18 = int_to_ptr.vmem [resolvable:$true] %s17
      %23 = dma.hbm_to_vmem [thread:$0]  %s0, 3072, %s18, [#allocation4], 256, 256, 16
    $region5: #{tpu_custom_call.1} parent=1 // pred_fallthru
      _
    // Predicated region
    $region6: #{tpu_custom_call.1} parent=1 // pred_check
      _
    $region7: #{tpu_custom_call.1} parent=1 // pred_check_branch
      %25 = sbr.rel (0) target = $region9
    $region8: #{tpu_custom_call.1} parent=1 // pred_region
      %s27 = ssub.s32 3072, 3072
      %28 = vsyncadd [#allocation7], %s27
      %s29 = sshll.u32 [#allocation6], 4
      %s30 = int_to_ptr.vmem [resolvable:$true] %s29
      %35 = dma.hbm_to_vmem [thread:$0]  %s1, 3072, %s30, [#allocation7], 256, 256, 16
    $region9: #{tpu_custom_call.1} parent=1 // pred_fallthru
      _
    // Predicated region
    $region10: #{tpu_custom_call.1} parent=1 // pred_check
      _
    $region11: #{tpu_custom_call.1} parent=1 // pred_check_branch
      %37 = sbr.rel (0) target = $region13
    $region12: #{tpu_custom_call.1} parent=1 // pred_region
      _
    $region13: #{tpu_custom_call.1} parent=1 // pred_fallthru
      _
    // Predicated region
    $region14: #{tpu_custom_call.1} parent=1 // pred_check
      _
    $region15: #{tpu_custom_call.1} parent=1 // pred_check_branch
      %39 = sbr.rel (0) target = $region17
    $region16: #{tpu_custom_call.1} parent=1 // pred_region
      _
    $region17: #{tpu_custom_call.1} parent=1 // pred_fallthru
      _
    // Predicated region
    $region18: #{tpu_custom_call.1} parent=1 // pred_check
      _
    $region19: #{tpu_custom_call.1} parent=1 // pred_check_branch
      %41 = sbr.rel (0) target = $region21
    $region20: #{tpu_custom_call.1} parent=1 // pred_region
      %42 = dma.done [#allocation4], 3072
    $region21: #{tpu_custom_call.1} parent=1 // pred_fallthru
      _
    // Predicated region
    $region22: #{tpu_custom_call.1} parent=1 // pred_check
      _
    $region23: #{tpu_custom_call.1} parent=1 // pred_check_branch
      %44 = sbr.rel (0) target = $region25
    $region24: #{tpu_custom_call.1} parent=1 // pred_region
      %45 = dma.done [#allocation7], 3072
    $region25: #{tpu_custom_call.1} parent=1 // pred_fallthru
      _
    %v47 = vld [vmem:[#allocation3] sm:$0xff]
    %v48 = vld [vmem:[#allocation3 + $0x8] sm:$0xff]
    %v49 = vld [vmem:[#allocation3 + $0x10] sm:$0xff]
    %v50 = vld [vmem:[#allocation3 + $0x18] sm:$0xff]
    %v51 = vld [vmem:[#allocation3 + $0x20] sm:$0xff]
    %v52 = vld [vmem:[#allocation3 + $0x28] sm:$0xff]
    %v53 = vld [vmem:[#allocation3 + $0x30] sm:$0xff]
    %v54 = vld [vmem:[#allocation3 + $0x38] sm:$0xff]
    %v55 = vld [vmem:[#allocation3 + $0x40] sm:$0xff]
    %v56 = vld [vmem:[#allocation3 + $0x48] sm:$0xff]
    %v57 = vld [vmem:[#allocation3 + $0x50] sm:$0xff]
    %v58 = vld [vmem:[#allocation3 + $0x58] sm:$0xff]
    %v59 = vld [vmem:[#allocation3 + $0x60] sm:$0xff]
    %v60 = vld [vmem:[#allocation3 + $0x68] sm:$0xff]
    %v61 = vld [vmem:[#allocation3 + $0x70] sm:$0xff]
    %v62 = vld [vmem:[#allocation3 + $0x78] sm:$0xff]
    %v63 = vld [vmem:[#allocation3 + $0x80] sm:$0xff]
    %v64 = vld [vmem:[#allocation3 + $0x88] sm:$0xff]
    %v65 = vld [vmem:[#allocation3 + $0x90] sm:$0xff]
    %v66 = vld [vmem:[#allocation3 + $0x98] sm:$0xff]
    %v67 = vld [vmem:[#allocation3 + $0xa0] sm:$0xff]
    %v68 = vld [vmem:[#allocation3 + $0xa8] sm:$0xff]
    %v69 = vld [vmem:[#allocation3 + $0xb0] sm:$0xff]
    %v70 = vld [vmem:[#allocation3 + $0xb8] sm:$0xff]
    %v71 = vld [vmem:[#allocation6] sm:$0xff]
    %v72 = vld [vmem:[#allocation6 + $0x8] sm:$0xff]
    %v73 = vld [vmem:[#allocation6 + $0x10] sm:$0xff]
    %v74 = vld [vmem:[#allocation6 + $0x18] sm:$0xff]
    %v75 = vld [vmem:[#allocation6 + $0x20] sm:$0xff]
    %v76 = vld [vmem:[#allocation6 + $0x28] sm:$0xff]
    %v77 = vld [vmem:[#allocation6 + $0x30] sm:$0xff]
    %v78 = vld [vmem:[#allocation6 + $0x38] sm:$0xff]
    %v79 = vld [vmem:[#allocation6 + $0x40] sm:$0xff]
    %v80 = vld [vmem:[#allocation6 + $0x48] sm:$0xff]
    %v81 = vld [vmem:[#allocation6 + $0x50] sm:$0xff]
    %v82 = vld [vmem:[#allocation6 + $0x58] sm:$0xff]
    %v83 = vld [vmem:[#allocation6 + $0x60] sm:$0xff]
    %v84 = vld [vmem:[#allocation6 + $0x68] sm:$0xff]
    %v85 = vld [vmem:[#allocation6 + $0x70] sm:$0xff]
    %v86 = vld [vmem:[#allocation6 + $0x78] sm:$0xff]
    %v87 = vld [vmem:[#allocation6 + $0x80] sm:$0xff]
    %v88 = vld [vmem:[#allocation6 + $0x88] sm:$0xff]
    %v89 = vld [vmem:[#allocation6 + $0x90] sm:$0xff]
    %v90 = vld [vmem:[#allocation6 + $0x98] sm:$0xff]
    %v91 = vld [vmem:[#allocation6 + $0xa0] sm:$0xff]
    %v92 = vld [vmem:[#allocation6 + $0xa8] sm:$0xff]
    %v93 = vld [vmem:[#allocation6 + $0xb0] sm:$0xff]
    %v94 = vld [vmem:[#allocation6 + $0xb8] sm:$0xff]
    %v95 = vpack.c.bf16 %v49, %v47
    %v96 = vpack.c.bf16 %v50, %v48
    %v97 = vpack.c.bf16 %v53, %v51
    %v98 = vpack.c.bf16 %v54, %v52
    %v99 = vpack.c.bf16 %v57, %v55
    %v100 = vpack.c.bf16 %v58, %v56
    %v101 = vpack.c.bf16 %v61, %v59
    %v102 = vpack.c.bf16 %v62, %v60
    %v103 = vpack.c.bf16 %v65, %v63
    %v104 = vpack.c.bf16 %v66, %v64
    %v105 = vpack.c.bf16 %v69, %v67
    %v106 = vpack.c.bf16 %v70, %v68
    %107 = vst [vmem:[#allocation2] sm:$0xff] %v95
    %108 = vst [vmem:[#allocation2 + $0x8] sm:$0xff] %v96
    %109 = vst [vmem:[#allocation2 + $0x10] sm:$0xff] %v97
    %110 = vst [vmem:[#allocation2 + $0x18] sm:$0xff] %v98
    %111 = vst [vmem:[#allocation2 + $0x20] sm:$0xff] %v99
    %112 = vst [vmem:[#allocation2 + $0x28] sm:$0xff] %v100
    %113 = vst [vmem:[#allocation2 + $0x30] sm:$0xff] %v101
    %114 = vst [vmem:[#allocation2 + $0x38] sm:$0xff] %v102
    %115 = vst [vmem:[#allocation2 + $0x40] sm:$0xff] %v103
    %116 = vst [vmem:[#allocation2 + $0x48] sm:$0xff] %v104
    %117 = vst [vmem:[#allocation2 + $0x50] sm:$0xff] %v105
    %118 = vst [vmem:[#allocation2 + $0x58] sm:$0xff] %v106
    %v119 = vpack.c.bf16 %v73, %v71
    %v120 = vpack.c.bf16 %v74, %v72
    %v121 = vpack.c.bf16 %v77, %v75
    %v122 = vpack.c.bf16 %v78, %v76
    %v123 = vpack.c.bf16 %v81, %v79
    %v124 = vpack.c.bf16 %v82, %v80
    %v125 = vpack.c.bf16 %v85, %v83
    %v126 = vpack.c.bf16 %v86, %v84
    %v127 = vpack.c.bf16 %v89, %v87
    %v128 = vpack.c.bf16 %v90, %v88
    %v129 = vpack.c.bf16 %v93, %v91
    %v130 = vpack.c.bf16 %v94, %v92
    %131 = vst [vmem:[#allocation2 + $0x60] sm:$0xff] %v119
    %132 = vst [vmem:[#allocation2 + $0x68] sm:$0xff] %v120
    %133 = vst [vmem:[#allocation2 + $0x70] sm:$0xff] %v121
    %134 = vst [vmem:[#allocation2 + $0x78] sm:$0xff] %v122
    %135 = vst [vmem:[#allocation2 + $0x80] sm:$0xff] %v123
    %136 = vst [vmem:[#allocation2 + $0x88] sm:$0xff] %v124
    %137 = vst [vmem:[#allocation2 + $0x90] sm:$0xff] %v125
    %138 = vst [vmem:[#allocation2 + $0x98] sm:$0xff] %v126
    %139 = vst [vmem:[#allocation2 + $0xa0] sm:$0xff] %v127
    %140 = vst [vmem:[#allocation2 + $0xa8] sm:$0xff] %v128
    %141 = vst [vmem:[#allocation2 + $0xb0] sm:$0xff] %v129
    %142 = vst [vmem:[#allocation2 + $0xb8] sm:$0xff] %v130
    %v143 = vmul.f32 %v47, %v47
    %v144 = vmul.f32 %v48, %v48
    %v145 = vmul.f32 %v49, %v49
    %v146 = vmul.f32 %v50, %v50
    %v147 = vmul.f32 %v51, %v51
    %v148 = vmul.f32 %v52, %v52
    %v149 = vmul.f32 %v53, %v53
    %v150 = vmul.f32 %v54, %v54
    %v151 = vmul.f32 %v55, %v55
    %v152 = vmul.f32 %v56, %v56
    %v153 = vmul.f32 %v57, %v57
    %v154 = vmul.f32 %v58, %v58
    %v155 = vmul.f32 %v59, %v59
    %v156 = vmul.f32 %v60, %v60
    %v157 = vmul.f32 %v61, %v61
    %v158 = vmul.f32 %v62, %v62
    %v159 = vmul.f32 %v63, %v63
    %v160 = vmul.f32 %v64, %v64
    %v161 = vmul.f32 %v65, %v65
    %v162 = vmul.f32 %v66, %v66
    %v163 = vmul.f32 %v67, %v67
    %v164 = vmul.f32 %v68, %v68
    %v165 = vmul.f32 %v69, %v69
    %v166 = vmul.f32 %v70, %v70
    %v167 = vpack.c.bf16 %v145, %v143
    %v168 = vpack.c.bf16 %v146, %v144
    %v169 = vpack.c.bf16 %v149, %v147
    %v170 = vpack.c.bf16 %v150, %v148
    %v171 = vpack.c.bf16 %v153, %v151
    %v172 = vpack.c.bf16 %v154, %v152
    %v173 = vpack.c.bf16 %v157, %v155
    %v174 = vpack.c.bf16 %v158, %v156
    %v175 = vpack.c.bf16 %v161, %v159
    %v176 = vpack.c.bf16 %v162, %v160
    %v177 = vpack.c.bf16 %v165, %v163
    %v178 = vpack.c.bf16 %v166, %v164
    %179 = vst [vmem:[#allocation2 + $0xc0] sm:$0xff] %v167
    %180 = vst [vmem:[#allocation2 + $0xc8] sm:$0xff] %v168
    %181 = vst [vmem:[#allocation2 + $0xd0] sm:$0xff] %v169
    %182 = vst [vmem:[#allocation2 + $0xd8] sm:$0xff] %v170
    %183 = vst [vmem:[#allocation2 + $0xe0] sm:$0xff] %v171
    %184 = vst [vmem:[#allocation2 + $0xe8] sm:$0xff] %v172
    %185 = vst [vmem:[#allocation2 + $0xf0] sm:$0xff] %v173
    %186 = vst [vmem:[#allocation2 + $0xf8] sm:$0xff] %v174
    %187 = vst [vmem:[#allocation2 + $0x100] sm:$0xff] %v175
    %188 = vst [vmem:[#allocation2 + $0x108] sm:$0xff] %v176
    %189 = vst [vmem:[#allocation2 + $0x110] sm:$0xff] %v177
    %190 = vst [vmem:[#allocation2 + $0x118] sm:$0xff] %v178
    %v191 = vmul.f32 %v71, %v71
    %v192 = vmul.f32 %v72, %v72
    %v193 = vmul.f32 %v73, %v73
    %v194 = vmul.f32 %v74, %v74
    %v195 = vmul.f32 %v75, %v75
    %v196 = vmul.f32 %v76, %v76
    %v197 = vmul.f32 %v77, %v77
    %v198 = vmul.f32 %v78, %v78
    %v199 = vmul.f32 %v79, %v79
    %v200 = vmul.f32 %v80, %v80
    %v201 = vmul.f32 %v81, %v81
    %v202 = vmul.f32 %v82, %v82
    %v203 = vmul.f32 %v83, %v83
    %v204 = vmul.f32 %v84, %v84
    %v205 = vmul.f32 %v85, %v85
    %v206 = vmul.f32 %v86, %v86
    %v207 = vmul.f32 %v87, %v87
    %v208 = vmul.f32 %v88, %v88
    %v209 = vmul.f32 %v89, %v89
    %v210 = vmul.f32 %v90, %v90
    %v211 = vmul.f32 %v91, %v91
    %v212 = vmul.f32 %v92, %v92
    %v213 = vmul.f32 %v93, %v93
    %v214 = vmul.f32 %v94, %v94
    %v215 = vpack.c.bf16 %v193, %v191
    %v216 = vpack.c.bf16 %v194, %v192
    %v217 = vpack.c.bf16 %v197, %v195
    %v218 = vpack.c.bf16 %v198, %v196
    %v219 = vpack.c.bf16 %v201, %v199
    %v220 = vpack.c.bf16 %v202, %v200
    %v221 = vpack.c.bf16 %v205, %v203
    %v222 = vpack.c.bf16 %v206, %v204
    %v223 = vpack.c.bf16 %v209, %v207
    %v224 = vpack.c.bf16 %v210, %v208
    %v225 = vpack.c.bf16 %v213, %v211
    %v226 = vpack.c.bf16 %v214, %v212
    %227 = vst [vmem:[#allocation2 + $0x120] sm:$0xff] %v215
    %228 = vst [vmem:[#allocation2 + $0x128] sm:$0xff] %v216
    %229 = vst [vmem:[#allocation2 + $0x130] sm:$0xff] %v217
    %230 = vst [vmem:[#allocation2 + $0x138] sm:$0xff] %v218
    %231 = vst [vmem:[#allocation2 + $0x140] sm:$0xff] %v219
    %232 = vst [vmem:[#allocation2 + $0x148] sm:$0xff] %v220
    %233 = vst [vmem:[#allocation2 + $0x150] sm:$0xff] %v221
    %234 = vst [vmem:[#allocation2 + $0x158] sm:$0xff] %v222
    %235 = vst [vmem:[#allocation2 + $0x160] sm:$0xff] %v223
    %236 = vst [vmem:[#allocation2 + $0x168] sm:$0xff] %v224
    %237 = vst [vmem:[#allocation2 + $0x170] sm:$0xff] %v225
    %238 = vst [vmem:[#allocation2 + $0x178] sm:$0xff] %v226
    %v239 = vmul.f32 %v47, %v71
    %v240 = vmul.f32 %v48, %v72
    %v241 = vmul.f32 %v49, %v73
    %v242 = vmul.f32 %v50, %v74
    %v243 = vmul.f32 %v51, %v75
    %v244 = vmul.f32 %v52, %v76
    %v245 = vmul.f32 %v53, %v77
    %v246 = vmul.f32 %v54, %v78
    %v247 = vmul.f32 %v55, %v79
    %v248 = vmul.f32 %v56, %v80
    %v249 = vmul.f32 %v57, %v81
    %v250 = vmul.f32 %v58, %v82
    %v251 = vmul.f32 %v59, %v83
    %v252 = vmul.f32 %v60, %v84
    %v253 = vmul.f32 %v61, %v85
    %v254 = vmul.f32 %v62, %v86
    %v255 = vmul.f32 %v63, %v87
    %v256 = vmul.f32 %v64, %v88
    %v257 = vmul.f32 %v65, %v89
    %v258 = vmul.f32 %v66, %v90
    %v259 = vmul.f32 %v67, %v91
    %v260 = vmul.f32 %v68, %v92
    %v261 = vmul.f32 %v69, %v93
    %v262 = vmul.f32 %v70, %v94
    %v263 = vpack.c.bf16 %v241, %v239
    %v264 = vpack.c.bf16 %v242, %v240
    %v265 = vpack.c.bf16 %v245, %v243
    %v266 = vpack.c.bf16 %v246, %v244
    %v267 = vpack.c.bf16 %v249, %v247
    %v268 = vpack.c.bf16 %v250, %v248
    %v269 = vpack.c.bf16 %v253, %v251
    %v270 = vpack.c.bf16 %v254, %v252
    %v271 = vpack.c.bf16 %v257, %v255
    %v272 = vpack.c.bf16 %v258, %v256
    %v273 = vpack.c.bf16 %v261, %v259
    %v274 = vpack.c.bf16 %v262, %v260
    %275 = vst [vmem:[#allocation2 + $0x180] sm:$0xff] %v263
    %276 = vst [vmem:[#allocation2 + $0x188] sm:$0xff] %v264
    %277 = vst [vmem:[#allocation2 + $0x190] sm:$0xff] %v265
    %278 = vst [vmem:[#allocation2 + $0x198] sm:$0xff] %v266
    %279 = vst [vmem:[#allocation2 + $0x1a0] sm:$0xff] %v267
    %280 = vst [vmem:[#allocation2 + $0x1a8] sm:$0xff] %v268
    %281 = vst [vmem:[#allocation2 + $0x1b0] sm:$0xff] %v269
    %282 = vst [vmem:[#allocation2 + $0x1b8] sm:$0xff] %v270
    %283 = vst [vmem:[#allocation2 + $0x1c0] sm:$0xff] %v271
    %284 = vst [vmem:[#allocation2 + $0x1c8] sm:$0xff] %v272
    %285 = vst [vmem:[#allocation2 + $0x1d0] sm:$0xff] %v273
    %286 = vst [vmem:[#allocation2 + $0x1d8] sm:$0xff] %v274
    %v287 = vld [vmem:[#allocation2] sm:$0xff]
    %v288 = vld [vmem:[#allocation2 + $0x8] sm:$0xff]
    %v289 = vld [vmem:[#allocation2 + $0x10] sm:$0xff]
    %v290 = vld [vmem:[#allocation2 + $0x18] sm:$0xff]
    %v291 = vld [vmem:[#allocation2 + $0x20] sm:$0xff]
    %v292 = vld [vmem:[#allocation2 + $0x28] sm:$0xff]
    %v293 = vld [vmem:[#allocation2 + $0x30] sm:$0xff]
    %v294 = vld [vmem:[#allocation2 + $0x38] sm:$0xff]
    %v295 = vld [vmem:[#allocation2 + $0x40] sm:$0xff]
    %v296 = vld [vmem:[#allocation2 + $0x48] sm:$0xff]
    %v297 = vld [vmem:[#allocation2 + $0x50] sm:$0xff]
    %v298 = vld [vmem:[#allocation2 + $0x58] sm:$0xff]
    %v299 = vld [vmem:[#allocation2 + $0x60] sm:$0xff]
    %v300 = vld [vmem:[#allocation2 + $0x68] sm:$0xff]
    %v301 = vld [vmem:[#allocation2 + $0x70] sm:$0xff]
    %v302 = vld [vmem:[#allocation2 + $0x78] sm:$0xff]
    %v303 = vld [vmem:[#allocation2 + $0x80] sm:$0xff]
    %v304 = vld [vmem:[#allocation2 + $0x88] sm:$0xff]
    %v305 = vld [vmem:[#allocation2 + $0x90] sm:$0xff]
    %v306 = vld [vmem:[#allocation2 + $0x98] sm:$0xff]
    %v307 = vld [vmem:[#allocation2 + $0xa0] sm:$0xff]
    %v308 = vld [vmem:[#allocation2 + $0xa8] sm:$0xff]
    %v309 = vld [vmem:[#allocation2 + $0xb0] sm:$0xff]
    %v310 = vld [vmem:[#allocation2 + $0xb8] sm:$0xff]
    %v311 = vld [vmem:[#allocation2 + $0xc0] sm:$0xff]
    %v312 = vld [vmem:[#allocation2 + $0xc8] sm:$0xff]
    %v313 = vld [vmem:[#allocation2 + $0xd0] sm:$0xff]
    %v314 = vld [vmem:[#allocation2 + $0xd8] sm:$0xff]
    %v315 = vld [vmem:[#allocation2 + $0xe0] sm:$0xff]
    %v316 = vld [vmem:[#allocation2 + $0xe8] sm:$0xff]
    %v317 = vld [vmem:[#allocation2 + $0xf0] sm:$0xff]
    %v318 = vld [vmem:[#allocation2 + $0xf8] sm:$0xff]
    %v319 = vld [vmem:[#allocation2 + $0x100] sm:$0xff]
    %v320 = vld [vmem:[#allocation2 + $0x108] sm:$0xff]
    %v321 = vld [vmem:[#allocation2 + $0x110] sm:$0xff]
    %v322 = vld [vmem:[#allocation2 + $0x118] sm:$0xff]
    %v323 = vld [vmem:[#allocation2 + $0x120] sm:$0xff]
    %v324 = vld [vmem:[#allocation2 + $0x128] sm:$0xff]
    %v325 = vld [vmem:[#allocation2 + $0x130] sm:$0xff]
    %v326 = vld [vmem:[#allocation2 + $0x138] sm:$0xff]
    %v327 = vld [vmem:[#allocation2 + $0x140] sm:$0xff]
    %v328 = vld [vmem:[#allocation2 + $0x148] sm:$0xff]
    %v329 = vld [vmem:[#allocation2 + $0x150] sm:$0xff]
    %v330 = vld [vmem:[#allocation2 + $0x158] sm:$0xff]
    %v331 = vld [vmem:[#allocation2 + $0x160] sm:$0xff]
    %v332 = vld [vmem:[#allocation2 + $0x168] sm:$0xff]
    %v333 = vld [vmem:[#allocation2 + $0x170] sm:$0xff]
    %v334 = vld [vmem:[#allocation2 + $0x178] sm:$0xff]
    %v335 = vld [vmem:[#allocation2 + $0x180] sm:$0xff]
    %v336 = vld [vmem:[#allocation2 + $0x188] sm:$0xff]
    %v337 = vld [vmem:[#allocation2 + $0x190] sm:$0xff]
    %v338 = vld [vmem:[#allocation2 + $0x198] sm:$0xff]
    %v339 = vld [vmem:[#allocation2 + $0x1a0] sm:$0xff]
    %v340 = vld [vmem:[#allocation2 + $0x1a8] sm:$0xff]
    %v341 = vld [vmem:[#allocation2 + $0x1b0] sm:$0xff]
    %v342 = vld [vmem:[#allocation2 + $0x1b8] sm:$0xff]
    %v343 = vld [vmem:[#allocation2 + $0x1c0] sm:$0xff]
    %v344 = vld [vmem:[#allocation2 + $0x1c8] sm:$0xff]
    %v345 = vld [vmem:[#allocation2 + $0x1d0] sm:$0xff]
    %v346 = vld [vmem:[#allocation2 + $0x1d8] sm:$0xff]
    %v347 = vld [vmem:[%s2] sm:$0xff]
    %v348 = vld [vmem:[%s2 + $0x8] sm:$0xff]
    %v349 = vld [vmem:[%s2 + $0x10] sm:$0xff]
    %v350 = vld [vmem:[%s2 + $0x18] sm:$0xff]
    %v351 = vld [vmem:[%s2 + $0x20] sm:$0xff]
    %v352 = vld [vmem:[%s2 + $0x28] sm:$0xff]
    %v353 = vld [vmem:[%s2 + $0x30] sm:$0xff]
    %v354 = vld [vmem:[%s2 + $0x38] sm:$0xff]
    %v355 = vld [vmem:[%s2 + $0x40] sm:$0xff]
    %v356 = vld [vmem:[%s2 + $0x48] sm:$0xff]
    %v357 = vld [vmem:[%s2 + $0x50] sm:$0xff]
    %v358 = vld [vmem:[%s2 + $0x58] sm:$0xff]
    %v359 = vld [vmem:[%s2 + $0x60] sm:$0xff]
    %v360 = vld [vmem:[%s2 + $0x68] sm:$0xff]
    %v361 = vld [vmem:[%s2 + $0x70] sm:$0xff]
    %v362 = vld [vmem:[%s2 + $0x78] sm:$0xff]
    %v363 = vld [vmem:[%s2 + $0x80] sm:$0xff]
    %v364 = vld [vmem:[%s2 + $0x88] sm:$0xff]
    %v365 = vld [vmem:[%s2 + $0x90] sm:$0xff]
    %v366 = vld [vmem:[%s2 + $0x98] sm:$0xff]
    %v367 = vld [vmem:[%s2 + $0xa0] sm:$0xff]
    %v368 = vld [vmem:[%s2 + $0xa8] sm:$0xff]
    %v369 = vld [vmem:[%s2 + $0xb0] sm:$0xff]
    %v370 = vld [vmem:[%s2 + $0xb8] sm:$0xff]
    %v371 = vld [vmem:[%s2 + $0xc0] sm:$0xff]
    %v372 = vld [vmem:[%s2 + $0xc8] sm:$0xff]
    %v373 = vld [vmem:[%s2 + $0xd0] sm:$0xff]
    %v374 = vld [vmem:[%s2 + $0xd8] sm:$0xff]
    %v375 = vld [vmem:[%s2 + $0xe0] sm:$0xff]
    %v376 = vld [vmem:[%s2 + $0xe8] sm:$0xff]
    %v377 = vld [vmem:[%s2 + $0xf0] sm:$0xff]
    %v378 = vld [vmem:[%s2 + $0xf8] sm:$0xff]
    %v411 = vunpack.c.l.b16 %v347
    %v412 = vunpack.c.h.b16 %v347
    %v413 = vunpack.c.l.b16 %v348
    %v414 = vunpack.c.h.b16 %v348
    %v415 = vunpack.c.l.b16 %v349
    %v416 = vunpack.c.h.b16 %v349
    %v417 = vunpack.c.l.b16 %v350
    %v418 = vunpack.c.h.b16 %v350
    %v419 = vunpack.c.l.b16 %v351
    %v420 = vunpack.c.h.b16 %v351
    %v421 = vunpack.c.l.b16 %v352
    %v422 = vunpack.c.h.b16 %v352
    %v423 = vunpack.c.l.b16 %v353
    %v424 = vunpack.c.h.b16 %v353
    %v425 = vunpack.c.l.b16 %v354
    %v426 = vunpack.c.h.b16 %v354
    %v427 = vunpack.c.l.b16 %v355
    %v428 = vunpack.c.h.b16 %v355
    %v429 = vunpack.c.l.b16 %v356
    %v430 = vunpack.c.h.b16 %v356
    %v431 = vunpack.c.l.b16 %v357
    %v432 = vunpack.c.h.b16 %v357
    %v433 = vunpack.c.l.b16 %v358
    %v434 = vunpack.c.h.b16 %v358
    %v435 = vunpack.c.l.b16 %v359
    %v436 = vunpack.c.h.b16 %v359
    %v437 = vunpack.c.l.b16 %v360
    %v438 = vunpack.c.h.b16 %v360
    %v439 = vunpack.c.l.b16 %v361
    %v440 = vunpack.c.h.b16 %v361
    %v441 = vunpack.c.l.b16 %v362
    %v442 = vunpack.c.h.b16 %v362
    %v443 = vunpack.c.l.b16 %v363
    %v444 = vunpack.c.h.b16 %v363
    %v445 = vunpack.c.l.b16 %v364
    %v446 = vunpack.c.h.b16 %v364
    %v447 = vunpack.c.l.b16 %v365
    %v448 = vunpack.c.h.b16 %v365
    %v449 = vunpack.c.l.b16 %v366
    %v450 = vunpack.c.h.b16 %v366
    %v451 = vunpack.c.l.b16 %v367
    %v452 = vunpack.c.h.b16 %v367
    %v453 = vunpack.c.l.b16 %v368
    %v454 = vunpack.c.h.b16 %v368
    %v455 = vunpack.c.l.b16 %v369
    %v456 = vunpack.c.h.b16 %v369
    %v457 = vunpack.c.l.b16 %v370
    %v458 = vunpack.c.h.b16 %v370
    %v459 = vunpack.c.l.b16 %v371
    %v460 = vunpack.c.h.b16 %v371
    %v461 = vunpack.c.l.b16 %v372
    %v462 = vunpack.c.h.b16 %v372
    %v463 = vunpack.c.l.b16 %v373
    %v464 = vunpack.c.h.b16 %v373
    %v465 = vunpack.c.l.b16 %v374
    %v466 = vunpack.c.h.b16 %v374
    %v467 = vunpack.c.l.b16 %v375
    %v468 = vunpack.c.h.b16 %v375
    %v469 = vunpack.c.l.b16 %v376
    %v470 = vunpack.c.h.b16 %v376
    %v471 = vunpack.c.l.b16 %v377
    %v472 = vunpack.c.h.b16 %v377
    %v473 = vunpack.c.l.b16 %v378
    %v474 = vunpack.c.h.b16 %v378
    %v475 = vpack.c.b16 %v413, %v411
    %v476 = vpack.c.b16 %v414, %v412
    %v477 = vpack.c.b16 %v417, %v415
    %v478 = vpack.c.b16 %v418, %v416
    %v479 = vpack.c.b16 %v421, %v419
    %v480 = vpack.c.b16 %v422, %v420
    %v481 = vpack.c.b16 %v425, %v423
    %v482 = vpack.c.b16 %v426, %v424
    %v483 = vpack.c.b16 %v429, %v427
    %v484 = vpack.c.b16 %v430, %v428
    %v485 = vpack.c.b16 %v433, %v431
    %v486 = vpack.c.b16 %v434, %v432
    %v487 = vpack.c.b16 %v437, %v435
    %v488 = vpack.c.b16 %v438, %v436
    %v489 = vpack.c.b16 %v441, %v439
    %v490 = vpack.c.b16 %v442, %v440
    %v491 = vpack.c.b16 %v445, %v443
    %v492 = vpack.c.b16 %v446, %v444
    %v493 = vpack.c.b16 %v449, %v447
    %v494 = vpack.c.b16 %v450, %v448
    %v495 = vpack.c.b16 %v453, %v451
    %v496 = vpack.c.b16 %v454, %v452
    %v497 = vpack.c.b16 %v457, %v455
    %v498 = vpack.c.b16 %v458, %v456
    %v499 = vpack.c.b16 %v461, %v459
    %v500 = vpack.c.b16 %v462, %v460
    %v501 = vpack.c.b16 %v465, %v463
    %v502 = vpack.c.b16 %v466, %v464
    %v503 = vpack.c.b16 %v469, %v467
    %v504 = vpack.c.b16 %v470, %v468
    %v505 = vpack.c.b16 %v473, %v471
    %v506 = vpack.c.b16 %v474, %v472
    %539 = vmatprep.subr.bf16.mxu0 %v476
    %540 = vmatpush1.bf16.msra.mxu0 %v475
    %541 = vmatprep.subr.bf16.mxu0 %v478
    %542 = vmatpush1.bf16.msra.mxu0 %v477
    %543 = vmatprep.subr.bf16.mxu0 %v480
    %544 = vmatpush1.bf16.msra.mxu0 %v479
    %545 = vmatprep.subr.bf16.mxu0 %v482
    %546 = vmatpush1.bf16.msra.mxu0 %v481
    %547 = vmatprep.subr.bf16.mxu0 %v484
    %548 = vmatpush1.bf16.msra.mxu0 %v483
    %549 = vmatprep.subr.bf16.mxu0 %v486
    %550 = vmatpush1.bf16.msra.mxu0 %v485
    %551 = vmatprep.subr.bf16.mxu0 %v488
    %552 = vmatpush1.bf16.msra.mxu0 %v487
    %553 = vmatprep.subr.bf16.mxu0 %v490
    %554 = vmatpush1.bf16.msra.mxu0 %v489
    %555 = vmatprep.subr.bf16.mxu0 %v492
    %556 = vmatpush1.bf16.msra.mxu0 %v491
    %557 = vmatprep.subr.bf16.mxu0 %v494
    %558 = vmatpush1.bf16.msra.mxu0 %v493
    %559 = vmatprep.subr.bf16.mxu0 %v496
    %560 = vmatpush1.bf16.msra.mxu0 %v495
    %561 = vmatprep.subr.bf16.mxu0 %v498
    %562 = vmatpush1.bf16.msra.mxu0 %v497
    %563 = vmatprep.subr.bf16.mxu0 %v500
    %564 = vmatpush1.bf16.msra.mxu0 %v499
    %565 = vmatprep.subr.bf16.mxu0 %v502
    %566 = vmatpush1.bf16.msra.mxu0 %v501
    %567 = vmatprep.subr.bf16.mxu0 %v504
    %568 = vmatpush1.bf16.msra.mxu0 %v503
    %569 = vmatprep.subr.bf16.mxu0 %v506
    %570 = vmatpush1.bf16.msra.mxu0 %v505
    %571 = vmatprep.mubr.bf16.mxu0 %v288
    %572 = vmatmul.mubr.bf16.gmra.mrb[0].mxu0 %v287
    %v573 = vpop.f32.mrb[0].mxu0
    %v574 = vadd.f32 0.0, %v573
    %v575 = vpop.f32.mrb[0].mxu0
    %v576 = vadd.f32 0.0, %v575
    %v577 = vpop.f32.mrb[0].mxu0
    %v578 = vadd.f32 0.0, %v577
    %v579 = vpop.f32.mrb[0].mxu0
    %v580 = vadd.f32 0.0, %v579
    %581 = vmatprep.mubr.bf16.mxu0 %v290
    %582 = vmatmul.mubr.bf16.gmra.mrb[0].mxu0 %v289
    %v583 = vpop.f32.mrb[0].mxu0
    %v584 = vadd.f32 0.0, %v583
    %v585 = vpop.f32.mrb[0].mxu0
    %v586 = vadd.f32 0.0, %v585
    %v587 = vpop.f32.mrb[0].mxu0
    %v588 = vadd.f32 0.0, %v587
    %v589 = vpop.f32.mrb[0].mxu0
    %v590 = vadd.f32 0.0, %v589
    %591 = vmatprep.mubr.bf16.mxu0 %v292
    %592 = vmatmul.mubr.bf16.gmra.mrb[0].mxu0 %v291
    %v593 = vpop.f32.mrb[0].mxu0
    %v594 = vadd.f32 0.0, %v593
    %v595 = vpop.f32.mrb[0].mxu0
    %v596 = vadd.f32 0.0, %v595
    %v597 = vpop.f32.mrb[0].mxu0
    %v598 = vadd.f32 0.0, %v597
    %v599 = vpop.f32.mrb[0].mxu0
    %v600 = vadd.f32 0.0, %v599
    %601 = vmatprep.mubr.bf16.mxu0 %v294
    %602 = vmatmul.mubr.bf16.gmra.mrb[0].mxu0 %v293
    %v603 = vpop.f32.mrb[0].mxu0
    %v604 = vadd.f32 0.0, %v603
    %v605 = vpop.f32.mrb[0].mxu0
    %v606 = vadd.f32 0.0, %v605
    %v607 = vpop.f32.mrb[0].mxu0
    %v608 = vadd.f32 0.0, %v607
    %v609 = vpop.f32.mrb[0].mxu0
    %v610 = vadd.f32 0.0, %v609
    %611 = vmatprep.mubr.bf16.mxu0 %v296
    %612 = vmatmul.mubr.bf16.gmra.mrb[0].mxu0 %v295
    %v613 = vpop.f32.mrb[0].mxu0
    %v614 = vadd.f32 0.0, %v613
    %v615 = vpop.f32.mrb[0].mxu0
    %v616 = vadd.f32 0.0, %v615
    %v617 = vpop.f32.mrb[0].mxu0
    %v618 = vadd.f32 0.0, %v617
    %v619 = vpop.f32.mrb[0].mxu0
    %v620 = vadd.f32 0.0, %v619
    %621 = vmatprep.mubr.bf16.mxu0 %v298
    %622 = vmatmul.mubr.bf16.gmra.mrb[0].mxu0 %v297
    %v623 = vpop.f32.mrb[0].mxu0
    %v624 = vadd.f32 0.0, %v623
    %v625 = vpop.f32.mrb[0].mxu0
    %v626 = vadd.f32 0.0, %v625
    %v627 = vpop.f32.mrb[0].mxu0
    %v628 = vadd.f32 0.0, %v627
    %v629 = vpop.f32.mrb[0].mxu0
    %v630 = vadd.f32 0.0, %v629
    %631 = vmatprep.mubr.bf16.mxu0 %v300
    %632 = vmatmul.mubr.bf16.gmra.mrb[0].mxu0 %v299
    %v633 = vpop.f32.mrb[0].mxu0
    %v634 = vadd.f32 0.0, %v633
    %v635 = vpop.f32.mrb[0].mxu0
    %v636 = vadd.f32 0.0, %v635
    %v637 = vpop.f32.mrb[0].mxu0
    %v638 = vadd.f32 0.0, %v637
    %v639 = vpop.f32.mrb[0].mxu0
    %v640 = vadd.f32 0.0, %v639
    %641 = vmatprep.mubr.bf16.mxu0 %v302
    %642 = vmatmul.mubr.bf16.gmra.mrb[0].mxu0 %v301
    %v643 = vpop.f32.mrb[0].mxu0
    %v644 = vadd.f32 0.0, %v643
    %v645 = vpop.f32.mrb[0].mxu0
    %v646 = vadd.f32 0.0, %v645
    %v647 = vpop.f32.mrb[0].mxu0
    %v648 = vadd.f32 0.0, %v647
    %v649 = vpop.f32.mrb[0].mxu0
    %v650 = vadd.f32 0.0, %v649
    %651 = vmatprep.mubr.bf16.mxu0 %v304
    %652 = vmatmul.mubr.bf16.gmra.mrb[0].mxu0 %v303
    %v653 = vpop.f32.mrb[0].mxu0
    %v654 = vadd.f32 0.0, %v653
    %v655 = vpop.f32.mrb[0].mxu0
    %v656 = vadd.f32 0.0, %v655
    %v657 = vpop.f32.mrb[0].mxu0
    %v658 = vadd.f32 0.0, %v657
    %v659 = vpop.f32.mrb[0].mxu0
    %v660 = vadd.f32 0.0, %v659
    %661 = vmatprep.mubr.bf16.mxu0 %v306
    %662 = vmatmul.mubr.bf16.gmra.mrb[0].mxu0 %v305
    %v663 = vpop.f32.mrb[0].mxu0
    %v664 = vadd.f32 0.0, %v663
    %v665 = vpop.f32.mrb[0].mxu0
    %v666 = vadd.f32 0.0, %v665
    %v667 = vpop.f32.mrb[0].mxu0
    %v668 = vadd.f32 0.0, %v667
    %v669 = vpop.f32.mrb[0].mxu0
    %v670 = vadd.f32 0.0, %v669
    %671 = vmatprep.mubr.bf16.mxu0 %v308
    %672 = vmatmul.mubr.bf16.gmra.mrb[0].mxu0 %v307
    %v673 = vpop.f32.mrb[0].mxu0
    %v674 = vadd.f32 0.0, %v673
    %v675 = vpop.f32.mrb[0].mxu0
    %v676 = vadd.f32 0.0, %v675
    %v677 = vpop.f32.mrb[0].mxu0
    %v678 = vadd.f32 0.0, %v677
    %v679 = vpop.f32.mrb[0].mxu0
    %v680 = vadd.f32 0.0, %v679
    %681 = vmatprep.mubr.bf16.mxu0 %v310
    %682 = vmatmul.mubr.bf16.gmra.mrb[0].mxu0 %v309
    %v683 = vpop.f32.mrb[0].mxu0
    %v684 = vadd.f32 0.0, %v683
    %v685 = vpop.f32.mrb[0].mxu0
    %v686 = vadd.f32 0.0, %v685
    %v687 = vpop.f32.mrb[0].mxu0
    %v688 = vadd.f32 0.0, %v687
    %v689 = vpop.f32.mrb[0].mxu0
    %v690 = vadd.f32 0.0, %v689
    %691 = vmatprep.mubr.bf16.mxu0 %v312
    %692 = vmatmul.mubr.bf16.gmra.mrb[0].mxu0 %v311
    %v693 = vpop.f32.mrb[0].mxu0
    %v694 = vadd.f32 0.0, %v693
    %v695 = vpop.f32.mrb[0].mxu0
    %v696 = vadd.f32 0.0, %v695
    %v697 = vpop.f32.mrb[0].mxu0
    %v698 = vadd.f32 0.0, %v697
    %v699 = vpop.f32.mrb[0].mxu0
    %v700 = vadd.f32 0.0, %v699
    %701 = vmatprep.mubr.bf16.mxu0 %v314
    %702 = vmatmul.mubr.bf16.gmra.mrb[0].mxu0 %v313
    %v703 = vpop.f32.mrb[0].mxu0
    %v704 = vadd.f32 0.0, %v703
    %v705 = vpop.f32.mrb[0].mxu0
    %v706 = vadd.f32 0.0, %v705
    %v707 = vpop.f32.mrb[0].mxu0
    %v708 = vadd.f32 0.0, %v707
    %v709 = vpop.f32.mrb[0].mxu0
    %v710 = vadd.f32 0.0, %v709
    %711 = vmatprep.mubr.bf16.mxu0 %v316
    %712 = vmatmul.mubr.bf16.gmra.mrb[0].mxu0 %v315
    %v713 = vpop.f32.mrb[0].mxu0
    %v714 = vadd.f32 0.0, %v713
    %v715 = vpop.f32.mrb[0].mxu0
    %v716 = vadd.f32 0.0, %v715
    %v717 = vpop.f32.mrb[0].mxu0
    %v718 = vadd.f32 0.0, %v717
    %v719 = vpop.f32.mrb[0].mxu0
    %v720 = vadd.f32 0.0, %v719
    %721 = vmatprep.mubr.bf16.mxu0 %v318
    %722 = vmatmul.mubr.bf16.gmra.mrb[0].mxu0 %v317
    %v723 = vpop.f32.mrb[0].mxu0
    %v724 = vadd.f32 0.0, %v723
    %v725 = vpop.f32.mrb[0].mxu0
    %v726 = vadd.f32 0.0, %v725
    %v727 = vpop.f32.mrb[0].mxu0
    %v728 = vadd.f32 0.0, %v727
    %v729 = vpop.f32.mrb[0].mxu0
    %v730 = vadd.f32 0.0, %v729
    %731 = vmatprep.mubr.bf16.mxu0 %v320
    %732 = vmatmul.mubr.bf16.gmra.mrb[0].mxu0 %v319
    %v733 = vpop.f32.mrb[0].mxu0
    %v734 = vadd.f32 0.0, %v733
    %v735 = vpop.f32.mrb[0].mxu0
    %v736 = vadd.f32 0.0, %v735
    %v737 = vpop.f32.mrb[0].mxu0
    %v738 = vadd.f32 0.0, %v737
    %v739 = vpop.f32.mrb[0].mxu0
    %v740 = vadd.f32 0.0, %v739
    %741 = vmatprep.mubr.bf16.mxu0 %v322
    %742 = vmatmul.mubr.bf16.gmra.mrb[0].mxu0 %v321
    %v743 = vpop.f32.mrb[0].mxu0
    %v744 = vadd.f32 0.0, %v743
    %v745 = vpop.f32.mrb[0].mxu0
    %v746 = vadd.f32 0.0, %v745
    %v747 = vpop.f32.mrb[0].mxu0
    %v748 = vadd.f32 0.0, %v747
    %v749 = vpop.f32.mrb[0].mxu0
    %v750 = vadd.f32 0.0, %v749
    %751 = vmatprep.mubr.bf16.mxu0 %v324
    %752 = vmatmul.mubr.bf16.gmra.mrb[0].mxu0 %v323
    %v753 = vpop.f32.mrb[0].mxu0
    %v754 = vadd.f32 0.0, %v753
    %v755 = vpop.f32.mrb[0].mxu0
    %v756 = vadd.f32 0.0, %v755
    %v757 = vpop.f32.mrb[0].mxu0
    %v758 = vadd.f32 0.0, %v757
    %v759 = vpop.f32.mrb[0].mxu0
    %v760 = vadd.f32 0.0, %v759
    %761 = vmatprep.mubr.bf16.mxu0 %v326
    %762 = vmatmul.mubr.bf16.gmra.mrb[0].mxu0 %v325
    %v763 = vpop.f32.mrb[0].mxu0
    %v764 = vadd.f32 0.0, %v763
    %v765 = vpop.f32.mrb[0].mxu0
    %v766 = vadd.f32 0.0, %v765
    %v767 = vpop.f32.mrb[0].mxu0
    %v768 = vadd.f32 0.0, %v767
    %v769 = vpop.f32.mrb[0].mxu0
    %v770 = vadd.f32 0.0, %v769
    %771 = vmatprep.mubr.bf16.mxu0 %v328
    %772 = vmatmul.mubr.bf16.gmra.mrb[0].mxu0 %v327
    %v773 = vpop.f32.mrb[0].mxu0
    %v774 = vadd.f32 0.0, %v773
    %v775 = vpop.f32.mrb[0].mxu0
    %v776 = vadd.f32 0.0, %v775
    %v777 = vpop.f32.mrb[0].mxu0
    %v778 = vadd.f32 0.0, %v777
    %v779 = vpop.f32.mrb[0].mxu0
    %v780 = vadd.f32 0.0, %v779
    %781 = vmatprep.mubr.bf16.mxu0 %v330
    %782 = vmatmul.mubr.bf16.gmra.mrb[0].mxu0 %v329
    %v783 = vpop.f32.mrb[0].mxu0
    %v784 = vadd.f32 0.0, %v783
    %v785 = vpop.f32.mrb[0].mxu0
    %v786 = vadd.f32 0.0, %v785
    %v787 = vpop.f32.mrb[0].mxu0
    %v788 = vadd.f32 0.0, %v787
    %v789 = vpop.f32.mrb[0].mxu0
    %v790 = vadd.f32 0.0, %v789
    %791 = vmatprep.mubr.bf16.mxu0 %v332
    %792 = vmatmul.mubr.bf16.gmra.mrb[0].mxu0 %v331
    %v793 = vpop.f32.mrb[0].mxu0
    %v794 = vadd.f32 0.0, %v793
    %v795 = vpop.f32.mrb[0].mxu0
    %v796 = vadd.f32 0.0, %v795
    %v797 = vpop.f32.mrb[0].mxu0
    %v798 = vadd.f32 0.0, %v797
    %v799 = vpop.f32.mrb[0].mxu0
    %v800 = vadd.f32 0.0, %v799
    %801 = vmatprep.mubr.bf16.mxu0 %v334
    %802 = vmatmul.mubr.bf16.gmra.mrb[0].mxu0 %v333
    %v803 = vpop.f32.mrb[0].mxu0
    %v804 = vadd.f32 0.0, %v803
    %v805 = vpop.f32.mrb[0].mxu0
    %v806 = vadd.f32 0.0, %v805
    %v807 = vpop.f32.mrb[0].mxu0
    %v808 = vadd.f32 0.0, %v807
    %v809 = vpop.f32.mrb[0].mxu0
    %v810 = vadd.f32 0.0, %v809
    %811 = vmatprep.mubr.bf16.mxu0 %v336
    %812 = vmatmul.mubr.bf16.gmra.mrb[0].mxu0 %v335
    %v813 = vpop.f32.mrb[0].mxu0
    %v814 = vadd.f32 0.0, %v813
    %v815 = vpop.f32.mrb[0].mxu0
    %v816 = vadd.f32 0.0, %v815
    %v817 = vpop.f32.mrb[0].mxu0
    %v818 = vadd.f32 0.0, %v817
    %v819 = vpop.f32.mrb[0].mxu0
    %v820 = vadd.f32 0.0, %v819
    %821 = vmatprep.mubr.bf16.mxu0 %v338
    %822 = vmatmul.mubr.bf16.gmra.mrb[0].mxu0 %v337
    %v823 = vpop.f32.mrb[0].mxu0
    %v824 = vadd.f32 0.0, %v823
    %v825 = vpop.f32.mrb[0].mxu0
    %v826 = vadd.f32 0.0, %v825
    %v827 = vpop.f32.mrb[0].mxu0
    %v828 = vadd.f32 0.0, %v827
    %v829 = vpop.f32.mrb[0].mxu0
    %v830 = vadd.f32 0.0, %v829
    %831 = vmatprep.mubr.bf16.mxu0 %v340
    %832 = vmatmul.mubr.bf16.gmra.mrb[0].mxu0 %v339
    %v833 = vpop.f32.mrb[0].mxu0
    %v834 = vadd.f32 0.0, %v833
    %v835 = vpop.f32.mrb[0].mxu0
    %v836 = vadd.f32 0.0, %v835
    %v837 = vpop.f32.mrb[0].mxu0
    %v838 = vadd.f32 0.0, %v837
    %v839 = vpop.f32.mrb[0].mxu0
    %v840 = vadd.f32 0.0, %v839
    %841 = vmatprep.mubr.bf16.mxu0 %v342
    %842 = vmatmul.mubr.bf16.gmra.mrb[0].mxu0 %v341
    %v843 = vpop.f32.mrb[0].mxu0
    %v844 = vadd.f32 0.0, %v843
    %v845 = vpop.f32.mrb[0].mxu0
    %v846 = vadd.f32 0.0, %v845
    %v847 = vpop.f32.mrb[0].mxu0
    %v848 = vadd.f32 0.0, %v847
    %v849 = vpop.f32.mrb[0].mxu0
    %v850 = vadd.f32 0.0, %v849
    %851 = vmatprep.mubr.bf16.mxu0 %v344
    %852 = vmatmul.mubr.bf16.gmra.mrb[0].mxu0 %v343
    %v853 = vpop.f32.mrb[0].mxu0
    %v854 = vadd.f32 0.0, %v853
    %v855 = vpop.f32.mrb[0].mxu0
    %v856 = vadd.f32 0.0, %v855
    %v857 = vpop.f32.mrb[0].mxu0
    %v858 = vadd.f32 0.0, %v857
    %v859 = vpop.f32.mrb[0].mxu0
    %v860 = vadd.f32 0.0, %v859
    %861 = vmatprep.mubr.bf16.mxu0 %v346
    %862 = vmatmul.mubr.bf16.gmra.mrb[0].mxu0 %v345
    %v863 = vpop.f32.mrb[0].mxu0
    %v864 = vadd.f32 0.0, %v863
    %v865 = vpop.f32.mrb[0].mxu0
    %v866 = vadd.f32 0.0, %v865
    %v867 = vpop.f32.mrb[0].mxu0
    %v868 = vadd.f32 0.0, %v867
    %v869 = vpop.f32.mrb[0].mxu0
    %v870 = vadd.f32 0.0, %v869
    %871 = vdwg.mxu0
    %v872 = vpack.c.bf16 %v578, %v574
    %v873 = vpack.c.bf16 %v580, %v576
    %v874 = vpack.c.bf16 %v588, %v584
    %v875 = vpack.c.bf16 %v590, %v586
    %v876 = vpack.c.bf16 %v598, %v594
    %v877 = vpack.c.bf16 %v600, %v596
    %v878 = vpack.c.bf16 %v608, %v604
    %v879 = vpack.c.bf16 %v610, %v606
    %v880 = vpack.c.bf16 %v618, %v614
    %v881 = vpack.c.bf16 %v620, %v616
    %v882 = vpack.c.bf16 %v628, %v624
    %v883 = vpack.c.bf16 %v630, %v626
    %v884 = vpack.c.bf16 %v638, %v634
    %v885 = vpack.c.bf16 %v640, %v636
    %v886 = vpack.c.bf16 %v648, %v644
    %v887 = vpack.c.bf16 %v650, %v646
    %v888 = vpack.c.bf16 %v658, %v654
    %v889 = vpack.c.bf16 %v660, %v656
    %v890 = vpack.c.bf16 %v668, %v664
    %v891 = vpack.c.bf16 %v670, %v666
    %v892 = vpack.c.bf16 %v678, %v674
    %v893 = vpack.c.bf16 %v680, %v676
    %v894 = vpack.c.bf16 %v688, %v684
    %v895 = vpack.c.bf16 %v690, %v686
    %v896 = vpack.c.bf16 %v698, %v694
    %v897 = vpack.c.bf16 %v700, %v696
    %v898 = vpack.c.bf16 %v708, %v704
    %v899 = vpack.c.bf16 %v710, %v706
    %v900 = vpack.c.bf16 %v718, %v714
    %v901 = vpack.c.bf16 %v720, %v716
    %v902 = vpack.c.bf16 %v728, %v724
    %v903 = vpack.c.bf16 %v730, %v726
    %v904 = vpack.c.bf16 %v738, %v734
    %v905 = vpack.c.bf16 %v740, %v736
    %v906 = vpack.c.bf16 %v748, %v744
    %v907 = vpack.c.bf16 %v750, %v746
    %v908 = vpack.c.bf16 %v758, %v754
    %v909 = vpack.c.bf16 %v760, %v756
    %v910 = vpack.c.bf16 %v768, %v764
    %v911 = vpack.c.bf16 %v770, %v766
    %v912 = vpack.c.bf16 %v778, %v774
    %v913 = vpack.c.bf16 %v780, %v776
    %v914 = vpack.c.bf16 %v788, %v784
    %v915 = vpack.c.bf16 %v790, %v786
    %v916 = vpack.c.bf16 %v798, %v794
    %v917 = vpack.c.bf16 %v800, %v796
    %v918 = vpack.c.bf16 %v808, %v804
    %v919 = vpack.c.bf16 %v810, %v806
    %v920 = vpack.c.bf16 %v818, %v814
    %v921 = vpack.c.bf16 %v820, %v816
    %v922 = vpack.c.bf16 %v828, %v824
    %v923 = vpack.c.bf16 %v830, %v826
    %v924 = vpack.c.bf16 %v838, %v834
    %v925 = vpack.c.bf16 %v840, %v836
    %v926 = vpack.c.bf16 %v848, %v844
    %v927 = vpack.c.bf16 %v850, %v846
    %v928 = vpack.c.bf16 %v858, %v854
    %v929 = vpack.c.bf16 %v860, %v856
    %v930 = vpack.c.bf16 %v868, %v864
    %v931 = vpack.c.bf16 %v870, %v866
    %v932 = vld [vmem:[%s3] sm:$0xf]
    %v933 = vld [vmem:[%s3 + $0x4] sm:$0xf]
    %v934 = vld [vmem:[%s3 + $0x8] sm:$0xf]
    %v935 = vld [vmem:[%s3 + $0xc] sm:$0xf]
    %v936 = vld [vmem:[%s3 + $0x10] sm:$0xf]
    %v937 = vld [vmem:[%s3 + $0x14] sm:$0xf]
    %v938 = vld [vmem:[%s3 + $0x18] sm:$0xf]
    %v939 = vld [vmem:[%s3 + $0x1c] sm:$0xf]
    %v940 = vld [vmem:[%s3 + $0x20] sm:$0xf]
    %v941 = vld [vmem:[%s3 + $0x24] sm:$0xf]
    %v942 = vld [vmem:[%s3 + $0x28] sm:$0xf]
    %v943 = vld [vmem:[%s3 + $0x2c] sm:$0xf]
    %v944 = vld [vmem:[%s3 + $0x30] sm:$0xf]
    %v945 = vld [vmem:[%s3 + $0x34] sm:$0xf]
    %v946 = vld [vmem:[%s3 + $0x38] sm:$0xf]
    %v947 = vld [vmem:[%s3 + $0x3c] sm:$0xf]
    %v948 = vld [vmem:[%s3 + $0x40] sm:$0xf]
    %v949 = vld [vmem:[%s3 + $0x44] sm:$0xf]
    %v950 = vld [vmem:[%s3 + $0x48] sm:$0xf]
    %v951 = vld [vmem:[%s3 + $0x4c] sm:$0xf]
    %v952 = vld [vmem:[%s3 + $0x50] sm:$0xf]
    %v953 = vld [vmem:[%s3 + $0x54] sm:$0xf]
    %v954 = vld [vmem:[%s3 + $0x58] sm:$0xf]
    %v955 = vld [vmem:[%s3 + $0x5c] sm:$0xf]
    %v956 = vld [vmem:[%s3 + $0x60] sm:$0xf]
    %v957 = vld [vmem:[%s3 + $0x64] sm:$0xf]
    %v958 = vld [vmem:[%s3 + $0x68] sm:$0xf]
    %v959 = vld [vmem:[%s3 + $0x6c] sm:$0xf]
    %v960 = vld [vmem:[%s3 + $0x70] sm:$0xf]
    %v961 = vld [vmem:[%s3 + $0x74] sm:$0xf]
    %v962 = vld [vmem:[%s3 + $0x78] sm:$0xf]
    %v963 = vld [vmem:[%s3 + $0x7c] sm:$0xf]
    %v964 = vld [vmem:[%s3 + $0x80] sm:$0xf]
    %v965 = vld [vmem:[%s3 + $0x84] sm:$0xf]
    %v966 = vld [vmem:[%s3 + $0x88] sm:$0xf]
    %v967 = vld [vmem:[%s3 + $0x8c] sm:$0xf]
    %v968 = vld [vmem:[%s3 + $0x90] sm:$0xf]
    %v969 = vld [vmem:[%s3 + $0x94] sm:$0xf]
    %v970 = vld [vmem:[%s3 + $0x98] sm:$0xf]
    %v971 = vld [vmem:[%s3 + $0x9c] sm:$0xf]
    %v972 = vld [vmem:[%s3 + $0xa0] sm:$0xf]
    %v973 = vld [vmem:[%s3 + $0xa4] sm:$0xf]
    %v974 = vld [vmem:[%s3 + $0xa8] sm:$0xf]
    %v975 = vld [vmem:[%s3 + $0xac] sm:$0xf]
    %v976 = vld [vmem:[%s3 + $0xb0] sm:$0xf]
    %v977 = vld [vmem:[%s3 + $0xb4] sm:$0xf]
    %v978 = vld [vmem:[%s3 + $0xb8] sm:$0xf]
    %v979 = vld [vmem:[%s3 + $0xbc] sm:$0xf]
    %v980 = vld [vmem:[%s3 + $0xc0] sm:$0xf]
    %v981 = vld [vmem:[%s3 + $0xc4] sm:$0xf]
    %v982 = vld [vmem:[%s3 + $0xc8] sm:$0xf]
    %v983 = vld [vmem:[%s3 + $0xcc] sm:$0xf]
    %v984 = vld [vmem:[%s3 + $0xd0] sm:$0xf]
    %v985 = vld [vmem:[%s3 + $0xd4] sm:$0xf]
    %v986 = vld [vmem:[%s3 + $0xd8] sm:$0xf]
    %v987 = vld [vmem:[%s3 + $0xdc] sm:$0xf]
    %v988 = vld [vmem:[%s3 + $0xe0] sm:$0xf]
    %v989 = vld [vmem:[%s3 + $0xe4] sm:$0xf]
    %v990 = vld [vmem:[%s3 + $0xe8] sm:$0xf]
    %v991 = vld [vmem:[%s3 + $0xec] sm:$0xf]
    %v994 = vunpack.c.l.b16 %v932
    %v995 = vunpack.c.l.b16 %v933
    %v996 = vpack.c.b16 %v995, %v994
    %vm997 = vcmask 130048
    %v999 = vsel %vm997, %v996, 0
    %1001 = vmatprep.subr.bf16.mxu0 %v873
    %1002 = vmatpush1.bf16.msra.mxu0 %v872
    %1003 = vmatprep.subr.bf16.mxu0 0
    %1004 = vmatpush1.bf16.msra.mxu0 0
    %1005 = vmatprep.subr.bf16.mxu0 0
    %1006 = vmatpush1.bf16.msra.mxu0 0
    %1007 = vmatprep.subr.bf16.mxu0 0
    %1008 = vmatpush1.bf16.msra.mxu0 0
    %1009 = vmatprep.subr.bf16.mxu0 0
    %1010 = vmatpush1.bf16.msra.mxu0 0
    %1011 = vmatprep.subr.bf16.mxu0 0
    %1012 = vmatpush1.bf16.msra.mxu0 0
    %1013 = vmatprep.subr.bf16.mxu0 0
    %1014 = vmatpush1.bf16.msra.mxu0 0
    %1015 = vmatprep.subr.bf16.mxu0 0
    %1016 = vmatpush1.bf16.msra.mxu0 0
    %1017 = vmatprep.subr.bf16.mxu0 0
    %1018 = vmatpush1.bf16.msra.mxu0 0
    %1019 = vmatprep.subr.bf16.mxu0 0
    %1020 = vmatpush1.bf16.msra.mxu0 0
    %1021 = vmatprep.subr.bf16.mxu0 0
    %1022 = vmatpush1.bf16.msra.mxu0 0
    %1023 = vmatprep.subr.bf16.mxu0 0
    %1024 = vmatpush1.bf16.msra.mxu0 0
    %1025 = vmatprep.subr.bf16.mxu0 0
    %1026 = vmatpush1.bf16.msra.mxu0 0
    %1027 = vmatprep.subr.bf16.mxu0 0
    %1028 = vmatpush1.bf16.msra.mxu0 0
    %1029 = vmatprep.subr.bf16.mxu0 0
    %1030 = vmatpush1.bf16.msra.mxu0 0
    %1031 = vmatprep.subr.bf16.mxu0 0
    %1032 = vmatpush1.bf16.msra.mxu0 0
    %1033 = vmatprep.mubr.bf16.mxu0 0
    %1034 = vmatmul.mubr.bf16.gmra.mrb[0].mxu0 %v999
    %v1035 = vpop.f32.mrb[0].mxu0
    %v1036 = vadd.f32 0.0, %v1035
    %v1037 = vpop.f32.mrb[0].mxu0
    %v1038 = vadd.f32 0.0, %v1037
    %v1039 = vpop.f32.mrb[0].mxu0
    %v1040 = vadd.f32 0.0, %v1039
    %v1041 = vpop.f32.mrb[0].mxu0
    %v1042 = vadd.f32 0.0, %v1041
    %1043 = vdwg.mxu0
    %v1046 = vunpack.c.l.b16 %v934
    %v1047 = vunpack.c.l.b16 %v935
    %v1048 = vpack.c.b16 %v1047, %v1046
    %v1050 = vsel %vm997, %v1048, 0
    %1052 = vmatprep.subr.bf16.mxu0 %v875
    %1053 = vmatpush1.bf16.msra.mxu0 %v874
    %1054 = vmatprep.subr.bf16.mxu0 0
    %1055 = vmatpush1.bf16.msra.mxu0 0
    %1056 = vmatprep.subr.bf16.mxu0 0
    %1057 = vmatpush1.bf16.msra.mxu0 0
    %1058 = vmatprep.subr.bf16.mxu0 0
    %1059 = vmatpush1.bf16.msra.mxu0 0
    %1060 = vmatprep.subr.bf16.mxu0 0
    %1061 = vmatpush1.bf16.msra.mxu0 0
    %1062 = vmatprep.subr.bf16.mxu0 0
    %1063 = vmatpush1.bf16.msra.mxu0 0
    %1064 = vmatprep.subr.bf16.mxu0 0
    %1065 = vmatpush1.bf16.msra.mxu0 0
    %1066 = vmatprep.subr.bf16.mxu0 0
    %1067 = vmatpush1.bf16.msra.mxu0 0
    %1068 = vmatprep.subr.bf16.mxu0 0
    %1069 = vmatpush1.bf16.msra.mxu0 0
    %1070 = vmatprep.subr.bf16.mxu0 0
    %1071 = vmatpush1.bf16.msra.mxu0 0
    %1072 = vmatprep.subr.bf16.mxu0 0
    %1073 = vmatpush1.bf16.msra.mxu0 0
    %1074 = vmatprep.subr.bf16.mxu0 0
    %1075 = vmatpush1.bf16.msra.mxu0 0
    %1076 = vmatprep.subr.bf16.mxu0 0
    %1077 = vmatpush1.bf16.msra.mxu0 0
    %1078 = vmatprep.subr.bf16.mxu0 0
    %1079 = vmatpush1.bf16.msra.mxu0 0
    %1080 = vmatprep.subr.bf16.mxu0 0
    %1081 = vmatpush1.bf16.msra.mxu0 0
    %1082 = vmatprep.subr.bf16.mxu0 0
    %1083 = vmatpush1.bf16.msra.mxu0 0
    %1084 = vmatprep.mubr.bf16.mxu0 0
    %1085 = vmatmul.mubr.bf16.gmra.mrb[0].mxu0 %v1050
    %v1086 = vpop.f32.mrb[0].mxu0
    %v1087 = vadd.f32 0.0, %v1086
    %v1088 = vpop.f32.mrb[0].mxu0
    %v1089 = vadd.f32 0.0, %v1088
    %v1090 = vpop.f32.mrb[0].mxu0
    %v1091 = vadd.f32 0.0, %v1090
    %v1092 = vpop.f32.mrb[0].mxu0
    %v1093 = vadd.f32 0.0, %v1092
    %1094 = vdwg.mxu0
    %v1097 = vunpack.c.l.b16 %v936
    %v1098 = vunpack.c.l.b16 %v937
    %v1099 = vpack.c.b16 %v1098, %v1097
    %v1101 = vsel %vm997, %v1099, 0
    %1103 = vmatprep.subr.bf16.mxu0 %v877
    %1104 = vmatpush1.bf16.msra.mxu0 %v876
    %1105 = vmatprep.subr.bf16.mxu0 0
    %1106 = vmatpush1.bf16.msra.mxu0 0
    %1107 = vmatprep.subr.bf16.mxu0 0
    %1108 = vmatpush1.bf16.msra.mxu0 0
    %1109 = vmatprep.subr.bf16.mxu0 0
    %1110 = vmatpush1.bf16.msra.mxu0 0
    %1111 = vmatprep.subr.bf16.mxu0 0
    %1112 = vmatpush1.bf16.msra.mxu0 0
    %1113 = vmatprep.subr.bf16.mxu0 0
    %1114 = vmatpush1.bf16.msra.mxu0 0
    %1115 = vmatprep.subr.bf16.mxu0 0
    %1116 = vmatpush1.bf16.msra.mxu0 0
    %1117 = vmatprep.subr.bf16.mxu0 0
    %1118 = vmatpush1.bf16.msra.mxu0 0
    %1119 = vmatprep.subr.bf16.mxu0 0
    %1120 = vmatpush1.bf16.msra.mxu0 0
    %1121 = vmatprep.subr.bf16.mxu0 0
    %1122 = vmatpush1.bf16.msra.mxu0 0
    %1123 = vmatprep.subr.bf16.mxu0 0
    %1124 = vmatpush1.bf16.msra.mxu0 0
    %1125 = vmatprep.subr.bf16.mxu0 0
    %1126 = vmatpush1.bf16.msra.mxu0 0
    %1127 = vmatprep.subr.bf16.mxu0 0
    %1128 = vmatpush1.bf16.msra.mxu0 0
    %1129 = vmatprep.subr.bf16.mxu0 0
    %1130 = vmatpush1.bf16.msra.mxu0 0
    %1131 = vmatprep.subr.bf16.mxu0 0
    %1132 = vmatpush1.bf16.msra.mxu0 0
    %1133 = vmatprep.subr.bf16.mxu0 0
    %1134 = vmatpush1.bf16.msra.mxu0 0
    %1135 = vmatprep.mubr.bf16.mxu0 0
    %1136 = vmatmul.mubr.bf16.gmra.mrb[0].mxu0 %v1101
    %v1137 = vpop.f32.mrb[0].mxu0
    %v1138 = vadd.f32 0.0, %v1137
    %v1139 = vpop.f32.mrb[0].mxu0
    %v1140 = vadd.f32 0.0, %v1139
    %v1141 = vpop.f32.mrb[0].mxu0
    %v1142 = vadd.f32 0.0, %v1141
    %v1143 = vpop.f32.mrb[0].mxu0
    %v1144 = vadd.f32 0.0, %v1143
    %1145 = vdwg.mxu0
    %v1148 = vunpack.c.l.b16 %v938
    %v1149 = vunpack.c.l.b16 %v939
    %v1150 = vpack.c.b16 %v1149, %v1148
    %v1152 = vsel %vm997, %v1150, 0
    %1154 = vmatprep.subr.bf16.mxu0 %v879
    %1155 = vmatpush1.bf16.msra.mxu0 %v878
    %1156 = vmatprep.subr.bf16.mxu0 0
    %1157 = vmatpush1.bf16.msra.mxu0 0
    %1158 = vmatprep.subr.bf16.mxu0 0
    %1159 = vmatpush1.bf16.msra.mxu0 0
    %1160 = vmatprep.subr.bf16.mxu0 0
    %1161 = vmatpush1.bf16.msra.mxu0 0
    %1162 = vmatprep.subr.bf16.mxu0 0
    %1163 = vmatpush1.bf16.msra.mxu0 0
    %1164 = vmatprep.subr.bf16.mxu0 0
    %1165 = vmatpush1.bf16.msra.mxu0 0
    %1166 = vmatprep.subr.bf16.mxu0 0
    %1167 = vmatpush1.bf16.msra.mxu0 0
    %1168 = vmatprep.subr.bf16.mxu0 0
    %1169 = vmatpush1.bf16.msra.mxu0 0
    %1170 = vmatprep.subr.bf16.mxu0 0
    %1171 = vmatpush1.bf16.msra.mxu0 0
    %1172 = vmatprep.subr.bf16.mxu0 0
    %1173 = vmatpush1.bf16.msra.mxu0 0
    %1174 = vmatprep.subr.bf16.mxu0 0
    %1175 = vmatpush1.bf16.msra.mxu0 0
    %1176 = vmatprep.subr.bf16.mxu0 0
    %1177 = vmatpush1.bf16.msra.mxu0 0
    %1178 = vmatprep.subr.bf16.mxu0 0
    %1179 = vmatpush1.bf16.msra.mxu0 0
    %1180 = vmatprep.subr.bf16.mxu0 0
    %1181 = vmatpush1.bf16.msra.mxu0 0
    %1182 = vmatprep.subr.bf16.mxu0 0
    %1183 = vmatpush1.bf16.msra.mxu0 0
    %1184 = vmatprep.subr.bf16.mxu0 0
    %1185 = vmatpush1.bf16.msra.mxu0 0
    %1186 = vmatprep.mubr.bf16.mxu0 0
    %1187 = vmatmul.mubr.bf16.gmra.mrb[0].mxu0 %v1152
    %v1188 = vpop.f32.mrb[0].mxu0
    %v1189 = vadd.f32 0.0, %v1188
    %v1190 = vpop.f32.mrb[0].mxu0
    %v1191 = vadd.f32 0.0, %v1190
    %v1192 = vpop.f32.mrb[0].mxu0
    %v1193 = vadd.f32 0.0, %v1192
    %v1194 = vpop.f32.mrb[0].mxu0
    %v1195 = vadd.f32 0.0, %v1194
    %1196 = vdwg.mxu0
    %v1199 = vunpack.c.l.b16 %v940
    %v1200 = vunpack.c.l.b16 %v941
    %v1201 = vpack.c.b16 %v1200, %v1199
    %v1203 = vsel %vm997, %v1201, 0
    %1205 = vmatprep.subr.bf16.mxu0 %v881
    %1206 = vmatpush1.bf16.msra.mxu0 %v880
    %1207 = vmatprep.subr.bf16.mxu0 0
    %1208 = vmatpush1.bf16.msra.mxu0 0
    %1209 = vmatprep.subr.bf16.mxu0 0
    %1210 = vmatpush1.bf16.msra.mxu0 0
    %1211 = vmatprep.subr.bf16.mxu0 0
    %1212 = vmatpush1.bf16.msra.mxu0 0
    %1213 = vmatprep.subr.bf16.mxu0 0
    %1214 = vmatpush1.bf16.msra.mxu0 0
    %1215 = vmatprep.subr.bf16.mxu0 0
    %1216 = vmatpush1.bf16.msra.mxu0 0
    %1217 = vmatprep.subr.bf16.mxu0 0
    %1218 = vmatpush1.bf16.msra.mxu0 0
    %1219 = vmatprep.subr.bf16.mxu0 0
    %1220 = vmatpush1.bf16.msra.mxu0 0
    %1221 = vmatprep.subr.bf16.mxu0 0
    %1222 = vmatpush1.bf16.msra.mxu0 0
    %1223 = vmatprep.subr.bf16.mxu0 0
    %1224 = vmatpush1.bf16.msra.mxu0 0
    %1225 = vmatprep.subr.bf16.mxu0 0
    %1226 = vmatpush1.bf16.msra.mxu0 0
    %1227 = vmatprep.subr.bf16.mxu0 0
    %1228 = vmatpush1.bf16.msra.mxu0 0
    %1229 = vmatprep.subr.bf16.mxu0 0
    %1230 = vmatpush1.bf16.msra.mxu0 0
    %1231 = vmatprep.subr.bf16.mxu0 0
    %1232 = vmatpush1.bf16.msra.mxu0 0
    %1233 = vmatprep.subr.bf16.mxu0 0
    %1234 = vmatpush1.bf16.msra.mxu0 0
    %1235 = vmatprep.subr.bf16.mxu0 0
    %1236 = vmatpush1.bf16.msra.mxu0 0
    %1237 = vmatprep.mubr.bf16.mxu0 0
    %1238 = vmatmul.mubr.bf16.gmra.mrb[0].mxu0 %v1203
    %v1239 = vpop.f32.mrb[0].mxu0
    %v1240 = vadd.f32 0.0, %v1239
    %v1241 = vpop.f32.mrb[0].mxu0
    %v1242 = vadd.f32 0.0, %v1241
    %v1243 = vpop.f32.mrb[0].mxu0
    %v1244 = vadd.f32 0.0, %v1243
    %v1245 = vpop.f32.mrb[0].mxu0
    %v1246 = vadd.f32 0.0, %v1245
    %1247 = vdwg.mxu0
    %v1250 = vunpack.c.l.b16 %v942
    %v1251 = vunpack.c.l.b16 %v943
    %v1252 = vpack.c.b16 %v1251, %v1250
    %v1254 = vsel %vm997, %v1252, 0
    %1256 = vmatprep.subr.bf16.mxu0 %v883
    %1257 = vmatpush1.bf16.msra.mxu0 %v882
    %1258 = vmatprep.subr.bf16.mxu0 0
    %1259 = vmatpush1.bf16.msra.mxu0 0
    %1260 = vmatprep.subr.bf16.mxu0 0
    %1261 = vmatpush1.bf16.msra.mxu0 0
    %1262 = vmatprep.subr.bf16.mxu0 0
    %1263 = vmatpush1.bf16.msra.mxu0 0
    %1264 = vmatprep.subr.bf16.mxu0 0
    %1265 = vmatpush1.bf16.msra.mxu0 0
    %1266 = vmatprep.subr.bf16.mxu0 0
    %1267 = vmatpush1.bf16.msra.mxu0 0
    %1268 = vmatprep.subr.bf16.mxu0 0
    %1269 = vmatpush1.bf16.msra.mxu0 0
    %1270 = vmatprep.subr.bf16.mxu0 0
    %1271 = vmatpush1.bf16.msra.mxu0 0
    %1272 = vmatprep.subr.bf16.mxu0 0
    %1273 = vmatpush1.bf16.msra.mxu0 0
    %1274 = vmatprep.subr.bf16.mxu0 0
    %1275 = vmatpush1.bf16.msra.mxu0 0
    %1276 = vmatprep.subr.bf16.mxu0 0
    %1277 = vmatpush1.bf16.msra.mxu0 0
    %1278 = vmatprep.subr.bf16.mxu0 0
    %1279 = vmatpush1.bf16.msra.mxu0 0
    %1280 = vmatprep.subr.bf16.mxu0 0
    %1281 = vmatpush1.bf16.msra.mxu0 0
    %1282 = vmatprep.subr.bf16.mxu0 0
    %1283 = vmatpush1.bf16.msra.mxu0 0
    %1284 = vmatprep.subr.bf16.mxu0 0
    %1285 = vmatpush1.bf16.msra.mxu0 0
    %1286 = vmatprep.subr.bf16.mxu0 0
    %1287 = vmatpush1.bf16.msra.mxu0 0
    %1288 = vmatprep.mubr.bf16.mxu0 0
    %1289 = vmatmul.mubr.bf16.gmra.mrb[0].mxu0 %v1254
    %v1290 = vpop.f32.mrb[0].mxu0
    %v1291 = vadd.f32 0.0, %v1290
    %v1292 = vpop.f32.mrb[0].mxu0
    %v1293 = vadd.f32 0.0, %v1292
    %v1294 = vpop.f32.mrb[0].mxu0
    %v1295 = vadd.f32 0.0, %v1294
    %v1296 = vpop.f32.mrb[0].mxu0
    %v1297 = vadd.f32 0.0, %v1296
    %1298 = vdwg.mxu0
    %v1301 = vunpack.c.l.b16 %v944
    %v1302 = vunpack.c.l.b16 %v945
    %v1303 = vpack.c.b16 %v1302, %v1301
    %v1305 = vsel %vm997, %v1303, 0
    %1307 = vmatprep.subr.bf16.mxu0 %v885
    %1308 = vmatpush1.bf16.msra.mxu0 %v884
    %1309 = vmatprep.subr.bf16.mxu0 0
    %1310 = vmatpush1.bf16.msra.mxu0 0
    %1311 = vmatprep.subr.bf16.mxu0 0
    %1312 = vmatpush1.bf16.msra.mxu0 0
    %1313 = vmatprep.subr.bf16.mxu0 0
    %1314 = vmatpush1.bf16.msra.mxu0 0
    %1315 = vmatprep.subr.bf16.mxu0 0
    %1316 = vmatpush1.bf16.msra.mxu0 0
    %1317 = vmatprep.subr.bf16.mxu0 0
    %1318 = vmatpush1.bf16.msra.mxu0 0
    %1319 = vmatprep.subr.bf16.mxu0 0
    %1320 = vmatpush1.bf16.msra.mxu0 0
    %1321 = vmatprep.subr.bf16.mxu0 0
    %1322 = vmatpush1.bf16.msra.mxu0 0
    %1323 = vmatprep.subr.bf16.mxu0 0
    %1324 = vmatpush1.bf16.msra.mxu0 0
    %1325 = vmatprep.subr.bf16.mxu0 0
    %1326 = vmatpush1.bf16.msra.mxu0 0
    %1327 = vmatprep.subr.bf16.mxu0 0
    %1328 = vmatpush1.bf16.msra.mxu0 0
    %1329 = vmatprep.subr.bf16.mxu0 0
    %1330 = vmatpush1.bf16.msra.mxu0 0
    %1331 = vmatprep.subr.bf16.mxu0 0
    %1332 = vmatpush1.bf16.msra.mxu0 0
    %1333 = vmatprep.subr.bf16.mxu0 0
    %1334 = vmatpush1.bf16.msra.mxu0 0
    %1335 = vmatprep.subr.bf16.mxu0 0
    %1336 = vmatpush1.bf16.msra.mxu0 0
    %1337 = vmatprep.subr.bf16.mxu0 0
    %1338 = vmatpush1.bf16.msra.mxu0 0
    %1339 = vmatprep.mubr.bf16.mxu0 0
    %1340 = vmatmul.mubr.bf16.gmra.mrb[0].mxu0 %v1305
    %v1341 = vpop.f32.mrb[0].mxu0
    %v1342 = vadd.f32 0.0, %v1341
    %v1343 = vpop.f32.mrb[0].mxu0
    %v1344 = vadd.f32 0.0, %v1343
    %v1345 = vpop.f32.mrb[0].mxu0
    %v1346 = vadd.f32 0.0, %v1345
    %v1347 = vpop.f32.mrb[0].mxu0
    %v1348 = vadd.f32 0.0, %v1347
    %1349 = vdwg.mxu0
    %v1352 = vunpack.c.l.b16 %v946
    %v1353 = vunpack.c.l.b16 %v947
    %v1354 = vpack.c.b16 %v1353, %v1352
    %v1356 = vsel %vm997, %v1354, 0
    %1358 = vmatprep.subr.bf16.mxu0 %v887
    %1359 = vmatpush1.bf16.msra.mxu0 %v886
    %1360 = vmatprep.subr.bf16.mxu0 0
    %1361 = vmatpush1.bf16.msra.mxu0 0
    %1362 = vmatprep.subr.bf16.mxu0 0
    %1363 = vmatpush1.bf16.msra.mxu0 0
    %1364 = vmatprep.subr.bf16.mxu0 0
    %1365 = vmatpush1.bf16.msra.mxu0 0
    %1366 = vmatprep.subr.bf16.mxu0 0
    %1367 = vmatpush1.bf16.msra.mxu0 0
    %1368 = vmatprep.subr.bf16.mxu0 0
    %1369 = vmatpush1.bf16.msra.mxu0 0
    %1370 = vmatprep.subr.bf16.mxu0 0
    %1371 = vmatpush1.bf16.msra.mxu0 0
    %1372 = vmatprep.subr.bf16.mxu0 0
    %1373 = vmatpush1.bf16.msra.mxu0 0
    %1374 = vmatprep.subr.bf16.mxu0 0
    %1375 = vmatpush1.bf16.msra.mxu0 0
    %1376 = vmatprep.subr.bf16.mxu0 0
    %1377 = vmatpush1.bf16.msra.mxu0 0
    %1378 = vmatprep.subr.bf16.mxu0 0
    %1379 = vmatpush1.bf16.msra.mxu0 0
    %1380 = vmatprep.subr.bf16.mxu0 0
    %1381 = vmatpush1.bf16.msra.mxu0 0
    %1382 = vmatprep.subr.bf16.mxu0 0
    %1383 = vmatpush1.bf16.msra.mxu0 0
    %1384 = vmatprep.subr.bf16.mxu0 0
    %1385 = vmatpush1.bf16.msra.mxu0 0
    %1386 = vmatprep.subr.bf16.mxu0 0
    %1387 = vmatpush1.bf16.msra.mxu0 0
    %1388 = vmatprep.subr.bf16.mxu0 0
    %1389 = vmatpush1.bf16.msra.mxu0 0
    %1390 = vmatprep.mubr.bf16.mxu0 0
    %1391 = vmatmul.mubr.bf16.gmra.mrb[0].mxu0 %v1356
    %v1392 = vpop.f32.mrb[0].mxu0
    %v1393 = vadd.f32 0.0, %v1392
    %v1394 = vpop.f32.mrb[0].mxu0
    %v1395 = vadd.f32 0.0, %v1394
    %v1396 = vpop.f32.mrb[0].mxu0
    %v1397 = vadd.f32 0.0, %v1396
    %v1398 = vpop.f32.mrb[0].mxu0
    %v1399 = vadd.f32 0.0, %v1398
    %1400 = vdwg.mxu0
    %v1403 = vunpack.c.l.b16 %v948
    %v1404 = vunpack.c.l.b16 %v949
    %v1405 = vpack.c.b16 %v1404, %v1403
    %v1407 = vsel %vm997, %v1405, 0
    %1409 = vmatprep.subr.bf16.mxu0 %v889
    %1410 = vmatpush1.bf16.msra.mxu0 %v888
    %1411 = vmatprep.subr.bf16.mxu0 0
    %1412 = vmatpush1.bf16.msra.mxu0 0
    %1413 = vmatprep.subr.bf16.mxu0 0
    %1414 = vmatpush1.bf16.msra.mxu0 0
    %1415 = vmatprep.subr.bf16.mxu0 0
    %1416 = vmatpush1.bf16.msra.mxu0 0
    %1417 = vmatprep.subr.bf16.mxu0 0
    %1418 = vmatpush1.bf16.msra.mxu0 0
    %1419 = vmatprep.subr.bf16.mxu0 0
    %1420 = vmatpush1.bf16.msra.mxu0 0
    %1421 = vmatprep.subr.bf16.mxu0 0
    %1422 = vmatpush1.bf16.msra.mxu0 0
    %1423 = vmatprep.subr.bf16.mxu0 0
    %1424 = vmatpush1.bf16.msra.mxu0 0
    %1425 = vmatprep.subr.bf16.mxu0 0
    %1426 = vmatpush1.bf16.msra.mxu0 0
    %1427 = vmatprep.subr.bf16.mxu0 0
    %1428 = vmatpush1.bf16.msra.mxu0 0
    %1429 = vmatprep.subr.bf16.mxu0 0
    %1430 = vmatpush1.bf16.msra.mxu0 0
    %1431 = vmatprep.subr.bf16.mxu0 0
    %1432 = vmatpush1.bf16.msra.mxu0 0
    %1433 = vmatprep.subr.bf16.mxu0 0
    %1434 = vmatpush1.bf16.msra.mxu0 0
    %1435 = vmatprep.subr.bf16.mxu0 0
    %1436 = vmatpush1.bf16.msra.mxu0 0
    %1437 = vmatprep.subr.bf16.mxu0 0
    %1438 = vmatpush1.bf16.msra.mxu0 0
    %1439 = vmatprep.subr.bf16.mxu0 0
    %1440 = vmatpush1.bf16.msra.mxu0 0
    %1441 = vmatprep.mubr.bf16.mxu0 0
    %1442 = vmatmul.mubr.bf16.gmra.mrb[0].mxu0 %v1407
    %v1443 = vpop.f32.mrb[0].mxu0
    %v1444 = vadd.f32 0.0, %v1443
    %v1445 = vpop.f32.mrb[0].mxu0
    %v1446 = vadd.f32 0.0, %v1445
    %v1447 = vpop.f32.mrb[0].mxu0
    %v1448 = vadd.f32 0.0, %v1447
    %v1449 = vpop.f32.mrb[0].mxu0
    %v1450 = vadd.f32 0.0, %v1449
    %1451 = vdwg.mxu0
    %v1454 = vunpack.c.l.b16 %v950
    %v1455 = vunpack.c.l.b16 %v951
    %v1456 = vpack.c.b16 %v1455, %v1454
    %v1458 = vsel %vm997, %v1456, 0
    %1460 = vmatprep.subr.bf16.mxu0 %v891
    %1461 = vmatpush1.bf16.msra.mxu0 %v890
    %1462 = vmatprep.subr.bf16.mxu0 0
    %1463 = vmatpush1.bf16.msra.mxu0 0
    %1464 = vmatprep.subr.bf16.mxu0 0
    %1465 = vmatpush1.bf16.msra.mxu0 0
    %1466 = vmatprep.subr.bf16.mxu0 0
    %1467 = vmatpush1.bf16.msra.mxu0 0
    %1468 = vmatprep.subr.bf16.mxu0 0
    %1469 = vmatpush1.bf16.msra.mxu0 0
    %1470 = vmatprep.subr.bf16.mxu0 0
    %1471 = vmatpush1.bf16.msra.mxu0 0
    %1472 = vmatprep.subr.bf16.mxu0 0
    %1473 = vmatpush1.bf16.msra.mxu0 0
    %1474 = vmatprep.subr.bf16.mxu0 0
    %1475 = vmatpush1.bf16.msra.mxu0 0
    %1476 = vmatprep.subr.bf16.mxu0 0
    %1477 = vmatpush1.bf16.msra.mxu0 0
    %1478 = vmatprep.subr.bf16.mxu0 0
    %1479 = vmatpush1.bf16.msra.mxu0 0
    %1480 = vmatprep.subr.bf16.mxu0 0
    %1481 = vmatpush1.bf16.msra.mxu0 0
    %1482 = vmatprep.subr.bf16.mxu0 0
    %1483 = vmatpush1.bf16.msra.mxu0 0
    %1484 = vmatprep.subr.bf16.mxu0 0
    %1485 = vmatpush1.bf16.msra.mxu0 0
    %1486 = vmatprep.subr.bf16.mxu0 0
    %1487 = vmatpush1.bf16.msra.mxu0 0
    %1488 = vmatprep.subr.bf16.mxu0 0
    %1489 = vmatpush1.bf16.msra.mxu0 0
    %1490 = vmatprep.subr.bf16.mxu0 0
    %1491 = vmatpush1.bf16.msra.mxu0 0
    %1492 = vmatprep.mubr.bf16.mxu0 0
    %1493 = vmatmul.mubr.bf16.gmra.mrb[0].mxu0 %v1458
    %v1494 = vpop.f32.mrb[0].mxu0
    %v1495 = vadd.f32 0.0, %v1494
    %v1496 = vpop.f32.mrb[0].mxu0
    %v1497 = vadd.f32 0.0, %v1496
    %v1498 = vpop.f32.mrb[0].mxu0
    %v1499 = vadd.f32 0.0, %v1498
    %v1500 = vpop.f32.mrb[0].mxu0
    %v1501 = vadd.f32 0.0, %v1500
    %1502 = vdwg.mxu0
    %v1505 = vunpack.c.l.b16 %v952
    %v1506 = vunpack.c.l.b16 %v953
    %v1507 = vpack.c.b16 %v1506, %v1505
    %v1509 = vsel %vm997, %v1507, 0
    %1511 = vmatprep.subr.bf16.mxu0 %v893
    %1512 = vmatpush1.bf16.msra.mxu0 %v892
    %1513 = vmatprep.subr.bf16.mxu0 0
    %1514 = vmatpush1.bf16.msra.mxu0 0
    %1515 = vmatprep.subr.bf16.mxu0 0
    %1516 = vmatpush1.bf16.msra.mxu0 0
    %1517 = vmatprep.subr.bf16.mxu0 0
    %1518 = vmatpush1.bf16.msra.mxu0 0
    %1519 = vmatprep.subr.bf16.mxu0 0
    %1520 = vmatpush1.bf16.msra.mxu0 0
    %1521 = vmatprep.subr.bf16.mxu0 0
    %1522 = vmatpush1.bf16.msra.mxu0 0
    %1523 = vmatprep.subr.bf16.mxu0 0
    %1524 = vmatpush1.bf16.msra.mxu0 0
    %1525 = vmatprep.subr.bf16.mxu0 0
    %1526 = vmatpush1.bf16.msra.mxu0 0
    %1527 = vmatprep.subr.bf16.mxu0 0
    %1528 = vmatpush1.bf16.msra.mxu0 0
    %1529 = vmatprep.subr.bf16.mxu0 0
    %1530 = vmatpush1.bf16.msra.mxu0 0
    %1531 = vmatprep.subr.bf16.mxu0 0
    %1532 = vmatpush1.bf16.msra.mxu0 0
    %1533 = vmatprep.subr.bf16.mxu0 0
    %1534 = vmatpush1.bf16.msra.mxu0 0
    %1535 = vmatprep.subr.bf16.mxu0 0
    %1536 = vmatpush1.bf16.msra.mxu0 0
    %1537 = vmatprep.subr.bf16.mxu0 0
    %1538 = vmatpush1.bf16.msra.mxu0 0
    %1539 = vmatprep.subr.bf16.mxu0 0
    %1540 = vmatpush1.bf16.msra.mxu0 0
    %1541 = vmatprep.subr.bf16.mxu0 0
    %1542 = vmatpush1.bf16.msra.mxu0 0
    %1543 = vmatprep.mubr.bf16.mxu0 0
    %1544 = vmatmul.mubr.bf16.gmra.mrb[0].mxu0 %v1509
    %v1545 = vpop.f32.mrb[0].mxu0
    %v1546 = vadd.f32 0.0, %v1545
    %v1547 = vpop.f32.mrb[0].mxu0
    %v1548 = vadd.f32 0.0, %v1547
    %v1549 = vpop.f32.mrb[0].mxu0
    %v1550 = vadd.f32 0.0, %v1549
    %v1551 = vpop.f32.mrb[0].mxu0
    %v1552 = vadd.f32 0.0, %v1551
    %1553 = vdwg.mxu0
    %v1556 = vunpack.c.l.b16 %v954
    %v1557 = vunpack.c.l.b16 %v955
    %v1558 = vpack.c.b16 %v1557, %v1556
    %v1560 = vsel %vm997, %v1558, 0
    %1562 = vmatprep.subr.bf16.mxu0 %v895
    %1563 = vmatpush1.bf16.msra.mxu0 %v894
    %1564 = vmatprep.subr.bf16.mxu0 0
    %1565 = vmatpush1.bf16.msra.mxu0 0
    %1566 = vmatprep.subr.bf16.mxu0 0
    %1567 = vmatpush1.bf16.msra.mxu0 0
    %1568 = vmatprep.subr.bf16.mxu0 0
    %1569 = vmatpush1.bf16.msra.mxu0 0
    %1570 = vmatprep.subr.bf16.mxu0 0
    %1571 = vmatpush1.bf16.msra.mxu0 0
    %1572 = vmatprep.subr.bf16.mxu0 0
    %1573 = vmatpush1.bf16.msra.mxu0 0
    %1574 = vmatprep.subr.bf16.mxu0 0
    %1575 = vmatpush1.bf16.msra.mxu0 0
    %1576 = vmatprep.subr.bf16.mxu0 0
    %1577 = vmatpush1.bf16.msra.mxu0 0
    %1578 = vmatprep.subr.bf16.mxu0 0
    %1579 = vmatpush1.bf16.msra.mxu0 0
    %1580 = vmatprep.subr.bf16.mxu0 0
    %1581 = vmatpush1.bf16.msra.mxu0 0
    %1582 = vmatprep.subr.bf16.mxu0 0
    %1583 = vmatpush1.bf16.msra.mxu0 0
    %1584 = vmatprep.subr.bf16.mxu0 0
    %1585 = vmatpush1.bf16.msra.mxu0 0
    %1586 = vmatprep.subr.bf16.mxu0 0
    %1587 = vmatpush1.bf16.msra.mxu0 0
    %1588 = vmatprep.subr.bf16.mxu0 0
    %1589 = vmatpush1.bf16.msra.mxu0 0
    %1590 = vmatprep.subr.bf16.mxu0 0
    %1591 = vmatpush1.bf16.msra.mxu0 0
    %1592 = vmatprep.subr.bf16.mxu0 0
    %1593 = vmatpush1.bf16.msra.mxu0 0
    %1594 = vmatprep.mubr.bf16.mxu0 0
    %1595 = vmatmul.mubr.bf16.gmra.mrb[0].mxu0 %v1560
    %v1596 = vpop.f32.mrb[0].mxu0
    %v1597 = vadd.f32 0.0, %v1596
    %v1598 = vpop.f32.mrb[0].mxu0
    %v1599 = vadd.f32 0.0, %v1598
    %v1600 = vpop.f32.mrb[0].mxu0
    %v1601 = vadd.f32 0.0, %v1600
    %v1602 = vpop.f32.mrb[0].mxu0
    %v1603 = vadd.f32 0.0, %v1602
    %1604 = vdwg.mxu0
    %v1607 = vunpack.c.l.b16 %v956
    %v1608 = vunpack.c.l.b16 %v957
    %v1609 = vpack.c.b16 %v1608, %v1607
    %v1611 = vsel %vm997, %v1609, 0
    %1613 = vmatprep.subr.bf16.mxu0 %v897
    %1614 = vmatpush1.bf16.msra.mxu0 %v896
    %1615 = vmatprep.subr.bf16.mxu0 0
    %1616 = vmatpush1.bf16.msra.mxu0 0
    %1617 = vmatprep.subr.bf16.mxu0 0
    %1618 = vmatpush1.bf16.msra.mxu0 0
    %1619 = vmatprep.subr.bf16.mxu0 0
    %1620 = vmatpush1.bf16.msra.mxu0 0
    %1621 = vmatprep.subr.bf16.mxu0 0
    %1622 = vmatpush1.bf16.msra.mxu0 0
    %1623 = vmatprep.subr.bf16.mxu0 0
    %1624 = vmatpush1.bf16.msra.mxu0 0
    %1625 = vmatprep.subr.bf16.mxu0 0
    %1626 = vmatpush1.bf16.msra.mxu0 0
    %1627 = vmatprep.subr.bf16.mxu0 0
    %1628 = vmatpush1.bf16.msra.mxu0 0
    %1629 = vmatprep.subr.bf16.mxu0 0
    %1630 = vmatpush1.bf16.msra.mxu0 0
    %1631 = vmatprep.subr.bf16.mxu0 0
    %1632 = vmatpush1.bf16.msra.mxu0 0
    %1633 = vmatprep.subr.bf16.mxu0 0
    %1634 = vmatpush1.bf16.msra.mxu0 0
    %1635 = vmatprep.subr.bf16.mxu0 0
    %1636 = vmatpush1.bf16.msra.mxu0 0
    %1637 = vmatprep.subr.bf16.mxu0 0
    %1638 = vmatpush1.bf16.msra.mxu0 0
    %1639 = vmatprep.subr.bf16.mxu0 0
    %1640 = vmatpush1.bf16.msra.mxu0 0
    %1641 = vmatprep.subr.bf16.mxu0 0
    %1642 = vmatpush1.bf16.msra.mxu0 0
    %1643 = vmatprep.subr.bf16.mxu0 0
    %1644 = vmatpush1.bf16.msra.mxu0 0
    %1645 = vmatprep.mubr.bf16.mxu0 0
    %1646 = vmatmul.mubr.bf16.gmra.mrb[0].mxu0 %v1611
    %v1647 = vpop.f32.mrb[0].mxu0
    %v1648 = vadd.f32 0.0, %v1647
    %v1649 = vpop.f32.mrb[0].mxu0
    %v1650 = vadd.f32 0.0, %v1649
    %v1651 = vpop.f32.mrb[0].mxu0
    %v1652 = vadd.f32 0.0, %v1651
    %v1653 = vpop.f32.mrb[0].mxu0
    %v1654 = vadd.f32 0.0, %v1653
    %1655 = vdwg.mxu0
    %v1658 = vunpack.c.l.b16 %v958
    %v1659 = vunpack.c.l.b16 %v959
    %v1660 = vpack.c.b16 %v1659, %v1658
    %v1662 = vsel %vm997, %v1660, 0
    %1664 = vmatprep.subr.bf16.mxu0 %v899
    %1665 = vmatpush1.bf16.msra.mxu0 %v898
    %1666 = vmatprep.subr.bf16.mxu0 0
    %1667 = vmatpush1.bf16.msra.mxu0 0
    %1668 = vmatprep.subr.bf16.mxu0 0
    %1669 = vmatpush1.bf16.msra.mxu0 0
    %1670 = vmatprep.subr.bf16.mxu0 0
    %1671 = vmatpush1.bf16.msra.mxu0 0
    %1672 = vmatprep.subr.bf16.mxu0 0
    %1673 = vmatpush1.bf16.msra.mxu0 0
    %1674 = vmatprep.subr.bf16.mxu0 0
    %1675 = vmatpush1.bf16.msra.mxu0 0
    %1676 = vmatprep.subr.bf16.mxu0 0
    %1677 = vmatpush1.bf16.msra.mxu0 0
    %1678 = vmatprep.subr.bf16.mxu0 0
    %1679 = vmatpush1.bf16.msra.mxu0 0
    %1680 = vmatprep.subr.bf16.mxu0 0
    %1681 = vmatpush1.bf16.msra.mxu0 0
    %1682 = vmatprep.subr.bf16.mxu0 0
    %1683 = vmatpush1.bf16.msra.mxu0 0
    %1684 = vmatprep.subr.bf16.mxu0 0
    %1685 = vmatpush1.bf16.msra.mxu0 0
    %1686 = vmatprep.subr.bf16.mxu0 0
    %1687 = vmatpush1.bf16.msra.mxu0 0
    %1688 = vmatprep.subr.bf16.mxu0 0
    %1689 = vmatpush1.bf16.msra.mxu0 0
    %1690 = vmatprep.subr.bf16.mxu0 0
    %1691 = vmatpush1.bf16.msra.mxu0 0
    %1692 = vmatprep.subr.bf16.mxu0 0
    %1693 = vmatpush1.bf16.msra.mxu0 0
    %1694 = vmatprep.subr.bf16.mxu0 0
    %1695 = vmatpush1.bf16.msra.mxu0 0
    %1696 = vmatprep.mubr.bf16.mxu0 0
    %1697 = vmatmul.mubr.bf16.gmra.mrb[0].mxu0 %v1662
    %v1698 = vpop.f32.mrb[0].mxu0
    %v1699 = vadd.f32 0.0, %v1698
    %v1700 = vpop.f32.mrb[0].mxu0
    %v1701 = vadd.f32 0.0, %v1700
    %v1702 = vpop.f32.mrb[0].mxu0
    %v1703 = vadd.f32 0.0, %v1702
    %v1704 = vpop.f32.mrb[0].mxu0
    %v1705 = vadd.f32 0.0, %v1704
    %1706 = vdwg.mxu0
    %v1709 = vunpack.c.l.b16 %v960
    %v1710 = vunpack.c.l.b16 %v961
    %v1711 = vpack.c.b16 %v1710, %v1709
    %v1713 = vsel %vm997, %v1711, 0
    %1715 = vmatprep.subr.bf16.mxu0 %v901
    %1716 = vmatpush1.bf16.msra.mxu0 %v900
    %1717 = vmatprep.subr.bf16.mxu0 0
    %1718 = vmatpush1.bf16.msra.mxu0 0
    %1719 = vmatprep.subr.bf16.mxu0 0
    %1720 = vmatpush1.bf16.msra.mxu0 0
    %1721 = vmatprep.subr.bf16.mxu0 0
    %1722 = vmatpush1.bf16.msra.mxu0 0
    %1723 = vmatprep.subr.bf16.mxu0 0
    %1724 = vmatpush1.bf16.msra.mxu0 0
    %1725 = vmatprep.subr.bf16.mxu0 0
    %1726 = vmatpush1.bf16.msra.mxu0 0
    %1727 = vmatprep.subr.bf16.mxu0 0
    %1728 = vmatpush1.bf16.msra.mxu0 0
    %1729 = vmatprep.subr.bf16.mxu0 0
    %1730 = vmatpush1.bf16.msra.mxu0 0
    %1731 = vmatprep.subr.bf16.mxu0 0
    %1732 = vmatpush1.bf16.msra.mxu0 0
    %1733 = vmatprep.subr.bf16.mxu0 0
    %1734 = vmatpush1.bf16.msra.mxu0 0
    %1735 = vmatprep.subr.bf16.mxu0 0
    %1736 = vmatpush1.bf16.msra.mxu0 0
    %1737 = vmatprep.subr.bf16.mxu0 0
    %1738 = vmatpush1.bf16.msra.mxu0 0
    %1739 = vmatprep.subr.bf16.mxu0 0
    %1740 = vmatpush1.bf16.msra.mxu0 0
    %1741 = vmatprep.subr.bf16.mxu0 0
    %1742 = vmatpush1.bf16.msra.mxu0 0
    %1743 = vmatprep.subr.bf16.mxu0 0
    %1744 = vmatpush1.bf16.msra.mxu0 0
    %1745 = vmatprep.subr.bf16.mxu0 0
    %1746 = vmatpush1.bf16.msra.mxu0 0
    %1747 = vmatprep.mubr.bf16.mxu0 0
    %1748 = vmatmul.mubr.bf16.gmra.mrb[0].mxu0 %v1713
    %v1749 = vpop.f32.mrb[0].mxu0
    %v1750 = vadd.f32 0.0, %v1749
    %v1751 = vpop.f32.mrb[0].mxu0
    %v1752 = vadd.f32 0.0, %v1751
    %v1753 = vpop.f32.mrb[0].mxu0
    %v1754 = vadd.f32 0.0, %v1753
    %v1755 = vpop.f32.mrb[0].mxu0
    %v1756 = vadd.f32 0.0, %v1755
    %1757 = vdwg.mxu0
    %v1760 = vunpack.c.l.b16 %v962
    %v1761 = vunpack.c.l.b16 %v963
    %v1762 = vpack.c.b16 %v1761, %v1760
    %v1764 = vsel %vm997, %v1762, 0
    %1766 = vmatprep.subr.bf16.mxu0 %v903
    %1767 = vmatpush1.bf16.msra.mxu0 %v902
    %1768 = vmatprep.subr.bf16.mxu0 0
    %1769 = vmatpush1.bf16.msra.mxu0 0
    %1770 = vmatprep.subr.bf16.mxu0 0
    %1771 = vmatpush1.bf16.msra.mxu0 0
    %1772 = vmatprep.subr.bf16.mxu0 0
    %1773 = vmatpush1.bf16.msra.mxu0 0
    %1774 = vmatprep.subr.bf16.mxu0 0
    %1775 = vmatpush1.bf16.msra.mxu0 0
    %1776 = vmatprep.subr.bf16.mxu0 0
    %1777 = vmatpush1.bf16.msra.mxu0 0
    %1778 = vmatprep.subr.bf16.mxu0 0
    %1779 = vmatpush1.bf16.msra.mxu0 0
    %1780 = vmatprep.subr.bf16.mxu0 0
    %1781 = vmatpush1.bf16.msra.mxu0 0
    %1782 = vmatprep.subr.bf16.mxu0 0
    %1783 = vmatpush1.bf16.msra.mxu0 0
    %1784 = vmatprep.subr.bf16.mxu0 0
    %1785 = vmatpush1.bf16.msra.mxu0 0
    %1786 = vmatprep.subr.bf16.mxu0 0
    %1787 = vmatpush1.bf16.msra.mxu0 0
    %1788 = vmatprep.subr.bf16.mxu0 0
    %1789 = vmatpush1.bf16.msra.mxu0 0
    %1790 = vmatprep.subr.bf16.mxu0 0
    %1791 = vmatpush1.bf16.msra.mxu0 0
    %1792 = vmatprep.subr.bf16.mxu0 0
    %1793 = vmatpush1.bf16.msra.mxu0 0
    %1794 = vmatprep.subr.bf16.mxu0 0
    %1795 = vmatpush1.bf16.msra.mxu0 0
    %1796 = vmatprep.subr.bf16.mxu0 0
    %1797 = vmatpush1.bf16.msra.mxu0 0
    %1798 = vmatprep.mubr.bf16.mxu0 0
    %1799 = vmatmul.mubr.bf16.gmra.mrb[0].mxu0 %v1764
    %v1800 = vpop.f32.mrb[0].mxu0
    %v1801 = vadd.f32 0.0, %v1800
    %v1802 = vpop.f32.mrb[0].mxu0
    %v1803 = vadd.f32 0.0, %v1802
    %v1804 = vpop.f32.mrb[0].mxu0
    %v1805 = vadd.f32 0.0, %v1804
    %v1806 = vpop.f32.mrb[0].mxu0
    %v1807 = vadd.f32 0.0, %v1806
    %1808 = vdwg.mxu0
    %v1811 = vunpack.c.l.b16 %v964
    %v1812 = vunpack.c.l.b16 %v965
    %v1813 = vpack.c.b16 %v1812, %v1811
    %v1815 = vsel %vm997, %v1813, 0
    %1817 = vmatprep.subr.bf16.mxu0 %v905
    %1818 = vmatpush1.bf16.msra.mxu0 %v904
    %1819 = vmatprep.subr.bf16.mxu0 0
    %1820 = vmatpush1.bf16.msra.mxu0 0
    %1821 = vmatprep.subr.bf16.mxu0 0
    %1822 = vmatpush1.bf16.msra.mxu0 0
    %1823 = vmatprep.subr.bf16.mxu0 0
    %1824 = vmatpush1.bf16.msra.mxu0 0
    %1825 = vmatprep.subr.bf16.mxu0 0
    %1826 = vmatpush1.bf16.msra.mxu0 0
    %1827 = vmatprep.subr.bf16.mxu0 0
    %1828 = vmatpush1.bf16.msra.mxu0 0
    %1829 = vmatprep.subr.bf16.mxu0 0
    %1830 = vmatpush1.bf16.msra.mxu0 0
    %1831 = vmatprep.subr.bf16.mxu0 0
    %1832 = vmatpush1.bf16.msra.mxu0 0
    %1833 = vmatprep.subr.bf16.mxu0 0
    %1834 = vmatpush1.bf16.msra.mxu0 0
    %1835 = vmatprep.subr.bf16.mxu0 0
    %1836 = vmatpush1.bf16.msra.mxu0 0
    %1837 = vmatprep.subr.bf16.mxu0 0
    %1838 = vmatpush1.bf16.msra.mxu0 0
    %1839 = vmatprep.subr.bf16.mxu0 0
    %1840 = vmatpush1.bf16.msra.mxu0 0
    %1841 = vmatprep.subr.bf16.mxu0 0
    %1842 = vmatpush1.bf16.msra.mxu0 0
    %1843 = vmatprep.subr.bf16.mxu0 0
    %1844 = vmatpush1.bf16.msra.mxu0 0
    %1845 = vmatprep.subr.bf16.mxu0 0
    %1846 = vmatpush1.bf16.msra.mxu0 0
    %1847 = vmatprep.subr.bf16.mxu0 0
    %1848 = vmatpush1.bf16.msra.mxu0 0
    %1849 = vmatprep.mubr.bf16.mxu0 0
    %1850 = vmatmul.mubr.bf16.gmra.mrb[0].mxu0 %v1815
    %v1851 = vpop.f32.mrb[0].mxu0
    %v1852 = vadd.f32 0.0, %v1851
    %v1853 = vpop.f32.mrb[0].mxu0
    %v1854 = vadd.f32 0.0, %v1853
    %v1855 = vpop.f32.mrb[0].mxu0
    %v1856 = vadd.f32 0.0, %v1855
    %v1857 = vpop.f32.mrb[0].mxu0
    %v1858 = vadd.f32 0.0, %v1857
    %1859 = vdwg.mxu0
    %v1862 = vunpack.c.l.b16 %v966
    %v1863 = vunpack.c.l.b16 %v967
    %v1864 = vpack.c.b16 %v1863, %v1862
    %v1866 = vsel %vm997, %v1864, 0
    %1868 = vmatprep.subr.bf16.mxu0 %v907
    %1869 = vmatpush1.bf16.msra.mxu0 %v906
    %1870 = vmatprep.subr.bf16.mxu0 0
    %1871 = vmatpush1.bf16.msra.mxu0 0
    %1872 = vmatprep.subr.bf16.mxu0 0
    %1873 = vmatpush1.bf16.msra.mxu0 0
    %1874 = vmatprep.subr.bf16.mxu0 0
    %1875 = vmatpush1.bf16.msra.mxu0 0
    %1876 = vmatprep.subr.bf16.mxu0 0
    %1877 = vmatpush1.bf16.msra.mxu0 0
    %1878 = vmatprep.subr.bf16.mxu0 0
    %1879 = vmatpush1.bf16.msra.mxu0 0
    %1880 = vmatprep.subr.bf16.mxu0 0
    %1881 = vmatpush1.bf16.msra.mxu0 0
    %1882 = vmatprep.subr.bf16.mxu0 0
    %1883 = vmatpush1.bf16.msra.mxu0 0
    %1884 = vmatprep.subr.bf16.mxu0 0
    %1885 = vmatpush1.bf16.msra.mxu0 0
    %1886 = vmatprep.subr.bf16.mxu0 0
    %1887 = vmatpush1.bf16.msra.mxu0 0
    %1888 = vmatprep.subr.bf16.mxu0 0
    %1889 = vmatpush1.bf16.msra.mxu0 0
    %1890 = vmatprep.subr.bf16.mxu0 0
    %1891 = vmatpush1.bf16.msra.mxu0 0
    %1892 = vmatprep.subr.bf16.mxu0 0
    %1893 = vmatpush1.bf16.msra.mxu0 0
    %1894 = vmatprep.subr.bf16.mxu0 0
    %1895 = vmatpush1.bf16.msra.mxu0 0
    %1896 = vmatprep.subr.bf16.mxu0 0
    %1897 = vmatpush1.bf16.msra.mxu0 0
    %1898 = vmatprep.subr.bf16.mxu0 0
    %1899 = vmatpush1.bf16.msra.mxu0 0
    %1900 = vmatprep.mubr.bf16.mxu0 0
    %1901 = vmatmul.mubr.bf16.gmra.mrb[0].mxu0 %v1866
    %v1902 = vpop.f32.mrb[0].mxu0
    %v1903 = vadd.f32 0.0, %v1902
    %v1904 = vpop.f32.mrb[0].mxu0
    %v1905 = vadd.f32 0.0, %v1904
    %v1906 = vpop.f32.mrb[0].mxu0
    %v1907 = vadd.f32 0.0, %v1906
    %v1908 = vpop.f32.mrb[0].mxu0
    %v1909 = vadd.f32 0.0, %v1908
    %1910 = vdwg.mxu0
    %v1913 = vunpack.c.l.b16 %v968
    %v1914 = vunpack.c.l.b16 %v969
    %v1915 = vpack.c.b16 %v1914, %v1913
    %v1917 = vsel %vm997, %v1915, 0
    %1919 = vmatprep.subr.bf16.mxu0 %v909
    %1920 = vmatpush1.bf16.msra.mxu0 %v908
    %1921 = vmatprep.subr.bf16.mxu0 0
    %1922 = vmatpush1.bf16.msra.mxu0 0
    %1923 = vmatprep.subr.bf16.mxu0 0
    %1924 = vmatpush1.bf16.msra.mxu0 0
    %1925 = vmatprep.subr.bf16.mxu0 0
    %1926 = vmatpush1.bf16.msra.mxu0 0
    %1927 = vmatprep.subr.bf16.mxu0 0
    %1928 = vmatpush1.bf16.msra.mxu0 0
    %1929 = vmatprep.subr.bf16.mxu0 0
    %1930 = vmatpush1.bf16.msra.mxu0 0
    %1931 = vmatprep.subr.bf16.mxu0 0
    %1932 = vmatpush1.bf16.msra.mxu0 0
    %1933 = vmatprep.subr.bf16.mxu0 0
    %1934 = vmatpush1.bf16.msra.mxu0 0
    %1935 = vmatprep.subr.bf16.mxu0 0
    %1936 = vmatpush1.bf16.msra.mxu0 0
    %1937 = vmatprep.subr.bf16.mxu0 0
    %1938 = vmatpush1.bf16.msra.mxu0 0
    %1939 = vmatprep.subr.bf16.mxu0 0
    %1940 = vmatpush1.bf16.msra.mxu0 0
    %1941 = vmatprep.subr.bf16.mxu0 0
    %1942 = vmatpush1.bf16.msra.mxu0 0
    %1943 = vmatprep.subr.bf16.mxu0 0
    %1944 = vmatpush1.bf16.msra.mxu0 0
    %1945 = vmatprep.subr.bf16.mxu0 0
    %1946 = vmatpush1.bf16.msra.mxu0 0
    %1947 = vmatprep.subr.bf16.mxu0 0
    %1948 = vmatpush1.bf16.msra.mxu0 0
    %1949 = vmatprep.subr.bf16.mxu0 0
    %1950 = vmatpush1.bf16.msra.mxu0 0
    %1951 = vmatprep.mubr.bf16.mxu0 0
    %1952 = vmatmul.mubr.bf16.gmra.mrb[0].mxu0 %v1917
    %v1953 = vpop.f32.mrb[0].mxu0
    %v1954 = vadd.f32 0.0, %v1953
    %v1955 = vpop.f32.mrb[0].mxu0
    %v1956 = vadd.f32 0.0, %v1955
    %v1957 = vpop.f32.mrb[0].mxu0
    %v1958 = vadd.f32 0.0, %v1957
    %v1959 = vpop.f32.mrb[0].mxu0
    %v1960 = vadd.f32 0.0, %v1959
    %1961 = vdwg.mxu0
    %v1964 = vunpack.c.l.b16 %v970
    %v1965 = vunpack.c.l.b16 %v971
    %v1966 = vpack.c.b16 %v1965, %v1964
    %v1968 = vsel %vm997, %v1966, 0
    %1970 = vmatprep.subr.bf16.mxu0 %v911
    %1971 = vmatpush1.bf16.msra.mxu0 %v910
    %1972 = vmatprep.subr.bf16.mxu0 0
    %1973 = vmatpush1.bf16.msra.mxu0 0
    %1974 = vmatprep.subr.bf16.mxu0 0
    %1975 = vmatpush1.bf16.msra.mxu0 0
    %1976 = vmatprep.subr.bf16.mxu0 0
    %1977 = vmatpush1.bf16.msra.mxu0 0
    %1978 = vmatprep.subr.bf16.mxu0 0
    %1979 = vmatpush1.bf16.msra.mxu0 0
    %1980 = vmatprep.subr.bf16.mxu0 0
    %1981 = vmatpush1.bf16.msra.mxu0 0
    %1982 = vmatprep.subr.bf16.mxu0 0
    %1983 = vmatpush1.bf16.msra.mxu0 0
    %1984 = vmatprep.subr.bf16.mxu0 0
    %1985 = vmatpush1.bf16.msra.mxu0 0
    %1986 = vmatprep.subr.bf16.mxu0 0
    %1987 = vmatpush1.bf16.msra.mxu0 0
    %1988 = vmatprep.subr.bf16.mxu0 0
    %1989 = vmatpush1.bf16.msra.mxu0 0
    %1990 = vmatprep.subr.bf16.mxu0 0
    %1991 = vmatpush1.bf16.msra.mxu0 0
    %1992 = vmatprep.subr.bf16.mxu0 0
    %1993 = vmatpush1.bf16.msra.mxu0 0
    %1994 = vmatprep.subr.bf16.mxu0 0
    %1995 = vmatpush1.bf16.msra.mxu0 0
    %1996 = vmatprep.subr.bf16.mxu0 0
    %1997 = vmatpush1.bf16.msra.mxu0 0
    %1998 = vmatprep.subr.bf16.mxu0 0
    %1999 = vmatpush1.bf16.msra.mxu0 0
    %2000 = vmatprep.subr.bf16.mxu0 0
    %2001 = vmatpush1.bf16.msra.mxu0 0
    %2002 = vmatprep.mubr.bf16.mxu0 0
    %2003 = vmatmul.mubr.bf16.gmra.mrb[0].mxu0 %v1968
    %v2004 = vpop.f32.mrb[0].mxu0
    %v2005 = vadd.f32 0.0, %v2004
    %v2006 = vpop.f32.mrb[0].mxu0
    %v2007 = vadd.f32 0.0, %v2006
    %v2008 = vpop.f32.mrb[0].mxu0
    %v2009 = vadd.f32 0.0, %v2008
    %v2010 = vpop.f32.mrb[0].mxu0
    %v2011 = vadd.f32 0.0, %v2010
    %2012 = vdwg.mxu0
    %v2015 = vunpack.c.l.b16 %v972
    %v2016 = vunpack.c.l.b16 %v973
    %v2017 = vpack.c.b16 %v2016, %v2015
    %v2019 = vsel %vm997, %v2017, 0
    %2021 = vmatprep.subr.bf16.mxu0 %v913
    %2022 = vmatpush1.bf16.msra.mxu0 %v912
    %2023 = vmatprep.subr.bf16.mxu0 0
    %2024 = vmatpush1.bf16.msra.mxu0 0
    %2025 = vmatprep.subr.bf16.mxu0 0
    %2026 = vmatpush1.bf16.msra.mxu0 0
    %2027 = vmatprep.subr.bf16.mxu0 0
    %2028 = vmatpush1.bf16.msra.mxu0 0
    %2029 = vmatprep.subr.bf16.mxu0 0
    %2030 = vmatpush1.bf16.msra.mxu0 0
    %2031 = vmatprep.subr.bf16.mxu0 0
    %2032 = vmatpush1.bf16.msra.mxu0 0
    %2033 = vmatprep.subr.bf16.mxu0 0
    %2034 = vmatpush1.bf16.msra.mxu0 0
    %2035 = vmatprep.subr.bf16.mxu0 0
    %2036 = vmatpush1.bf16.msra.mxu0 0
    %2037 = vmatprep.subr.bf16.mxu0 0
    %2038 = vmatpush1.bf16.msra.mxu0 0
    %2039 = vmatprep.subr.bf16.mxu0 0
    %2040 = vmatpush1.bf16.msra.mxu0 0
    %2041 = vmatprep.subr.bf16.mxu0 0
    %2042 = vmatpush1.bf16.msra.mxu0 0
    %2043 = vmatprep.subr.bf16.mxu0 0
    %2044 = vmatpush1.bf16.msra.mxu0 0
    %2045 = vmatprep.subr.bf16.mxu0 0
    %2046 = vmatpush1.bf16.msra.mxu0 0
    %2047 = vmatprep.subr.bf16.mxu0 0
    %2048 = vmatpush1.bf16.msra.mxu0 0
    %2049 = vmatprep.subr.bf16.mxu0 0
    %2050 = vmatpush1.bf16.msra.mxu0 0
    %2051 = vmatprep.subr.bf16.mxu0 0
    %2052 = vmatpush1.bf16.msra.mxu0 0
    %2053 = vmatprep.mubr.bf16.mxu0 0
    %2054 = vmatmul.mubr.bf16.gmra.mrb[0].mxu0 %v2019
    %v2055 = vpop.f32.mrb[0].mxu0
    %v2056 = vadd.f32 0.0, %v2055
    %v2057 = vpop.f32.mrb[0].mxu0
    %v2058 = vadd.f32 0.0, %v2057
    %v2059 = vpop.f32.mrb[0].mxu0
    %v2060 = vadd.f32 0.0, %v2059
    %v2061 = vpop.f32.mrb[0].mxu0
    %v2062 = vadd.f32 0.0, %v2061
    %2063 = vdwg.mxu0
    %v2066 = vunpack.c.l.b16 %v974
    %v2067 = vunpack.c.l.b16 %v975
    %v2068 = vpack.c.b16 %v2067, %v2066
    %v2070 = vsel %vm997, %v2068, 0
    %2072 = vmatprep.subr.bf16.mxu0 %v915
    %2073 = vmatpush1.bf16.msra.mxu0 %v914
    %2074 = vmatprep.subr.bf16.mxu0 0
    %2075 = vmatpush1.bf16.msra.mxu0 0
    %2076 = vmatprep.subr.bf16.mxu0 0
    %2077 = vmatpush1.bf16.msra.mxu0 0
    %2078 = vmatprep.subr.bf16.mxu0 0
    %2079 = vmatpush1.bf16.msra.mxu0 0
    %2080 = vmatprep.subr.bf16.mxu0 0
    %2081 = vmatpush1.bf16.msra.mxu0 0
    %2082 = vmatprep.subr.bf16.mxu0 0
    %2083 = vmatpush1.bf16.msra.mxu0 0
    %2084 = vmatprep.subr.bf16.mxu0 0
    %2085 = vmatpush1.bf16.msra.mxu0 0
    %2086 = vmatprep.subr.bf16.mxu0 0
    %2087 = vmatpush1.bf16.msra.mxu0 0
    %2088 = vmatprep.subr.bf16.mxu0 0
    %2089 = vmatpush1.bf16.msra.mxu0 0
    %2090 = vmatprep.subr.bf16.mxu0 0
    %2091 = vmatpush1.bf16.msra.mxu0 0
    %2092 = vmatprep.subr.bf16.mxu0 0
    %2093 = vmatpush1.bf16.msra.mxu0 0
    %2094 = vmatprep.subr.bf16.mxu0 0
    %2095 = vmatpush1.bf16.msra.mxu0 0
    %2096 = vmatprep.subr.bf16.mxu0 0
    %2097 = vmatpush1.bf16.msra.mxu0 0
    %2098 = vmatprep.subr.bf16.mxu0 0
    %2099 = vmatpush1.bf16.msra.mxu0 0
    %2100 = vmatprep.subr.bf16.mxu0 0
    %2101 = vmatpush1.bf16.msra.mxu0 0
    %2102 = vmatprep.subr.bf16.mxu0 0
    %2103 = vmatpush1.bf16.msra.mxu0 0
    %2104 = vmatprep.mubr.bf16.mxu0 0
    %2105 = vmatmul.mubr.bf16.gmra.mrb[0].mxu0 %v2070
    %v2106 = vpop.f32.mrb[0].mxu0
    %v2107 = vadd.f32 0.0, %v2106
    %v2108 = vpop.f32.mrb[0].mxu0
    %v2109 = vadd.f32 0.0, %v2108
    %v2110 = vpop.f32.mrb[0].mxu0
    %v2111 = vadd.f32 0.0, %v2110
    %v2112 = vpop.f32.mrb[0].mxu0
    %v2113 = vadd.f32 0.0, %v2112
    %2114 = vdwg.mxu0
    %v2117 = vunpack.c.l.b16 %v976
    %v2118 = vunpack.c.l.b16 %v977
    %v2119 = vpack.c.b16 %v2118, %v2117
    %v2121 = vsel %vm997, %v2119, 0
    %2123 = vmatprep.subr.bf16.mxu0 %v917
    %2124 = vmatpush1.bf16.msra.mxu0 %v916
    %2125 = vmatprep.subr.bf16.mxu0 0
    %2126 = vmatpush1.bf16.msra.mxu0 0
    %2127 = vmatprep.subr.bf16.mxu0 0
    %2128 = vmatpush1.bf16.msra.mxu0 0
    %2129 = vmatprep.subr.bf16.mxu0 0
    %2130 = vmatpush1.bf16.msra.mxu0 0
    %2131 = vmatprep.subr.bf16.mxu0 0
    %2132 = vmatpush1.bf16.msra.mxu0 0
    %2133 = vmatprep.subr.bf16.mxu0 0
    %2134 = vmatpush1.bf16.msra.mxu0 0
    %2135 = vmatprep.subr.bf16.mxu0 0
    %2136 = vmatpush1.bf16.msra.mxu0 0
    %2137 = vmatprep.subr.bf16.mxu0 0
    %2138 = vmatpush1.bf16.msra.mxu0 0
    %2139 = vmatprep.subr.bf16.mxu0 0
    %2140 = vmatpush1.bf16.msra.mxu0 0
    %2141 = vmatprep.subr.bf16.mxu0 0
    %2142 = vmatpush1.bf16.msra.mxu0 0
    %2143 = vmatprep.subr.bf16.mxu0 0
    %2144 = vmatpush1.bf16.msra.mxu0 0
    %2145 = vmatprep.subr.bf16.mxu0 0
    %2146 = vmatpush1.bf16.msra.mxu0 0
    %2147 = vmatprep.subr.bf16.mxu0 0
    %2148 = vmatpush1.bf16.msra.mxu0 0
    %2149 = vmatprep.subr.bf16.mxu0 0
    %2150 = vmatpush1.bf16.msra.mxu0 0
    %2151 = vmatprep.subr.bf16.mxu0 0
    %2152 = vmatpush1.bf16.msra.mxu0 0
    %2153 = vmatprep.subr.bf16.mxu0 0
    %2154 = vmatpush1.bf16.msra.mxu0 0
    %2155 = vmatprep.mubr.bf16.mxu0 0
    %2156 = vmatmul.mubr.bf16.gmra.mrb[0].mxu0 %v2121
    %v2157 = vpop.f32.mrb[0].mxu0
    %v2158 = vadd.f32 0.0, %v2157
    %v2159 = vpop.f32.mrb[0].mxu0
    %v2160 = vadd.f32 0.0, %v2159
    %v2161 = vpop.f32.mrb[0].mxu0
    %v2162 = vadd.f32 0.0, %v2161
    %v2163 = vpop.f32.mrb[0].mxu0
    %v2164 = vadd.f32 0.0, %v2163
    %2165 = vdwg.mxu0
    %v2168 = vunpack.c.l.b16 %v978
    %v2169 = vunpack.c.l.b16 %v979
    %v2170 = vpack.c.b16 %v2169, %v2168
    %v2172 = vsel %vm997, %v2170, 0
    %2174 = vmatprep.subr.bf16.mxu0 %v919
    %2175 = vmatpush1.bf16.msra.mxu0 %v918
    %2176 = vmatprep.subr.bf16.mxu0 0
    %2177 = vmatpush1.bf16.msra.mxu0 0
    %2178 = vmatprep.subr.bf16.mxu0 0
    %2179 = vmatpush1.bf16.msra.mxu0 0
    %2180 = vmatprep.subr.bf16.mxu0 0
    %2181 = vmatpush1.bf16.msra.mxu0 0
    %2182 = vmatprep.subr.bf16.mxu0 0
    %2183 = vmatpush1.bf16.msra.mxu0 0
    %2184 = vmatprep.subr.bf16.mxu0 0
    %2185 = vmatpush1.bf16.msra.mxu0 0
    %2186 = vmatprep.subr.bf16.mxu0 0
    %2187 = vmatpush1.bf16.msra.mxu0 0
    %2188 = vmatprep.subr.bf16.mxu0 0
    %2189 = vmatpush1.bf16.msra.mxu0 0
    %2190 = vmatprep.subr.bf16.mxu0 0
    %2191 = vmatpush1.bf16.msra.mxu0 0
    %2192 = vmatprep.subr.bf16.mxu0 0
    %2193 = vmatpush1.bf16.msra.mxu0 0
    %2194 = vmatprep.subr.bf16.mxu0 0
    %2195 = vmatpush1.bf16.msra.mxu0 0
    %2196 = vmatprep.subr.bf16.mxu0 0
    %2197 = vmatpush1.bf16.msra.mxu0 0
    %2198 = vmatprep.subr.bf16.mxu0 0
    %2199 = vmatpush1.bf16.msra.mxu0 0
    %2200 = vmatprep.subr.bf16.mxu0 0
    %2201 = vmatpush1.bf16.msra.mxu0 0
    %2202 = vmatprep.subr.bf16.mxu0 0
    %2203 = vmatpush1.bf16.msra.mxu0 0
    %2204 = vmatprep.subr.bf16.mxu0 0
    %2205 = vmatpush1.bf16.msra.mxu0 0
    %2206 = vmatprep.mubr.bf16.mxu0 0
    %2207 = vmatmul.mubr.bf16.gmra.mrb[0].mxu0 %v2172
    %v2208 = vpop.f32.mrb[0].mxu0
    %v2209 = vadd.f32 0.0, %v2208
    %v2210 = vpop.f32.mrb[0].mxu0
    %v2211 = vadd.f32 0.0, %v2210
    %v2212 = vpop.f32.mrb[0].mxu0
    %v2213 = vadd.f32 0.0, %v2212
    %v2214 = vpop.f32.mrb[0].mxu0
    %v2215 = vadd.f32 0.0, %v2214
    %2216 = vdwg.mxu0
    %v2219 = vunpack.c.l.b16 %v980
    %v2220 = vunpack.c.l.b16 %v981
    %v2221 = vpack.c.b16 %v2220, %v2219
    %v2223 = vsel %vm997, %v2221, 0
    %2225 = vmatprep.subr.bf16.mxu0 %v921
    %2226 = vmatpush1.bf16.msra.mxu0 %v920
    %2227 = vmatprep.subr.bf16.mxu0 0
    %2228 = vmatpush1.bf16.msra.mxu0 0
    %2229 = vmatprep.subr.bf16.mxu0 0
    %2230 = vmatpush1.bf16.msra.mxu0 0
    %2231 = vmatprep.subr.bf16.mxu0 0
    %2232 = vmatpush1.bf16.msra.mxu0 0
    %2233 = vmatprep.subr.bf16.mxu0 0
    %2234 = vmatpush1.bf16.msra.mxu0 0
    %2235 = vmatprep.subr.bf16.mxu0 0
    %2236 = vmatpush1.bf16.msra.mxu0 0
    %2237 = vmatprep.subr.bf16.mxu0 0
    %2238 = vmatpush1.bf16.msra.mxu0 0
    %2239 = vmatprep.subr.bf16.mxu0 0
    %2240 = vmatpush1.bf16.msra.mxu0 0
    %2241 = vmatprep.subr.bf16.mxu0 0
    %2242 = vmatpush1.bf16.msra.mxu0 0
    %2243 = vmatprep.subr.bf16.mxu0 0
    %2244 = vmatpush1.bf16.msra.mxu0 0
    %2245 = vmatprep.subr.bf16.mxu0 0
    %2246 = vmatpush1.bf16.msra.mxu0 0
    %2247 = vmatprep.subr.bf16.mxu0 0
    %2248 = vmatpush1.bf16.msra.mxu0 0
    %2249 = vmatprep.subr.bf16.mxu0 0
    %2250 = vmatpush1.bf16.msra.mxu0 0
    %2251 = vmatprep.subr.bf16.mxu0 0
    %2252 = vmatpush1.bf16.msra.mxu0 0
    %2253 = vmatprep.subr.bf16.mxu0 0
    %2254 = vmatpush1.bf16.msra.mxu0 0
    %2255 = vmatprep.subr.bf16.mxu0 0
    %2256 = vmatpush1.bf16.msra.mxu0 0
    %2257 = vmatprep.mubr.bf16.mxu0 0
    %2258 = vmatmul.mubr.bf16.gmra.mrb[0].mxu0 %v2223
    %v2259 = vpop.f32.mrb[0].mxu0
    %v2260 = vadd.f32 0.0, %v2259
    %v2261 = vpop.f32.mrb[0].mxu0
    %v2262 = vadd.f32 0.0, %v2261
    %v2263 = vpop.f32.mrb[0].mxu0
    %v2264 = vadd.f32 0.0, %v2263
    %v2265 = vpop.f32.mrb[0].mxu0
    %v2266 = vadd.f32 0.0, %v2265
    %2267 = vdwg.mxu0
    %v2270 = vunpack.c.l.b16 %v982
    %v2271 = vunpack.c.l.b16 %v983
    %v2272 = vpack.c.b16 %v2271, %v2270
    %v2274 = vsel %vm997, %v2272, 0
    %2276 = vmatprep.subr.bf16.mxu0 %v923
    %2277 = vmatpush1.bf16.msra.mxu0 %v922
    %2278 = vmatprep.subr.bf16.mxu0 0
    %2279 = vmatpush1.bf16.msra.mxu0 0
    %2280 = vmatprep.subr.bf16.mxu0 0
    %2281 = vmatpush1.bf16.msra.mxu0 0
    %2282 = vmatprep.subr.bf16.mxu0 0
    %2283 = vmatpush1.bf16.msra.mxu0 0
    %2284 = vmatprep.subr.bf16.mxu0 0
    %2285 = vmatpush1.bf16.msra.mxu0 0
    %2286 = vmatprep.subr.bf16.mxu0 0
    %2287 = vmatpush1.bf16.msra.mxu0 0
    %2288 = vmatprep.subr.bf16.mxu0 0
    %2289 = vmatpush1.bf16.msra.mxu0 0
    %2290 = vmatprep.subr.bf16.mxu0 0
    %2291 = vmatpush1.bf16.msra.mxu0 0
    %2292 = vmatprep.subr.bf16.mxu0 0
    %2293 = vmatpush1.bf16.msra.mxu0 0
    %2294 = vmatprep.subr.bf16.mxu0 0
    %2295 = vmatpush1.bf16.msra.mxu0 0
    %2296 = vmatprep.subr.bf16.mxu0 0
    %2297 = vmatpush1.bf16.msra.mxu0 0
    %2298 = vmatprep.subr.bf16.mxu0 0
    %2299 = vmatpush1.bf16.msra.mxu0 0
    %2300 = vmatprep.subr.bf16.mxu0 0
    %2301 = vmatpush1.bf16.msra.mxu0 0
    %2302 = vmatprep.subr.bf16.mxu0 0
    %2303 = vmatpush1.bf16.msra.mxu0 0
    %2304 = vmatprep.subr.bf16.mxu0 0
    %2305 = vmatpush1.bf16.msra.mxu0 0
    %2306 = vmatprep.subr.bf16.mxu0 0
    %2307 = vmatpush1.bf16.msra.mxu0 0
    %2308 = vmatprep.mubr.bf16.mxu0 0
    %2309 = vmatmul.mubr.bf16.gmra.mrb[0].mxu0 %v2274
    %v2310 = vpop.f32.mrb[0].mxu0
    %v2311 = vadd.f32 0.0, %v2310
    %v2312 = vpop.f32.mrb[0].mxu0
    %v2313 = vadd.f32 0.0, %v2312
    %v2314 = vpop.f32.mrb[0].mxu0
    %v2315 = vadd.f32 0.0, %v2314
    %v2316 = vpop.f32.mrb[0].mxu0
    %v2317 = vadd.f32 0.0, %v2316
    %2318 = vdwg.mxu0
    %v2321 = vunpack.c.l.b16 %v984
    %v2322 = vunpack.c.l.b16 %v985
    %v2323 = vpack.c.b16 %v2322, %v2321
    %v2325 = vsel %vm997, %v2323, 0
    %2327 = vmatprep.subr.bf16.mxu0 %v925
    %2328 = vmatpush1.bf16.msra.mxu0 %v924
    %2329 = vmatprep.subr.bf16.mxu0 0
    %2330 = vmatpush1.bf16.msra.mxu0 0
    %2331 = vmatprep.subr.bf16.mxu0 0
    %2332 = vmatpush1.bf16.msra.mxu0 0
    %2333 = vmatprep.subr.bf16.mxu0 0
    %2334 = vmatpush1.bf16.msra.mxu0 0
    %2335 = vmatprep.subr.bf16.mxu0 0
    %2336 = vmatpush1.bf16.msra.mxu0 0
    %2337 = vmatprep.subr.bf16.mxu0 0
    %2338 = vmatpush1.bf16.msra.mxu0 0
    %2339 = vmatprep.subr.bf16.mxu0 0
    %2340 = vmatpush1.bf16.msra.mxu0 0
    %2341 = vmatprep.subr.bf16.mxu0 0
    %2342 = vmatpush1.bf16.msra.mxu0 0
    %2343 = vmatprep.subr.bf16.mxu0 0
    %2344 = vmatpush1.bf16.msra.mxu0 0
    %2345 = vmatprep.subr.bf16.mxu0 0
    %2346 = vmatpush1.bf16.msra.mxu0 0
    %2347 = vmatprep.subr.bf16.mxu0 0
    %2348 = vmatpush1.bf16.msra.mxu0 0
    %2349 = vmatprep.subr.bf16.mxu0 0
    %2350 = vmatpush1.bf16.msra.mxu0 0
    %2351 = vmatprep.subr.bf16.mxu0 0
    %2352 = vmatpush1.bf16.msra.mxu0 0
    %2353 = vmatprep.subr.bf16.mxu0 0
    %2354 = vmatpush1.bf16.msra.mxu0 0
    %2355 = vmatprep.subr.bf16.mxu0 0
    %2356 = vmatpush1.bf16.msra.mxu0 0
    %2357 = vmatprep.subr.bf16.mxu0 0
    %2358 = vmatpush1.bf16.msra.mxu0 0
    %2359 = vmatprep.mubr.bf16.mxu0 0
    %2360 = vmatmul.mubr.bf16.gmra.mrb[0].mxu0 %v2325
    %v2361 = vpop.f32.mrb[0].mxu0
    %v2362 = vadd.f32 0.0, %v2361
    %v2363 = vpop.f32.mrb[0].mxu0
    %v2364 = vadd.f32 0.0, %v2363
    %v2365 = vpop.f32.mrb[0].mxu0
    %v2366 = vadd.f32 0.0, %v2365
    %v2367 = vpop.f32.mrb[0].mxu0
    %v2368 = vadd.f32 0.0, %v2367
    %2369 = vdwg.mxu0
    %v2372 = vunpack.c.l.b16 %v986
    %v2373 = vunpack.c.l.b16 %v987
    %v2374 = vpack.c.b16 %v2373, %v2372
    %v2376 = vsel %vm997, %v2374, 0
    %2378 = vmatprep.subr.bf16.mxu0 %v927
    %2379 = vmatpush1.bf16.msra.mxu0 %v926
    %2380 = vmatprep.subr.bf16.mxu0 0
    %2381 = vmatpush1.bf16.msra.mxu0 0
    %2382 = vmatprep.subr.bf16.mxu0 0
    %2383 = vmatpush1.bf16.msra.mxu0 0
    %2384 = vmatprep.subr.bf16.mxu0 0
    %2385 = vmatpush1.bf16.msra.mxu0 0
    %2386 = vmatprep.subr.bf16.mxu0 0
    %2387 = vmatpush1.bf16.msra.mxu0 0
    %2388 = vmatprep.subr.bf16.mxu0 0
    %2389 = vmatpush1.bf16.msra.mxu0 0
    %2390 = vmatprep.subr.bf16.mxu0 0
    %2391 = vmatpush1.bf16.msra.mxu0 0
    %2392 = vmatprep.subr.bf16.mxu0 0
    %2393 = vmatpush1.bf16.msra.mxu0 0
    %2394 = vmatprep.subr.bf16.mxu0 0
    %2395 = vmatpush1.bf16.msra.mxu0 0
    %2396 = vmatprep.subr.bf16.mxu0 0
    %2397 = vmatpush1.bf16.msra.mxu0 0
    %2398 = vmatprep.subr.bf16.mxu0 0
    %2399 = vmatpush1.bf16.msra.mxu0 0
    %2400 = vmatprep.subr.bf16.mxu0 0
    %2401 = vmatpush1.bf16.msra.mxu0 0
    %2402 = vmatprep.subr.bf16.mxu0 0
    %2403 = vmatpush1.bf16.msra.mxu0 0
    %2404 = vmatprep.subr.bf16.mxu0 0
    %2405 = vmatpush1.bf16.msra.mxu0 0
    %2406 = vmatprep.subr.bf16.mxu0 0
    %2407 = vmatpush1.bf16.msra.mxu0 0
    %2408 = vmatprep.subr.bf16.mxu0 0
    %2409 = vmatpush1.bf16.msra.mxu0 0
    %2410 = vmatprep.mubr.bf16.mxu0 0
    %2411 = vmatmul.mubr.bf16.gmra.mrb[0].mxu0 %v2376
    %v2412 = vpop.f32.mrb[0].mxu0
    %v2413 = vadd.f32 0.0, %v2412
    %v2414 = vpop.f32.mrb[0].mxu0
    %v2415 = vadd.f32 0.0, %v2414
    %v2416 = vpop.f32.mrb[0].mxu0
    %v2417 = vadd.f32 0.0, %v2416
    %v2418 = vpop.f32.mrb[0].mxu0
    %v2419 = vadd.f32 0.0, %v2418
    %2420 = vdwg.mxu0
    %v2423 = vunpack.c.l.b16 %v988
    %v2424 = vunpack.c.l.b16 %v989
    %v2425 = vpack.c.b16 %v2424, %v2423
    %v2427 = vsel %vm997, %v2425, 0
    %2429 = vmatprep.subr.bf16.mxu0 %v929
    %2430 = vmatpush1.bf16.msra.mxu0 %v928
    %2431 = vmatprep.subr.bf16.mxu0 0
    %2432 = vmatpush1.bf16.msra.mxu0 0
    %2433 = vmatprep.subr.bf16.mxu0 0
    %2434 = vmatpush1.bf16.msra.mxu0 0
    %2435 = vmatprep.subr.bf16.mxu0 0
    %2436 = vmatpush1.bf16.msra.mxu0 0
    %2437 = vmatprep.subr.bf16.mxu0 0
    %2438 = vmatpush1.bf16.msra.mxu0 0
    %2439 = vmatprep.subr.bf16.mxu0 0
    %2440 = vmatpush1.bf16.msra.mxu0 0
    %2441 = vmatprep.subr.bf16.mxu0 0
    %2442 = vmatpush1.bf16.msra.mxu0 0
    %2443 = vmatprep.subr.bf16.mxu0 0
    %2444 = vmatpush1.bf16.msra.mxu0 0
    %2445 = vmatprep.subr.bf16.mxu0 0
    %2446 = vmatpush1.bf16.msra.mxu0 0
    %2447 = vmatprep.subr.bf16.mxu0 0
    %2448 = vmatpush1.bf16.msra.mxu0 0
    %2449 = vmatprep.subr.bf16.mxu0 0
    %2450 = vmatpush1.bf16.msra.mxu0 0
    %2451 = vmatprep.subr.bf16.mxu0 0
    %2452 = vmatpush1.bf16.msra.mxu0 0
    %2453 = vmatprep.subr.bf16.mxu0 0
    %2454 = vmatpush1.bf16.msra.mxu0 0
    %2455 = vmatprep.subr.bf16.mxu0 0
    %2456 = vmatpush1.bf16.msra.mxu0 0
    %2457 = vmatprep.subr.bf16.mxu0 0
    %2458 = vmatpush1.bf16.msra.mxu0 0
    %2459 = vmatprep.subr.bf16.mxu0 0
    %2460 = vmatpush1.bf16.msra.mxu0 0
    %2461 = vmatprep.mubr.bf16.mxu0 0
    %2462 = vmatmul.mubr.bf16.gmra.mrb[0].mxu0 %v2427
    %v2463 = vpop.f32.mrb[0].mxu0
    %v2464 = vadd.f32 0.0, %v2463
    %v2465 = vpop.f32.mrb[0].mxu0
    %v2466 = vadd.f32 0.0, %v2465
    %v2467 = vpop.f32.mrb[0].mxu0
    %v2468 = vadd.f32 0.0, %v2467
    %v2469 = vpop.f32.mrb[0].mxu0
    %v2470 = vadd.f32 0.0, %v2469
    %2471 = vdwg.mxu0
    %v2474 = vunpack.c.l.b16 %v990
    %v2475 = vunpack.c.l.b16 %v991
    %v2476 = vpack.c.b16 %v2475, %v2474
    %v2478 = vsel %vm997, %v2476, 0
    %2480 = vmatprep.subr.bf16.mxu0 %v931
    %2481 = vmatpush1.bf16.msra.mxu0 %v930
    %2482 = vmatprep.subr.bf16.mxu0 0
    %2483 = vmatpush1.bf16.msra.mxu0 0
    %2484 = vmatprep.subr.bf16.mxu0 0
    %2485 = vmatpush1.bf16.msra.mxu0 0
    %2486 = vmatprep.subr.bf16.mxu0 0
    %2487 = vmatpush1.bf16.msra.mxu0 0
    %2488 = vmatprep.subr.bf16.mxu0 0
    %2489 = vmatpush1.bf16.msra.mxu0 0
    %2490 = vmatprep.subr.bf16.mxu0 0
    %2491 = vmatpush1.bf16.msra.mxu0 0
    %2492 = vmatprep.subr.bf16.mxu0 0
    %2493 = vmatpush1.bf16.msra.mxu0 0
    %2494 = vmatprep.subr.bf16.mxu0 0
    %2495 = vmatpush1.bf16.msra.mxu0 0
    %2496 = vmatprep.subr.bf16.mxu0 0
    %2497 = vmatpush1.bf16.msra.mxu0 0
    %2498 = vmatprep.subr.bf16.mxu0 0
    %2499 = vmatpush1.bf16.msra.mxu0 0
    %2500 = vmatprep.subr.bf16.mxu0 0
    %2501 = vmatpush1.bf16.msra.mxu0 0
    %2502 = vmatprep.subr.bf16.mxu0 0
    %2503 = vmatpush1.bf16.msra.mxu0 0
    %2504 = vmatprep.subr.bf16.mxu0 0
    %2505 = vmatpush1.bf16.msra.mxu0 0
    %2506 = vmatprep.subr.bf16.mxu0 0
    %2507 = vmatpush1.bf16.msra.mxu0 0
    %2508 = vmatprep.subr.bf16.mxu0 0
    %2509 = vmatpush1.bf16.msra.mxu0 0
    %2510 = vmatprep.subr.bf16.mxu0 0
    %2511 = vmatpush1.bf16.msra.mxu0 0
    %2512 = vmatprep.mubr.bf16.mxu0 0
    %2513 = vmatmul.mubr.bf16.gmra.mrb[0].mxu0 %v2478
    %v2514 = vpop.f32.mrb[0].mxu0
    %v2515 = vadd.f32 0.0, %v2514
    %v2516 = vpop.f32.mrb[0].mxu0
    %v2517 = vadd.f32 0.0, %v2516
    %v2518 = vpop.f32.mrb[0].mxu0
    %v2519 = vadd.f32 0.0, %v2518
    %v2520 = vpop.f32.mrb[0].mxu0
    %v2521 = vadd.f32 0.0, %v2520
    %2522 = vdwg.mxu0
    %v2523 = vmul.f32 %v1036, %v1036
    %v2524 = vmul.f32 %v1038, %v1038
    %v2525 = vmul.f32 %v1040, %v1040
    %v2526 = vmul.f32 %v1042, %v1042
    %v2527 = vmul.f32 %v1087, %v1087
    %v2528 = vmul.f32 %v1089, %v1089
    %v2529 = vmul.f32 %v1091, %v1091
    %v2530 = vmul.f32 %v1093, %v1093
    %v2531 = vmul.f32 %v1138, %v1138
    %v2532 = vmul.f32 %v1140, %v1140
    %v2533 = vmul.f32 %v1142, %v1142
    %v2534 = vmul.f32 %v1144, %v1144
    %v2535 = vmul.f32 %v1189, %v1189
    %v2536 = vmul.f32 %v1191, %v1191
    %v2537 = vmul.f32 %v1193, %v1193
    %v2538 = vmul.f32 %v1195, %v1195
    %v2539 = vmul.f32 %v1240, %v1240
    %v2540 = vmul.f32 %v1242, %v1242
    %v2541 = vmul.f32 %v1244, %v1244
    %v2542 = vmul.f32 %v1246, %v1246
    %v2543 = vmul.f32 %v1291, %v1291
    %v2544 = vmul.f32 %v1293, %v1293
    %v2545 = vmul.f32 %v1295, %v1295
    %v2546 = vmul.f32 %v1297, %v1297
    %v2547 = vmul.f32 %v1342, %v1342
    %v2548 = vmul.f32 %v1344, %v1344
    %v2549 = vmul.f32 %v1346, %v1346
    %v2550 = vmul.f32 %v1348, %v1348
    %v2551 = vmul.f32 %v1393, %v1393
    %v2552 = vmul.f32 %v1395, %v1395
    %v2553 = vmul.f32 %v1397, %v1397
    %v2554 = vmul.f32 %v1399, %v1399
    %v2555 = vmul.f32 %v1444, %v1444
    %v2556 = vmul.f32 %v1446, %v1446
    %v2557 = vmul.f32 %v1448, %v1448
    %v2558 = vmul.f32 %v1450, %v1450
    %v2559 = vmul.f32 %v1495, %v1495
    %v2560 = vmul.f32 %v1497, %v1497
    %v2561 = vmul.f32 %v1499, %v1499
    %v2562 = vmul.f32 %v1501, %v1501
    %v2563 = vmul.f32 %v1546, %v1546
    %v2564 = vmul.f32 %v1548, %v1548
    %v2565 = vmul.f32 %v1550, %v1550
    %v2566 = vmul.f32 %v1552, %v1552
    %v2567 = vmul.f32 %v1597, %v1597
    %v2568 = vmul.f32 %v1599, %v1599
    %v2569 = vmul.f32 %v1601, %v1601
    %v2570 = vmul.f32 %v1603, %v1603
    %v2571 = vmul.f32 %v1036, %v1342
    %v2572 = vmul.f32 %v1038, %v1344
    %v2573 = vmul.f32 %v1040, %v1346
    %v2574 = vmul.f32 %v1042, %v1348
    %v2575 = vmul.f32 %v1087, %v1393
    %v2576 = vmul.f32 %v1089, %v1395
    %v2577 = vmul.f32 %v1091, %v1397
    %v2578 = vmul.f32 %v1093, %v1399
    %v2579 = vmul.f32 %v1138, %v1444
    %v2580 = vmul.f32 %v1140, %v1446
    %v2581 = vmul.f32 %v1142, %v1448
    %v2582 = vmul.f32 %v1144, %v1450
    %v2583 = vmul.f32 %v1189, %v1495
    %v2584 = vmul.f32 %v1191, %v1497
    %v2585 = vmul.f32 %v1193, %v1499
    %v2586 = vmul.f32 %v1195, %v1501
    %v2587 = vmul.f32 %v1240, %v1546
    %v2588 = vmul.f32 %v1242, %v1548
    %v2589 = vmul.f32 %v1244, %v1550
    %v2590 = vmul.f32 %v1246, %v1552
    %v2591 = vmul.f32 %v1291, %v1597
    %v2592 = vmul.f32 %v1293, %v1599
    %v2593 = vmul.f32 %v1295, %v1601
    %v2594 = vmul.f32 %v1297, %v1603
    %v2595 = vsub.f32 %v1648, %v2523
    %v2596 = vsub.f32 %v1650, %v2524
    %v2597 = vsub.f32 %v1652, %v2525
    %v2598 = vsub.f32 %v1654, %v2526
    %v2599 = vsub.f32 %v1699, %v2527
    %v2600 = vsub.f32 %v1701, %v2528
    %v2601 = vsub.f32 %v1703, %v2529
    %v2602 = vsub.f32 %v1705, %v2530
    %v2603 = vsub.f32 %v1750, %v2531
    %v2604 = vsub.f32 %v1752, %v2532
    %v2605 = vsub.f32 %v1754, %v2533
    %v2606 = vsub.f32 %v1756, %v2534
    %v2607 = vsub.f32 %v1801, %v2535
    %v2608 = vsub.f32 %v1803, %v2536
    %v2609 = vsub.f32 %v1805, %v2537
    %v2610 = vsub.f32 %v1807, %v2538
    %v2611 = vsub.f32 %v1852, %v2539
    %v2612 = vsub.f32 %v1854, %v2540
    %v2613 = vsub.f32 %v1856, %v2541
    %v2614 = vsub.f32 %v1858, %v2542
    %v2615 = vsub.f32 %v1903, %v2543
    %v2616 = vsub.f32 %v1905, %v2544
    %v2617 = vsub.f32 %v1907, %v2545
    %v2618 = vsub.f32 %v1909, %v2546
    %v2619 = vsub.f32 %v1954, %v2547
    %v2620 = vsub.f32 %v1956, %v2548
    %v2621 = vsub.f32 %v1958, %v2549
    %v2622 = vsub.f32 %v1960, %v2550
    %v2623 = vsub.f32 %v2005, %v2551
    %v2624 = vsub.f32 %v2007, %v2552
    %v2625 = vsub.f32 %v2009, %v2553
    %v2626 = vsub.f32 %v2011, %v2554
    %v2627 = vsub.f32 %v2056, %v2555
    %v2628 = vsub.f32 %v2058, %v2556
    %v2629 = vsub.f32 %v2060, %v2557
    %v2630 = vsub.f32 %v2062, %v2558
    %v2631 = vsub.f32 %v2107, %v2559
    %v2632 = vsub.f32 %v2109, %v2560
    %v2633 = vsub.f32 %v2111, %v2561
    %v2634 = vsub.f32 %v2113, %v2562
    %v2635 = vsub.f32 %v2158, %v2563
    %v2636 = vsub.f32 %v2160, %v2564
    %v2637 = vsub.f32 %v2162, %v2565
    %v2638 = vsub.f32 %v2164, %v2566
    %v2639 = vsub.f32 %v2209, %v2567
    %v2640 = vsub.f32 %v2211, %v2568
    %v2641 = vsub.f32 %v2213, %v2569
    %v2642 = vsub.f32 %v2215, %v2570
    %v2643 = vsub.f32 %v2260, %v2571
    %v2644 = vsub.f32 %v2262, %v2572
    %v2645 = vsub.f32 %v2264, %v2573
    %v2646 = vsub.f32 %v2266, %v2574
    %v2647 = vsub.f32 %v2311, %v2575
    %v2648 = vsub.f32 %v2313, %v2576
    %v2649 = vsub.f32 %v2315, %v2577
    %v2650 = vsub.f32 %v2317, %v2578
    %v2651 = vsub.f32 %v2362, %v2579
    %v2652 = vsub.f32 %v2364, %v2580
    %v2653 = vsub.f32 %v2366, %v2581
    %v2654 = vsub.f32 %v2368, %v2582
    %v2655 = vsub.f32 %v2413, %v2583
    %v2656 = vsub.f32 %v2415, %v2584
    %v2657 = vsub.f32 %v2417, %v2585
    %v2658 = vsub.f32 %v2419, %v2586
    %v2659 = vsub.f32 %v2464, %v2587
    %v2660 = vsub.f32 %v2466, %v2588
    %v2661 = vsub.f32 %v2468, %v2589
    %v2662 = vsub.f32 %v2470, %v2590
    %v2663 = vsub.f32 %v2515, %v2591
    %v2664 = vsub.f32 %v2517, %v2592
    %v2665 = vsub.f32 %v2519, %v2593
    %v2666 = vsub.f32 %v2521, %v2594
    %v2667 = vmul.f32 %v2571, 2.0
    %v2668 = vmul.f32 %v2572, 2.0
    %v2669 = vmul.f32 %v2573, 2.0
    %v2670 = vmul.f32 %v2574, 2.0
    %v2671 = vmul.f32 %v2575, 2.0
    %v2672 = vmul.f32 %v2576, 2.0
    %v2673 = vmul.f32 %v2577, 2.0
    %v2674 = vmul.f32 %v2578, 2.0
    %v2675 = vmul.f32 %v2579, 2.0
    %v2676 = vmul.f32 %v2580, 2.0
    %v2677 = vmul.f32 %v2581, 2.0
    %v2678 = vmul.f32 %v2582, 2.0
    %v2679 = vmul.f32 %v2583, 2.0
    %v2680 = vmul.f32 %v2584, 2.0
    %v2681 = vmul.f32 %v2585, 2.0
    %v2682 = vmul.f32 %v2586, 2.0
    %v2683 = vmul.f32 %v2587, 2.0
    %v2684 = vmul.f32 %v2588, 2.0
    %v2685 = vmul.f32 %v2589, 2.0
    %v2686 = vmul.f32 %v2590, 2.0
    %v2687 = vmul.f32 %v2591, 2.0
    %v2688 = vmul.f32 %v2592, 2.0
    %v2689 = vmul.f32 %v2593, 2.0
    %v2690 = vmul.f32 %v2594, 2.0
    %v2691 = vadd.f32 %v2667, 0.0001
    %v2692 = vadd.f32 %v2668, 0.0001
    %v2693 = vadd.f32 %v2669, 0.0001
    %v2694 = vadd.f32 %v2670, 0.0001
    %v2695 = vadd.f32 %v2671, 0.0001
    %v2696 = vadd.f32 %v2672, 0.0001
    %v2697 = vadd.f32 %v2673, 0.0001
    %v2698 = vadd.f32 %v2674, 0.0001
    %v2699 = vadd.f32 %v2675, 0.0001
    %v2700 = vadd.f32 %v2676, 0.0001
    %v2701 = vadd.f32 %v2677, 0.0001
    %v2702 = vadd.f32 %v2678, 0.0001
    %v2703 = vadd.f32 %v2679, 0.0001
    %v2704 = vadd.f32 %v2680, 0.0001
    %v2705 = vadd.f32 %v2681, 0.0001
    %v2706 = vadd.f32 %v2682, 0.0001
    %v2707 = vadd.f32 %v2683, 0.0001
    %v2708 = vadd.f32 %v2684, 0.0001
    %v2709 = vadd.f32 %v2685, 0.0001
    %v2710 = vadd.f32 %v2686, 0.0001
    %v2711 = vadd.f32 %v2687, 0.0001
    %v2712 = vadd.f32 %v2688, 0.0001
    %v2713 = vadd.f32 %v2689, 0.0001
    %v2714 = vadd.f32 %v2690, 0.0001
    %v2715 = vmul.f32 %v2643, 2.0
    %v2716 = vmul.f32 %v2644, 2.0
    %v2717 = vmul.f32 %v2645, 2.0
    %v2718 = vmul.f32 %v2646, 2.0
    %v2719 = vmul.f32 %v2647, 2.0
    %v2720 = vmul.f32 %v2648, 2.0
    %v2721 = vmul.f32 %v2649, 2.0
    %v2722 = vmul.f32 %v2650, 2.0
    %v2723 = vmul.f32 %v2651, 2.0
    %v2724 = vmul.f32 %v2652, 2.0
    %v2725 = vmul.f32 %v2653, 2.0
    %v2726 = vmul.f32 %v2654, 2.0
    %v2727 = vmul.f32 %v2655, 2.0
    %v2728 = vmul.f32 %v2656, 2.0
    %v2729 = vmul.f32 %v2657, 2.0
    %v2730 = vmul.f32 %v2658, 2.0
    %v2731 = vmul.f32 %v2659, 2.0
    %v2732 = vmul.f32 %v2660, 2.0
    %v2733 = vmul.f32 %v2661, 2.0
    %v2734 = vmul.f32 %v2662, 2.0
    %v2735 = vmul.f32 %v2663, 2.0
    %v2736 = vmul.f32 %v2664, 2.0
    %v2737 = vmul.f32 %v2665, 2.0
    %v2738 = vmul.f32 %v2666, 2.0
    %v2739 = vadd.f32 %v2715, 0.0009
    %v2740 = vadd.f32 %v2716, 0.0009
    %v2741 = vadd.f32 %v2717, 0.0009
    %v2742 = vadd.f32 %v2718, 0.0009
    %v2743 = vadd.f32 %v2719, 0.0009
    %v2744 = vadd.f32 %v2720, 0.0009
    %v2745 = vadd.f32 %v2721, 0.0009
    %v2746 = vadd.f32 %v2722, 0.0009
    %v2747 = vadd.f32 %v2723, 0.0009
    %v2748 = vadd.f32 %v2724, 0.0009
    %v2749 = vadd.f32 %v2725, 0.0009
    %v2750 = vadd.f32 %v2726, 0.0009
    %v2751 = vadd.f32 %v2727, 0.0009
    %v2752 = vadd.f32 %v2728, 0.0009
    %v2753 = vadd.f32 %v2729, 0.0009
    %v2754 = vadd.f32 %v2730, 0.0009
    %v2755 = vadd.f32 %v2731, 0.0009
    %v2756 = vadd.f32 %v2732, 0.0009
    %v2757 = vadd.f32 %v2733, 0.0009
    %v2758 = vadd.f32 %v2734, 0.0009
    %v2759 = vadd.f32 %v2735, 0.0009
    %v2760 = vadd.f32 %v2736, 0.0009
    %v2761 = vadd.f32 %v2737, 0.0009
    %v2762 = vadd.f32 %v2738, 0.0009
    %v2763 = vmul.f32 %v2691, %v2739
    %v2764 = vmul.f32 %v2692, %v2740
    %v2765 = vmul.f32 %v2693, %v2741
    %v2766 = vmul.f32 %v2694, %v2742
    %v2767 = vmul.f32 %v2695, %v2743
    %v2768 = vmul.f32 %v2696, %v2744
    %v2769 = vmul.f32 %v2697, %v2745
    %v2770 = vmul.f32 %v2698, %v2746
    %v2771 = vmul.f32 %v2699, %v2747
    %v2772 = vmul.f32 %v2700, %v2748
    %v2773 = vmul.f32 %v2701, %v2749
    %v2774 = vmul.f32 %v2702, %v2750
    %v2775 = vmul.f32 %v2703, %v2751
    %v2776 = vmul.f32 %v2704, %v2752
    %v2777 = vmul.f32 %v2705, %v2753
    %v2778 = vmul.f32 %v2706, %v2754
    %v2779 = vmul.f32 %v2707, %v2755
    %v2780 = vmul.f32 %v2708, %v2756
    %v2781 = vmul.f32 %v2709, %v2757
    %v2782 = vmul.f32 %v2710, %v2758
    %v2783 = vmul.f32 %v2711, %v2759
    %v2784 = vmul.f32 %v2712, %v2760
    %v2785 = vmul.f32 %v2713, %v2761
    %v2786 = vmul.f32 %v2714, %v2762
    %v2787 = vadd.f32 %v2523, %v2547
    %v2788 = vadd.f32 %v2524, %v2548
    %v2789 = vadd.f32 %v2525, %v2549
    %v2790 = vadd.f32 %v2526, %v2550
    %v2791 = vadd.f32 %v2527, %v2551
    %v2792 = vadd.f32 %v2528, %v2552
    %v2793 = vadd.f32 %v2529, %v2553
    %v2794 = vadd.f32 %v2530, %v2554
    %v2795 = vadd.f32 %v2531, %v2555
    %v2796 = vadd.f32 %v2532, %v2556
    %v2797 = vadd.f32 %v2533, %v2557
    %v2798 = vadd.f32 %v2534, %v2558
    %v2799 = vadd.f32 %v2535, %v2559
    %v2800 = vadd.f32 %v2536, %v2560
    %v2801 = vadd.f32 %v2537, %v2561
    %v2802 = vadd.f32 %v2538, %v2562
    %v2803 = vadd.f32 %v2539, %v2563
    %v2804 = vadd.f32 %v2540, %v2564
    %v2805 = vadd.f32 %v2541, %v2565
    %v2806 = vadd.f32 %v2542, %v2566
    %v2807 = vadd.f32 %v2543, %v2567
    %v2808 = vadd.f32 %v2544, %v2568
    %v2809 = vadd.f32 %v2545, %v2569
    %v2810 = vadd.f32 %v2546, %v2570
    %v2811 = vadd.f32 %v2787, 0.0001
    %v2812 = vadd.f32 %v2788, 0.0001
    %v2813 = vadd.f32 %v2789, 0.0001
    %v2814 = vadd.f32 %v2790, 0.0001
    %v2815 = vadd.f32 %v2791, 0.0001
    %v2816 = vadd.f32 %v2792, 0.0001
    %v2817 = vadd.f32 %v2793, 0.0001
    %v2818 = vadd.f32 %v2794, 0.0001
    %v2819 = vadd.f32 %v2795, 0.0001
    %v2820 = vadd.f32 %v2796, 0.0001
    %v2821 = vadd.f32 %v2797, 0.0001
    %v2822 = vadd.f32 %v2798, 0.0001
    %v2823 = vadd.f32 %v2799, 0.0001
    %v2824 = vadd.f32 %v2800, 0.0001
    %v2825 = vadd.f32 %v2801, 0.0001
    %v2826 = vadd.f32 %v2802, 0.0001
    %v2827 = vadd.f32 %v2803, 0.0001
    %v2828 = vadd.f32 %v2804, 0.0001
    %v2829 = vadd.f32 %v2805, 0.0001
    %v2830 = vadd.f32 %v2806, 0.0001
    %v2831 = vadd.f32 %v2807, 0.0001
    %v2832 = vadd.f32 %v2808, 0.0001
    %v2833 = vadd.f32 %v2809, 0.0001
    %v2834 = vadd.f32 %v2810, 0.0001
    %v2835 = vadd.f32 %v2595, %v2619
    %v2836 = vadd.f32 %v2596, %v2620
    %v2837 = vadd.f32 %v2597, %v2621
    %v2838 = vadd.f32 %v2598, %v2622
    %v2839 = vadd.f32 %v2599, %v2623
    %v2840 = vadd.f32 %v2600, %v2624
    %v2841 = vadd.f32 %v2601, %v2625
    %v2842 = vadd.f32 %v2602, %v2626
    %v2843 = vadd.f32 %v2603, %v2627
    %v2844 = vadd.f32 %v2604, %v2628
    %v2845 = vadd.f32 %v2605, %v2629
    %v2846 = vadd.f32 %v2606, %v2630
    %v2847 = vadd.f32 %v2607, %v2631
    %v2848 = vadd.f32 %v2608, %v2632
    %v2849 = vadd.f32 %v2609, %v2633
    %v2850 = vadd.f32 %v2610, %v2634
    %v2851 = vadd.f32 %v2611, %v2635
    %v2852 = vadd.f32 %v2612, %v2636
    %v2853 = vadd.f32 %v2613, %v2637
    %v2854 = vadd.f32 %v2614, %v2638
    %v2855 = vadd.f32 %v2615, %v2639
    %v2856 = vadd.f32 %v2616, %v2640
    %v2857 = vadd.f32 %v2617, %v2641
    %v2858 = vadd.f32 %v2618, %v2642
    %v2859 = vadd.f32 %v2835, 0.0009
    %v2860 = vadd.f32 %v2836, 0.0009
    %v2861 = vadd.f32 %v2837, 0.0009
    %v2862 = vadd.f32 %v2838, 0.0009
    %v2863 = vadd.f32 %v2839, 0.0009
    %v2864 = vadd.f32 %v2840, 0.0009
    %v2865 = vadd.f32 %v2841, 0.0009
    %v2866 = vadd.f32 %v2842, 0.0009
    %v2867 = vadd.f32 %v2843, 0.0009
    %v2868 = vadd.f32 %v2844, 0.0009
    %v2869 = vadd.f32 %v2845, 0.0009
    %v2870 = vadd.f32 %v2846, 0.0009
    %v2871 = vadd.f32 %v2847, 0.0009
    %v2872 = vadd.f32 %v2848, 0.0009
    %v2873 = vadd.f32 %v2849, 0.0009
    %v2874 = vadd.f32 %v2850, 0.0009
    %v2875 = vadd.f32 %v2851, 0.0009
    %v2876 = vadd.f32 %v2852, 0.0009
    %v2877 = vadd.f32 %v2853, 0.0009
    %v2878 = vadd.f32 %v2854, 0.0009
    %v2879 = vadd.f32 %v2855, 0.0009
    %v2880 = vadd.f32 %v2856, 0.0009
    %v2881 = vadd.f32 %v2857, 0.0009
    %v2882 = vadd.f32 %v2858, 0.0009
    %v2883 = vmul.f32 %v2811, %v2859
    %v2884 = vmul.f32 %v2812, %v2860
    %v2885 = vmul.f32 %v2813, %v2861
    %v2886 = vmul.f32 %v2814, %v2862
    %v2887 = vmul.f32 %v2815, %v2863
    %v2888 = vmul.f32 %v2816, %v2864
    %v2889 = vmul.f32 %v2817, %v2865
    %v2890 = vmul.f32 %v2818, %v2866
    %v2891 = vmul.f32 %v2819, %v2867
    %v2892 = vmul.f32 %v2820, %v2868
    %v2893 = vmul.f32 %v2821, %v2869
    %v2894 = vmul.f32 %v2822, %v2870
    %v2895 = vmul.f32 %v2823, %v2871
    %v2896 = vmul.f32 %v2824, %v2872
    %v2897 = vmul.f32 %v2825, %v2873
    %v2898 = vmul.f32 %v2826, %v2874
    %v2899 = vmul.f32 %v2827, %v2875
    %v2900 = vmul.f32 %v2828, %v2876
    %v2901 = vmul.f32 %v2829, %v2877
    %v2902 = vmul.f32 %v2830, %v2878
    %v2903 = vmul.f32 %v2831, %v2879
    %v2904 = vmul.f32 %v2832, %v2880
    %v2905 = vmul.f32 %v2833, %v2881
    %v2906 = vmul.f32 %v2834, %v2882
    %v2907 = vrcp.pop %v2883
    %v2908 = vrcp.pop %v2884
    %v2909 = vrcp.pop %v2885
    %v2910 = vrcp.pop %v2886
    %v2911 = vrcp.pop %v2887
    %v2912 = vrcp.pop %v2888
    %v2913 = vrcp.pop %v2889
    %v2914 = vrcp.pop %v2890
    %v2915 = vrcp.pop %v2891
    %v2916 = vrcp.pop %v2892
    %v2917 = vrcp.pop %v2893
    %v2918 = vrcp.pop %v2894
    %v2919 = vrcp.pop %v2895
    %v2920 = vrcp.pop %v2896
    %v2921 = vrcp.pop %v2897
    %v2922 = vrcp.pop %v2898
    %v2923 = vrcp.pop %v2899
    %v2924 = vrcp.pop %v2900
    %v2925 = vrcp.pop %v2901
    %v2926 = vrcp.pop %v2902
    %v2927 = vrcp.pop %v2903
    %v2928 = vrcp.pop %v2904
    %v2929 = vrcp.pop %v2905
    %v2930 = vrcp.pop %v2906
    %v2931 = vmul.f32 %v2763, %v2907
    %v2932 = vmul.f32 %v2764, %v2908
    %v2933 = vmul.f32 %v2765, %v2909
    %v2934 = vmul.f32 %v2766, %v2910
    %v2935 = vmul.f32 %v2767, %v2911
    %v2936 = vmul.f32 %v2768, %v2912
    %v2937 = vmul.f32 %v2769, %v2913
    %v2938 = vmul.f32 %v2770, %v2914
    %v2939 = vmul.f32 %v2771, %v2915
    %v2940 = vmul.f32 %v2772, %v2916
    %v2941 = vmul.f32 %v2773, %v2917
    %v2942 = vmul.f32 %v2774, %v2918
    %v2943 = vmul.f32 %v2775, %v2919
    %v2944 = vmul.f32 %v2776, %v2920
    %v2945 = vmul.f32 %v2777, %v2921
    %v2946 = vmul.f32 %v2778, %v2922
    %v2947 = vmul.f32 %v2779, %v2923
    %v2948 = vmul.f32 %v2780, %v2924
    %v2949 = vmul.f32 %v2781, %v2925
    %v2950 = vmul.f32 %v2782, %v2926
    %v2951 = vmul.f32 %v2783, %v2927
    %v2952 = vmul.f32 %v2784, %v2928
    %v2953 = vmul.f32 %v2785, %v2929
    %v2954 = vmul.f32 %v2786, %v2930
    %v2955 = vadd.f32 %v2931, %v2932
    %v2956 = vadd.f32 %v2955, %v2933
    %v2957 = vadd.f32 %v2956, %v2934
    %v2958 = vadd.f32 %v2957, %v2935
    %v2959 = vadd.f32 %v2958, %v2936
    %v2960 = vadd.f32 %v2959, %v2937
    %v2961 = vadd.f32 %v2960, %v2938
    %v2962 = vadd.f32 %v2961, %v2939
    %v2963 = vadd.f32 %v2962, %v2940
    %v2964 = vadd.f32 %v2963, %v2941
    %v2965 = vadd.f32 %v2964, %v2942
    %v2966 = vadd.f32 %v2965, %v2943
    %v2967 = vadd.f32 %v2966, %v2944
    %v2968 = vadd.f32 %v2967, %v2945
    %v2969 = vadd.f32 %v2968, %v2946
    %v2970 = vadd.f32 %v2969, %v2947
    %v2971 = vadd.f32 %v2970, %v2948
    %v2972 = vadd.f32 %v2971, %v2949
    %v2973 = vadd.f32 %v2972, %v2950
    %v2974 = vadd.f32 %v2973, %v2951
    %v2975 = vadd.f32 %v2974, %v2952
    %v2976 = vadd.f32 %v2975, %v2953
    %v2977 = vadd.f32 %v2976, %v2954
    %2978 = vadd.xlane.f32.xlu0 %v2977
    %v2979 = vpop.xlane.xlu0 %2978
    %v2980 = vrot.slane %v2979, 4
    %v2981 = vadd.f32 %v2979, %v2980
    %v2982 = vrot.slane %v2981, 2
    %v2983 = vadd.f32 %v2981, %v2982
    %v2984 = vrot.slane %v2983, 1
    %v2985 = vadd.f32 %v2983, %v2984
    %s2986 = vtos %v2985
    %v2987 = vstv %s2986
    %vm2988 = vcmask 0
    %2989 = vst.msk [vmem:[#allocation8] sm:$0x1] %vm2988, %v2987
    // Predicated region
    $region26: #{tpu_custom_call.1} parent=1 // pred_check
      _
    $region27: #{tpu_custom_call.1} parent=1 // pred_check_branch
      %2991 = sbr.rel (0) target = $region29
    $region28: #{tpu_custom_call.1} parent=1 // pred_region
      %s2993 = ssub.s32 16, 16
      %2994 = vsyncadd [#allocation5], %s2993
      %s2996 = sshll.u32 [#allocation8], 4
      %s2997 = int_to_ptr.vmem [resolvable:$true] %s2996
      %2999 = dma.vmem_to_hbm [thread:$0]  %s2997, 16, %s4, [#allocation5]
    $region29: #{tpu_custom_call.1} parent=1 // pred_fallthru
      _
    // Predicated region
    $region30: #{tpu_custom_call.1} parent=1 // pred_check
      _
    $region31: #{tpu_custom_call.1} parent=1 // pred_check_branch
      %3001 = sbr.rel (0) target = $region33
    $region32: #{tpu_custom_call.1} parent=1 // pred_region
      %3002 = dma.done [#allocation5], 16
    $region33: #{tpu_custom_call.1} parent=1 // pred_fallthru
      _
    %3003 = vsyncpa [#allocation4], 1
    %3004 = vsyncpa [#allocation7], 1
    %3005 = vsyncpa [#allocation5], 1

// kernel: tpu_custom_call.1
$region0: #{tpu_custom_call.1}
  #allocation0 [shape = 'u32[]', space=smem, size = 0x4, offset = 0x4, fixed_abs, tag = 'smem constant byte address 0x4 - core index']
  #allocation1 [shape = 'u32[144,128]{1,0:T(1,128)}', space=vmem, size = 0x12000, scoped, tag = 'internal scratch']
  #allocation2 [shape = 'bf16[480,256]{1,0:T(16,128)(2,1)}', space=vmem, size = 0x3c000, scoped, tag = 'scratch operand']
  %s0 = inlined_call_operand.hbm [shape: f32[96,256], index: 0, kind: input, shape index: {}]
  %s1 = inlined_call_operand.hbm [shape: f32[96,256], index: 1, kind: input, shape index: {}]
  %s2 = inlined_call_operand.vmem [shape: bf16[256,256], index: 2, kind: input, shape index: {}]
  %s3 = inlined_call_operand.vmem [shape: bf16[30,16,16], index: 3, kind: input, shape index: {}]
  %s4 = inlined_call_operand.hbm [shape: f32[1,1,1], index: 4, kind: output, shape index: {}]
  %s5 = sld [smem:[#allocation0]]
  $region34: #{tpu_custom_call.1} parent=0
    _
  %s7 = ssub.s32 1, %s5
  %s8 = scalar_select 0, %s7, %s5
  $region1: #{tpu_custom_call.1} parent=0
    #allocation3 [shape = 'u8[98304]{0}', space=vmem, size = 0x18000, scoped, tag = 'input window, operand 0, single buffered']
    #allocation4 [shape = 's32[1]{0}', space=sflag, size = 0x4, scoped, tag = 'scoped memory for tpu_custom_call.1']
    #allocation5 [shape = 's32[1]{0}', space=sflag, size = 0x4, scoped, tag = 'scoped memory for tpu_custom_call.1']
    #allocation6 [shape = 'u8[98304]{0}', space=vmem, size = 0x18000, scoped, tag = 'input window, operand 1, single buffered']
    #allocation7 [shape = 's32[1]{0}', space=sflag, size = 0x4, scoped, tag = 'scoped memory for tpu_custom_call.1']
    #allocation8 [shape = 'u8[512]{0}', space=vmem, size = 0x400, scoped, tag = 'output window, operand 0, single buffered']
    %9 = vsyncpa [#allocation4], 0
    %10 = vsyncpa [#allocation7], 0
    %11 = vsyncpa [#allocation5], 0
    // Predicated region
    $region2: #{tpu_custom_call.1} parent=1 // pred_check
      _
    $region3: #{tpu_custom_call.1} parent=1 // pred_check_branch
      %13 = sbr.rel (0) target = $region5
    $region4: #{tpu_custom_call.1} parent=1 // pred_region
      %s15 = ssub.s32 3072, 3072
      %16 = vsyncadd [#allocation4], %s15
      %s17 = sshll.u32 [#allocation3], 4
      %s18 = int_to_ptr.vmem [resolvable:$true] %s17
      %23 = dma.hbm_to_vmem [thread:$0]  %s0, 3072, %s18, [#allocation4], 256, 256, 16
    $region5: #{tpu_custom_call.1} parent=1 // pred_fallthru
      _
    // Predicated region
    $region6: #{tpu_custom_call.1} parent=1 // pred_check
      _
    $region7: #{tpu_custom_call.1} parent=1 // pred_check_branch
      %25 = sbr.rel (0) target = $region9
    $region8: #{tpu_custom_call.1} parent=1 // pred_region
      %s27 = ssub.s32 3072, 3072
      %28 = vsyncadd [#allocation7], %s27
      %s29 = sshll.u32 [#allocation6], 4
      %s30 = int_to_ptr.vmem [resolvable:$true] %s29
      %35 = dma.hbm_to_vmem [thread:$0]  %s1, 3072, %s30, [#allocation7], 256, 256, 16
    $region9: #{tpu_custom_call.1} parent=1 // pred_fallthru
      _
    // Predicated region
    $region10: #{tpu_custom_call.1} parent=1 // pred_check
      _
    $region11: #{tpu_custom_call.1} parent=1 // pred_check_branch
      %37 = sbr.rel (0) target = $region13
    $region12: #{tpu_custom_call.1} parent=1 // pred_region
      _
    $region13: #{tpu_custom_call.1} parent=1 // pred_fallthru
      _
    // Predicated region
    $region14: #{tpu_custom_call.1} parent=1 // pred_check
      _
    $region15: #{tpu_custom_call.1} parent=1 // pred_check_branch
      %39 = sbr.rel (0) target = $region17
    $region16: #{tpu_custom_call.1} parent=1 // pred_region
      _
    $region17: #{tpu_custom_call.1} parent=1 // pred_fallthru
      _
    // Predicated region
    $region18: #{tpu_custom_call.1} parent=1 // pred_check
      _
    $region19: #{tpu_custom_call.1} parent=1 // pred_check_branch
      %41 = sbr.rel (0) target = $region21
    $region20: #{tpu_custom_call.1} parent=1 // pred_region
      %42 = dma.done [#allocation4], 3072
    $region21: #{tpu_custom_call.1} parent=1 // pred_fallthru
      _
    // Predicated region
    $region22: #{tpu_custom_call.1} parent=1 // pred_check
      _
    $region23: #{tpu_custom_call.1} parent=1 // pred_check_branch
      %44 = sbr.rel (0) target = $region25
    $region24: #{tpu_custom_call.1} parent=1 // pred_region
      %45 = dma.done [#allocation7], 3072
    $region25: #{tpu_custom_call.1} parent=1 // pred_fallthru
      _
    %v47 = vld [vmem:[#allocation3] sm:$0xff]
    %v48 = vld [vmem:[#allocation3 + $0x8] sm:$0xff]
    %v49 = vld [vmem:[#allocation3 + $0x10] sm:$0xff]
    %v50 = vld [vmem:[#allocation3 + $0x18] sm:$0xff]
    %v51 = vld [vmem:[#allocation3 + $0x20] sm:$0xff]
    %v52 = vld [vmem:[#allocation3 + $0x28] sm:$0xff]
    %v53 = vld [vmem:[#allocation3 + $0x30] sm:$0xff]
    %v54 = vld [vmem:[#allocation3 + $0x38] sm:$0xff]
    %v55 = vld [vmem:[#allocation3 + $0x40] sm:$0xff]
    %v56 = vld [vmem:[#allocation3 + $0x48] sm:$0xff]
    %v57 = vld [vmem:[#allocation3 + $0x50] sm:$0xff]
    %v58 = vld [vmem:[#allocation3 + $0x58] sm:$0xff]
    %v59 = vld [vmem:[#allocation3 + $0x60] sm:$0xff]
    %v60 = vld [vmem:[#allocation3 + $0x68] sm:$0xff]
    %v61 = vld [vmem:[#allocation3 + $0x70] sm:$0xff]
    %v62 = vld [vmem:[#allocation3 + $0x78] sm:$0xff]
    %v63 = vld [vmem:[#allocation3 + $0x80] sm:$0xff]
    %v64 = vld [vmem:[#allocation3 + $0x88] sm:$0xff]
    %v65 = vld [vmem:[#allocation3 + $0x90] sm:$0xff]
    %v66 = vld [vmem:[#allocation3 + $0x98] sm:$0xff]
    %v67 = vld [vmem:[#allocation3 + $0xa0] sm:$0xff]
    %v68 = vld [vmem:[#allocation3 + $0xa8] sm:$0xff]
    %v69 = vld [vmem:[#allocation3 + $0xb0] sm:$0xff]
    %v70 = vld [vmem:[#allocation3 + $0xb8] sm:$0xff]
    %v71 = vld [vmem:[#allocation6] sm:$0xff]
    %v72 = vld [vmem:[#allocation6 + $0x8] sm:$0xff]
    %v73 = vld [vmem:[#allocation6 + $0x10] sm:$0xff]
    %v74 = vld [vmem:[#allocation6 + $0x18] sm:$0xff]
    %v75 = vld [vmem:[#allocation6 + $0x20] sm:$0xff]
    %v76 = vld [vmem:[#allocation6 + $0x28] sm:$0xff]
    %v77 = vld [vmem:[#allocation6 + $0x30] sm:$0xff]
    %v78 = vld [vmem:[#allocation6 + $0x38] sm:$0xff]
    %v79 = vld [vmem:[#allocation6 + $0x40] sm:$0xff]
    %v80 = vld [vmem:[#allocation6 + $0x48] sm:$0xff]
    %v81 = vld [vmem:[#allocation6 + $0x50] sm:$0xff]
    %v82 = vld [vmem:[#allocation6 + $0x58] sm:$0xff]
    %v83 = vld [vmem:[#allocation6 + $0x60] sm:$0xff]
    %v84 = vld [vmem:[#allocation6 + $0x68] sm:$0xff]
    %v85 = vld [vmem:[#allocation6 + $0x70] sm:$0xff]
    %v86 = vld [vmem:[#allocation6 + $0x78] sm:$0xff]
    %v87 = vld [vmem:[#allocation6 + $0x80] sm:$0xff]
    %v88 = vld [vmem:[#allocation6 + $0x88] sm:$0xff]
    %v89 = vld [vmem:[#allocation6 + $0x90] sm:$0xff]
    %v90 = vld [vmem:[#allocation6 + $0x98] sm:$0xff]
    %v91 = vld [vmem:[#allocation6 + $0xa0] sm:$0xff]
    %v92 = vld [vmem:[#allocation6 + $0xa8] sm:$0xff]
    %v93 = vld [vmem:[#allocation6 + $0xb0] sm:$0xff]
    %v94 = vld [vmem:[#allocation6 + $0xb8] sm:$0xff]
    %v95 = vpack.c.bf16 %v49, %v47
    %v96 = vpack.c.bf16 %v50, %v48
    %v97 = vpack.c.bf16 %v53, %v51
    %v98 = vpack.c.bf16 %v54, %v52
    %v99 = vpack.c.bf16 %v57, %v55
    %v100 = vpack.c.bf16 %v58, %v56
    %v101 = vpack.c.bf16 %v61, %v59
    %v102 = vpack.c.bf16 %v62, %v60
    %v103 = vpack.c.bf16 %v65, %v63
    %v104 = vpack.c.bf16 %v66, %v64
    %v105 = vpack.c.bf16 %v69, %v67
    %v106 = vpack.c.bf16 %v70, %v68
    %107 = vst [vmem:[#allocation2] sm:$0xff] %v95
    %108 = vst [vmem:[#allocation2 + $0x8] sm:$0xff] %v96
    %109 = vst [vmem:[#allocation2 + $0x10] sm:$0xff] %v97
    %110 = vst [vmem:[#allocation2 + $0x18] sm:$0xff] %v98
    %111 = vst [vmem:[#allocation2 + $0x20] sm:$0xff] %v99
    %112 = vst [vmem:[#allocation2 + $0x28] sm:$0xff] %v100
    %113 = vst [vmem:[#allocation2 + $0x30] sm:$0xff] %v101
    %114 = vst [vmem:[#allocation2 + $0x38] sm:$0xff] %v102
    %115 = vst [vmem:[#allocation2 + $0x40] sm:$0xff] %v103
    %116 = vst [vmem:[#allocation2 + $0x48] sm:$0xff] %v104
    %117 = vst [vmem:[#allocation2 + $0x50] sm:$0xff] %v105
    %118 = vst [vmem:[#allocation2 + $0x58] sm:$0xff] %v106
    %v119 = vpack.c.bf16 %v73, %v71
    %v120 = vpack.c.bf16 %v74, %v72
    %v121 = vpack.c.bf16 %v77, %v75
    %v122 = vpack.c.bf16 %v78, %v76
    %v123 = vpack.c.bf16 %v81, %v79
    %v124 = vpack.c.bf16 %v82, %v80
    %v125 = vpack.c.bf16 %v85, %v83
    %v126 = vpack.c.bf16 %v86, %v84
    %v127 = vpack.c.bf16 %v89, %v87
    %v128 = vpack.c.bf16 %v90, %v88
    %v129 = vpack.c.bf16 %v93, %v91
    %v130 = vpack.c.bf16 %v94, %v92
    %131 = vst [vmem:[#allocation2 + $0x60] sm:$0xff] %v119
    %132 = vst [vmem:[#allocation2 + $0x68] sm:$0xff] %v120
    %133 = vst [vmem:[#allocation2 + $0x70] sm:$0xff] %v121
    %134 = vst [vmem:[#allocation2 + $0x78] sm:$0xff] %v122
    %135 = vst [vmem:[#allocation2 + $0x80] sm:$0xff] %v123
    %136 = vst [vmem:[#allocation2 + $0x88] sm:$0xff] %v124
    %137 = vst [vmem:[#allocation2 + $0x90] sm:$0xff] %v125
    %138 = vst [vmem:[#allocation2 + $0x98] sm:$0xff] %v126
    %139 = vst [vmem:[#allocation2 + $0xa0] sm:$0xff] %v127
    %140 = vst [vmem:[#allocation2 + $0xa8] sm:$0xff] %v128
    %141 = vst [vmem:[#allocation2 + $0xb0] sm:$0xff] %v129
    %142 = vst [vmem:[#allocation2 + $0xb8] sm:$0xff] %v130
    %v143 = vmul.f32 %v47, %v47
    %v144 = vmul.f32 %v48, %v48
    %v145 = vmul.f32 %v49, %v49
    %v146 = vmul.f32 %v50, %v50
    %v147 = vmul.f32 %v51, %v51
    %v148 = vmul.f32 %v52, %v52
    %v149 = vmul.f32 %v53, %v53
    %v150 = vmul.f32 %v54, %v54
    %v151 = vmul.f32 %v55, %v55
    %v152 = vmul.f32 %v56, %v56
    %v153 = vmul.f32 %v57, %v57
    %v154 = vmul.f32 %v58, %v58
    %v155 = vmul.f32 %v59, %v59
    %v156 = vmul.f32 %v60, %v60
    %v157 = vmul.f32 %v61, %v61
    %v158 = vmul.f32 %v62, %v62
    %v159 = vmul.f32 %v63, %v63
    %v160 = vmul.f32 %v64, %v64
    %v161 = vmul.f32 %v65, %v65
    %v162 = vmul.f32 %v66, %v66
    %v163 = vmul.f32 %v67, %v67
    %v164 = vmul.f32 %v68, %v68
    %v165 = vmul.f32 %v69, %v69
    %v166 = vmul.f32 %v70, %v70
    %v167 = vpack.c.bf16 %v145, %v143
    %v168 = vpack.c.bf16 %v146, %v144
    %v169 = vpack.c.bf16 %v149, %v147
    %v170 = vpack.c.bf16 %v150, %v148
    %v171 = vpack.c.bf16 %v153, %v151
    %v172 = vpack.c.bf16 %v154, %v152
    %v173 = vpack.c.bf16 %v157, %v155
    %v174 = vpack.c.bf16 %v158, %v156
    %v175 = vpack.c.bf16 %v161, %v159
    %v176 = vpack.c.bf16 %v162, %v160
    %v177 = vpack.c.bf16 %v165, %v163
    %v178 = vpack.c.bf16 %v166, %v164
    %179 = vst [vmem:[#allocation2 + $0xc0] sm:$0xff] %v167
    %180 = vst [vmem:[#allocation2 + $0xc8] sm:$0xff] %v168
    %181 = vst [vmem:[#allocation2 + $0xd0] sm:$0xff] %v169
    %182 = vst [vmem:[#allocation2 + $0xd8] sm:$0xff] %v170
    %183 = vst [vmem:[#allocation2 + $0xe0] sm:$0xff] %v171
    %184 = vst [vmem:[#allocation2 + $0xe8] sm:$0xff] %v172
    %185 = vst [vmem:[#allocation2 + $0xf0] sm:$0xff] %v173
    %186 = vst [vmem:[#allocation2 + $0xf8] sm:$0xff] %v174
    %187 = vst [vmem:[#allocation2 + $0x100] sm:$0xff] %v175
    %188 = vst [vmem:[#allocation2 + $0x108] sm:$0xff] %v176
    %189 = vst [vmem:[#allocation2 + $0x110] sm:$0xff] %v177
    %190 = vst [vmem:[#allocation2 + $0x118] sm:$0xff] %v178
    %v191 = vmul.f32 %v71, %v71
    %v192 = vmul.f32 %v72, %v72
    %v193 = vmul.f32 %v73, %v73
    %v194 = vmul.f32 %v74, %v74
    %v195 = vmul.f32 %v75, %v75
    %v196 = vmul.f32 %v76, %v76
    %v197 = vmul.f32 %v77, %v77
    %v198 = vmul.f32 %v78, %v78
    %v199 = vmul.f32 %v79, %v79
    %v200 = vmul.f32 %v80, %v80
    %v201 = vmul.f32 %v81, %v81
    %v202 = vmul.f32 %v82, %v82
    %v203 = vmul.f32 %v83, %v83
    %v204 = vmul.f32 %v84, %v84
    %v205 = vmul.f32 %v85, %v85
    %v206 = vmul.f32 %v86, %v86
    %v207 = vmul.f32 %v87, %v87
    %v208 = vmul.f32 %v88, %v88
    %v209 = vmul.f32 %v89, %v89
    %v210 = vmul.f32 %v90, %v90
    %v211 = vmul.f32 %v91, %v91
    %v212 = vmul.f32 %v92, %v92
    %v213 = vmul.f32 %v93, %v93
    %v214 = vmul.f32 %v94, %v94
    %v215 = vpack.c.bf16 %v193, %v191
    %v216 = vpack.c.bf16 %v194, %v192
    %v217 = vpack.c.bf16 %v197, %v195
    %v218 = vpack.c.bf16 %v198, %v196
    %v219 = vpack.c.bf16 %v201, %v199
    %v220 = vpack.c.bf16 %v202, %v200
    %v221 = vpack.c.bf16 %v205, %v203
    %v222 = vpack.c.bf16 %v206, %v204
    %v223 = vpack.c.bf16 %v209, %v207
    %v224 = vpack.c.bf16 %v210, %v208
    %v225 = vpack.c.bf16 %v213, %v211
    %v226 = vpack.c.bf16 %v214, %v212
    %227 = vst [vmem:[#allocation2 + $0x120] sm:$0xff] %v215
    %228 = vst [vmem:[#allocation2 + $0x128] sm:$0xff] %v216
    %229 = vst [vmem:[#allocation2 + $0x130] sm:$0xff] %v217
    %230 = vst [vmem:[#allocation2 + $0x138] sm:$0xff] %v218
    %231 = vst [vmem:[#allocation2 + $0x140] sm:$0xff] %v219
    %232 = vst [vmem:[#allocation2 + $0x148] sm:$0xff] %v220
    %233 = vst [vmem:[#allocation2 + $0x150] sm:$0xff] %v221
    %234 = vst [vmem:[#allocation2 + $0x158] sm:$0xff] %v222
    %235 = vst [vmem:[#allocation2 + $0x160] sm:$0xff] %v223
    %236 = vst [vmem:[#allocation2 + $0x168] sm:$0xff] %v224
    %237 = vst [vmem:[#allocation2 + $0x170] sm:$0xff] %v225
    %238 = vst [vmem:[#allocation2 + $0x178] sm:$0xff] %v226
    %v239 = vmul.f32 %v47, %v71
    %v240 = vmul.f32 %v48, %v72
    %v241 = vmul.f32 %v49, %v73
    %v242 = vmul.f32 %v50, %v74
    %v243 = vmul.f32 %v51, %v75
    %v244 = vmul.f32 %v52, %v76
    %v245 = vmul.f32 %v53, %v77
    %v246 = vmul.f32 %v54, %v78
    %v247 = vmul.f32 %v55, %v79
    %v248 = vmul.f32 %v56, %v80
    %v249 = vmul.f32 %v57, %v81
    %v250 = vmul.f32 %v58, %v82
    %v251 = vmul.f32 %v59, %v83
    %v252 = vmul.f32 %v60, %v84
    %v253 = vmul.f32 %v61, %v85
    %v254 = vmul.f32 %v62, %v86
    %v255 = vmul.f32 %v63, %v87
    %v256 = vmul.f32 %v64, %v88
    %v257 = vmul.f32 %v65, %v89
    %v258 = vmul.f32 %v66, %v90
    %v259 = vmul.f32 %v67, %v91
    %v260 = vmul.f32 %v68, %v92
    %v261 = vmul.f32 %v69, %v93
    %v262 = vmul.f32 %v70, %v94
    %v263 = vpack.c.bf16 %v241, %v239
    %v264 = vpack.c.bf16 %v242, %v240
    %v265 = vpack.c.bf16 %v245, %v243
    %v266 = vpack.c.bf16 %v246, %v244
    %v267 = vpack.c.bf16 %v249, %v247
    %v268 = vpack.c.bf16 %v250, %v248
    %v269 = vpack.c.bf16 %v253, %v251
    %v270 = vpack.c.bf16 %v254, %v252
    %v271 = vpack.c.bf16 %v257, %v255
    %v272 = vpack.c.bf16 %v258, %v256
    %v273 = vpack.c.bf16 %v261, %v259
    %v274 = vpack.c.bf16 %v262, %v260
    %275 = vst [vmem:[#allocation2 + $0x180] sm:$0xff] %v263
    %276 = vst [vmem:[#allocation2 + $0x188] sm:$0xff] %v264
    %277 = vst [vmem:[#allocation2 + $0x190] sm:$0xff] %v265
    %278 = vst [vmem:[#allocation2 + $0x198] sm:$0xff] %v266
    %279 = vst [vmem:[#allocation2 + $0x1a0] sm:$0xff] %v267
    %280 = vst [vmem:[#allocation2 + $0x1a8] sm:$0xff] %v268
    %281 = vst [vmem:[#allocation2 + $0x1b0] sm:$0xff] %v269
    %282 = vst [vmem:[#allocation2 + $0x1b8] sm:$0xff] %v270
    %283 = vst [vmem:[#allocation2 + $0x1c0] sm:$0xff] %v271
    %284 = vst [vmem:[#allocation2 + $0x1c8] sm:$0xff] %v272
    %285 = vst [vmem:[#allocation2 + $0x1d0] sm:$0xff] %v273
    %286 = vst [vmem:[#allocation2 + $0x1d8] sm:$0xff] %v274
    %v287 = vld [vmem:[#allocation2] sm:$0xff]
    %v288 = vld [vmem:[#allocation2 + $0x8] sm:$0xff]
    %v289 = vld [vmem:[#allocation2 + $0x10] sm:$0xff]
    %v290 = vld [vmem:[#allocation2 + $0x18] sm:$0xff]
    %v291 = vld [vmem:[#allocation2 + $0x20] sm:$0xff]
    %v292 = vld [vmem:[#allocation2 + $0x28] sm:$0xff]
    %v293 = vld [vmem:[#allocation2 + $0x30] sm:$0xff]
    %v294 = vld [vmem:[#allocation2 + $0x38] sm:$0xff]
    %v295 = vld [vmem:[#allocation2 + $0x40] sm:$0xff]
    %v296 = vld [vmem:[#allocation2 + $0x48] sm:$0xff]
    %v297 = vld [vmem:[#allocation2 + $0x50] sm:$0xff]
    %v298 = vld [vmem:[#allocation2 + $0x58] sm:$0xff]
    %v299 = vld [vmem:[#allocation2 + $0x60] sm:$0xff]
    %v300 = vld [vmem:[#allocation2 + $0x68] sm:$0xff]
    %v301 = vld [vmem:[#allocation2 + $0x70] sm:$0xff]
    %v302 = vld [vmem:[#allocation2 + $0x78] sm:$0xff]
    %v303 = vld [vmem:[#allocation2 + $0x80] sm:$0xff]
    %v304 = vld [vmem:[#allocation2 + $0x88] sm:$0xff]
    %v305 = vld [vmem:[#allocation2 + $0x90] sm:$0xff]
    %v306 = vld [vmem:[#allocation2 + $0x98] sm:$0xff]
    %v307 = vld [vmem:[#allocation2 + $0xa0] sm:$0xff]
    %v308 = vld [vmem:[#allocation2 + $0xa8] sm:$0xff]
    %v309 = vld [vmem:[#allocation2 + $0xb0] sm:$0xff]
    %v310 = vld [vmem:[#allocation2 + $0xb8] sm:$0xff]
    %v311 = vld [vmem:[#allocation2 + $0xc0] sm:$0xff]
    %v312 = vld [vmem:[#allocation2 + $0xc8] sm:$0xff]
    %v313 = vld [vmem:[#allocation2 + $0xd0] sm:$0xff]
    %v314 = vld [vmem:[#allocation2 + $0xd8] sm:$0xff]
    %v315 = vld [vmem:[#allocation2 + $0xe0] sm:$0xff]
    %v316 = vld [vmem:[#allocation2 + $0xe8] sm:$0xff]
    %v317 = vld [vmem:[#allocation2 + $0xf0] sm:$0xff]
    %v318 = vld [vmem:[#allocation2 + $0xf8] sm:$0xff]
    %v319 = vld [vmem:[#allocation2 + $0x100] sm:$0xff]
    %v320 = vld [vmem:[#allocation2 + $0x108] sm:$0xff]
    %v321 = vld [vmem:[#allocation2 + $0x110] sm:$0xff]
    %v322 = vld [vmem:[#allocation2 + $0x118] sm:$0xff]
    %v323 = vld [vmem:[#allocation2 + $0x120] sm:$0xff]
    %v324 = vld [vmem:[#allocation2 + $0x128] sm:$0xff]
    %v325 = vld [vmem:[#allocation2 + $0x130] sm:$0xff]
    %v326 = vld [vmem:[#allocation2 + $0x138] sm:$0xff]
    %v327 = vld [vmem:[#allocation2 + $0x140] sm:$0xff]
    %v328 = vld [vmem:[#allocation2 + $0x148] sm:$0xff]
    %v329 = vld [vmem:[#allocation2 + $0x150] sm:$0xff]
    %v330 = vld [vmem:[#allocation2 + $0x158] sm:$0xff]
    %v331 = vld [vmem:[#allocation2 + $0x160] sm:$0xff]
    %v332 = vld [vmem:[#allocation2 + $0x168] sm:$0xff]
    %v333 = vld [vmem:[#allocation2 + $0x170] sm:$0xff]
    %v334 = vld [vmem:[#allocation2 + $0x178] sm:$0xff]
    %v335 = vld [vmem:[#allocation2 + $0x180] sm:$0xff]
    %v336 = vld [vmem:[#allocation2 + $0x188] sm:$0xff]
    %v337 = vld [vmem:[#allocation2 + $0x190] sm:$0xff]
    %v338 = vld [vmem:[#allocation2 + $0x198] sm:$0xff]
    %v339 = vld [vmem:[#allocation2 + $0x1a0] sm:$0xff]
    %v340 = vld [vmem:[#allocation2 + $0x1a8] sm:$0xff]
    %v341 = vld [vmem:[#allocation2 + $0x1b0] sm:$0xff]
    %v342 = vld [vmem:[#allocation2 + $0x1b8] sm:$0xff]
    %v343 = vld [vmem:[#allocation2 + $0x1c0] sm:$0xff]
    %v344 = vld [vmem:[#allocation2 + $0x1c8] sm:$0xff]
    %v345 = vld [vmem:[#allocation2 + $0x1d0] sm:$0xff]
    %v346 = vld [vmem:[#allocation2 + $0x1d8] sm:$0xff]
    %v347 = vld [vmem:[%s2] sm:$0xff]
    %v348 = vld [vmem:[%s2 + $0x8] sm:$0xff]
    %v349 = vld [vmem:[%s2 + $0x10] sm:$0xff]
    %v350 = vld [vmem:[%s2 + $0x18] sm:$0xff]
    %v351 = vld [vmem:[%s2 + $0x20] sm:$0xff]
    %v352 = vld [vmem:[%s2 + $0x28] sm:$0xff]
    %v353 = vld [vmem:[%s2 + $0x30] sm:$0xff]
    %v354 = vld [vmem:[%s2 + $0x38] sm:$0xff]
    %v355 = vld [vmem:[%s2 + $0x40] sm:$0xff]
    %v356 = vld [vmem:[%s2 + $0x48] sm:$0xff]
    %v357 = vld [vmem:[%s2 + $0x50] sm:$0xff]
    %v358 = vld [vmem:[%s2 + $0x58] sm:$0xff]
    %v359 = vld [vmem:[%s2 + $0x60] sm:$0xff]
    %v360 = vld [vmem:[%s2 + $0x68] sm:$0xff]
    %v361 = vld [vmem:[%s2 + $0x70] sm:$0xff]
    %v362 = vld [vmem:[%s2 + $0x78] sm:$0xff]
    %v363 = vld [vmem:[%s2 + $0x80] sm:$0xff]
    %v364 = vld [vmem:[%s2 + $0x88] sm:$0xff]
    %v365 = vld [vmem:[%s2 + $0x90] sm:$0xff]
    %v366 = vld [vmem:[%s2 + $0x98] sm:$0xff]
    %v367 = vld [vmem:[%s2 + $0xa0] sm:$0xff]
    %v368 = vld [vmem:[%s2 + $0xa8] sm:$0xff]
    %v369 = vld [vmem:[%s2 + $0xb0] sm:$0xff]
    %v370 = vld [vmem:[%s2 + $0xb8] sm:$0xff]
    %v371 = vld [vmem:[%s2 + $0xc0] sm:$0xff]
    %v372 = vld [vmem:[%s2 + $0xc8] sm:$0xff]
    %v373 = vld [vmem:[%s2 + $0xd0] sm:$0xff]
    %v374 = vld [vmem:[%s2 + $0xd8] sm:$0xff]
    %v375 = vld [vmem:[%s2 + $0xe0] sm:$0xff]
    %v376 = vld [vmem:[%s2 + $0xe8] sm:$0xff]
    %v377 = vld [vmem:[%s2 + $0xf0] sm:$0xff]
    %v378 = vld [vmem:[%s2 + $0xf8] sm:$0xff]
    %v411 = vunpack.c.l.b16 %v347
    %v412 = vunpack.c.h.b16 %v347
    %v413 = vunpack.c.l.b16 %v348
    %v414 = vunpack.c.h.b16 %v348
    %v415 = vunpack.c.l.b16 %v349
    %v416 = vunpack.c.h.b16 %v349
    %v417 = vunpack.c.l.b16 %v350
    %v418 = vunpack.c.h.b16 %v350
    %v419 = vunpack.c.l.b16 %v351
    %v420 = vunpack.c.h.b16 %v351
    %v421 = vunpack.c.l.b16 %v352
    %v422 = vunpack.c.h.b16 %v352
    %v423 = vunpack.c.l.b16 %v353
    %v424 = vunpack.c.h.b16 %v353
    %v425 = vunpack.c.l.b16 %v354
    %v426 = vunpack.c.h.b16 %v354
    %v427 = vunpack.c.l.b16 %v355
    %v428 = vunpack.c.h.b16 %v355
    %v429 = vunpack.c.l.b16 %v356
    %v430 = vunpack.c.h.b16 %v356
    %v431 = vunpack.c.l.b16 %v357
    %v432 = vunpack.c.h.b16 %v357
    %v433 = vunpack.c.l.b16 %v358
    %v434 = vunpack.c.h.b16 %v358
    %v435 = vunpack.c.l.b16 %v359
    %v436 = vunpack.c.h.b16 %v359
    %v437 = vunpack.c.l.b16 %v360
    %v438 = vunpack.c.h.b16 %v360
    %v439 = vunpack.c.l.b16 %v361
    %v440 = vunpack.c.h.b16 %v361
    %v441 = vunpack.c.l.b16 %v362
    %v442 = vunpack.c.h.b16 %v362
    %v443 = vunpack.c.l.b16 %v363
    %v444 = vunpack.c.h.b16 %v363
    %v445 = vunpack.c.l.b16 %v364
    %v446 = vunpack.c.h.b16 %v364
    %v447 = vunpack.c.l.b16 %v365
    %v448 = vunpack.c.h.b16 %v365
    %v449 = vunpack.c.l.b16 %v366
    %v450 = vunpack.c.h.b16 %v366
    %v451 = vunpack.c.l.b16 %v367
    %v452 = vunpack.c.h.b16 %v367
    %v453 = vunpack.c.l.b16 %v368
    %v454 = vunpack.c.h.b16 %v368
    %v455 = vunpack.c.l.b16 %v369
    %v456 = vunpack.c.h.b16 %v369
    %v457 = vunpack.c.l.b16 %v370
    %v458 = vunpack.c.h.b16 %v370
    %v459 = vunpack.c.l.b16 %v371
    %v460 = vunpack.c.h.b16 %v371
    %v461 = vunpack.c.l.b16 %v372
    %v462 = vunpack.c.h.b16 %v372
    %v463 = vunpack.c.l.b16 %v373
    %v464 = vunpack.c.h.b16 %v373
    %v465 = vunpack.c.l.b16 %v374
    %v466 = vunpack.c.h.b16 %v374
    %v467 = vunpack.c.l.b16 %v375
    %v468 = vunpack.c.h.b16 %v375
    %v469 = vunpack.c.l.b16 %v376
    %v470 = vunpack.c.h.b16 %v376
    %v471 = vunpack.c.l.b16 %v377
    %v472 = vunpack.c.h.b16 %v377
    %v473 = vunpack.c.l.b16 %v378
    %v474 = vunpack.c.h.b16 %v378
    %v475 = vpack.c.b16 %v413, %v411
    %v476 = vpack.c.b16 %v414, %v412
    %v477 = vpack.c.b16 %v417, %v415
    %v478 = vpack.c.b16 %v418, %v416
    %v479 = vpack.c.b16 %v421, %v419
    %v480 = vpack.c.b16 %v422, %v420
    %v481 = vpack.c.b16 %v425, %v423
    %v482 = vpack.c.b16 %v426, %v424
    %v483 = vpack.c.b16 %v429, %v427
    %v484 = vpack.c.b16 %v430, %v428
    %v485 = vpack.c.b16 %v433, %v431
    %v486 = vpack.c.b16 %v434, %v432
    %v487 = vpack.c.b16 %v437, %v435
    %v488 = vpack.c.b16 %v438, %v436
    %v489 = vpack.c.b16 %v441, %v439
    %v490 = vpack.c.b16 %v442, %v440
    %v491 = vpack.c.b16 %v445, %v443
    %v492 = vpack.c.b16 %v446, %v444
    %v493 = vpack.c.b16 %v449, %v447
    %v494 = vpack.c.b16 %v450, %v448
    %v495 = vpack.c.b16 %v453, %v451
    %v496 = vpack.c.b16 %v454, %v452
    %v497 = vpack.c.b16 %v457, %v455
    %v498 = vpack.c.b16 %v458, %v456
    %v499 = vpack.c.b16 %v461, %v459
    %v500 = vpack.c.b16 %v462, %v460
    %v501 = vpack.c.b16 %v465, %v463
    %v502 = vpack.c.b16 %v466, %v464
    %v503 = vpack.c.b16 %v469, %v467
    %v504 = vpack.c.b16 %v470, %v468
    %v505 = vpack.c.b16 %v473, %v471
    %v506 = vpack.c.b16 %v474, %v472
    %539 = vmatprep.subr.bf16.mxu0 %v476
    %540 = vmatpush1.bf16.msra.mxu0 %v475
    %541 = vmatprep.subr.bf16.mxu0 %v478
    %542 = vmatpush1.bf16.msra.mxu0 %v477
    %543 = vmatprep.subr.bf16.mxu0 %v480
    %544 = vmatpush1.bf16.msra.mxu0 %v479
    %545 = vmatprep.subr.bf16.mxu0 %v482
    %546 = vmatpush1.bf16.msra.mxu0 %v481
    %547 = vmatprep.subr.bf16.mxu0 %v484
    %548 = vmatpush1.bf16.msra.mxu0 %v483
    %549 = vmatprep.subr.bf16.mxu0 %v486
    %550 = vmatpush1.bf16.msra.mxu0 %v485
    %551 = vmatprep.subr.bf16.mxu0 %v488
    %552 = vmatpush1.bf16.msra.mxu0 %v487
    %553 = vmatprep.subr.bf16.mxu0 %v490
    %554 = vmatpush1.bf16.msra.mxu0 %v489
    %555 = vmatprep.subr.bf16.mxu0 %v492
    %556 = vmatpush1.bf16.msra.mxu0 %v491
    %557 = vmatprep.subr.bf16.mxu0 %v494
    %558 = vmatpush1.bf16.msra.mxu0 %v493
    %559 = vmatprep.subr.bf16.mxu0 %v496
    %560 = vmatpush1.bf16.msra.mxu0 %v495
    %561 = vmatprep.subr.bf16.mxu0 %v498
    %562 = vmatpush1.bf16.msra.mxu0 %v497
    %563 = vmatprep.subr.bf16.mxu0 %v500
    %564 = vmatpush1.bf16.msra.mxu0 %v499
    %565 = vmatprep.subr.bf16.mxu0 %v502
    %566 = vmatpush1.bf16.msra.mxu0 %v501
    %567 = vmatprep.subr.bf16.mxu0 %v504
    %568 = vmatpush1.bf16.msra.mxu0 %v503
    %569 = vmatprep.subr.bf16.mxu0 %v506
    %570 = vmatpush1.bf16.msra.mxu0 %v505
    %571 = vmatprep.mubr.bf16.mxu0 %v288
    %572 = vmatmul.mubr.bf16.gmra.mrb[0].mxu0 %v287
    %v573 = vpop.f32.mrb[0].mxu0
    %v574 = vadd.f32 0.0, %v573
    %v575 = vpop.f32.mrb[0].mxu0
    %v576 = vadd.f32 0.0, %v575
    %v577 = vpop.f32.mrb[0].mxu0
    %v578 = vadd.f32 0.0, %v577
    %v579 = vpop.f32.mrb[0].mxu0
    %v580 = vadd.f32 0.0, %v579
    %581 = vmatprep.mubr.bf16.mxu0 %v290
    %582 = vmatmul.mubr.bf16.gmra.mrb[0].mxu0 %v289
    %v583 = vpop.f32.mrb[0].mxu0
    %v584 = vadd.f32 0.0, %v583
    %v585 = vpop.f32.mrb[0].mxu0
    %v586 = vadd.f32 0.0, %v585
    %v587 = vpop.f32.mrb[0].mxu0
    %v588 = vadd.f32 0.0, %v587
    %v589 = vpop.f32.mrb[0].mxu0
    %v590 = vadd.f32 0.0, %v589
    %591 = vmatprep.mubr.bf16.mxu0 %v292
    %592 = vmatmul.mubr.bf16.gmra.mrb[0].mxu0 %v291
    %v593 = vpop.f32.mrb[0].mxu0
    %v594 = vadd.f32 0.0, %v593
    %v595 = vpop.f32.mrb[0].mxu0
    %v596 = vadd.f32 0.0, %v595
    %v597 = vpop.f32.mrb[0].mxu0
    %v598 = vadd.f32 0.0, %v597
    %v599 = vpop.f32.mrb[0].mxu0
    %v600 = vadd.f32 0.0, %v599
    %601 = vmatprep.mubr.bf16.mxu0 %v294
    %602 = vmatmul.mubr.bf16.gmra.mrb[0].mxu0 %v293
    %v603 = vpop.f32.mrb[0].mxu0
    %v604 = vadd.f32 0.0, %v603
    %v605 = vpop.f32.mrb[0].mxu0
    %v606 = vadd.f32 0.0, %v605
    %v607 = vpop.f32.mrb[0].mxu0
    %v608 = vadd.f32 0.0, %v607
    %v609 = vpop.f32.mrb[0].mxu0
    %v610 = vadd.f32 0.0, %v609
    %611 = vmatprep.mubr.bf16.mxu0 %v296
    %612 = vmatmul.mubr.bf16.gmra.mrb[0].mxu0 %v295
    %v613 = vpop.f32.mrb[0].mxu0
    %v614 = vadd.f32 0.0, %v613
    %v615 = vpop.f32.mrb[0].mxu0
    %v616 = vadd.f32 0.0, %v615
    %v617 = vpop.f32.mrb[0].mxu0
    %v618 = vadd.f32 0.0, %v617
    %v619 = vpop.f32.mrb[0].mxu0
    %v620 = vadd.f32 0.0, %v619
    %621 = vmatprep.mubr.bf16.mxu0 %v298
    %622 = vmatmul.mubr.bf16.gmra.mrb[0].mxu0 %v297
    %v623 = vpop.f32.mrb[0].mxu0
    %v624 = vadd.f32 0.0, %v623
    %v625 = vpop.f32.mrb[0].mxu0
    %v626 = vadd.f32 0.0, %v625
    %v627 = vpop.f32.mrb[0].mxu0
    %v628 = vadd.f32 0.0, %v627
    %v629 = vpop.f32.mrb[0].mxu0
    %v630 = vadd.f32 0.0, %v629
    %631 = vmatprep.mubr.bf16.mxu0 %v300
    %632 = vmatmul.mubr.bf16.gmra.mrb[0].mxu0 %v299
    %v633 = vpop.f32.mrb[0].mxu0
    %v634 = vadd.f32 0.0, %v633
    %v635 = vpop.f32.mrb[0].mxu0
    %v636 = vadd.f32 0.0, %v635
    %v637 = vpop.f32.mrb[0].mxu0
    %v638 = vadd.f32 0.0, %v637
    %v639 = vpop.f32.mrb[0].mxu0
    %v640 = vadd.f32 0.0, %v639
    %641 = vmatprep.mubr.bf16.mxu0 %v302
    %642 = vmatmul.mubr.bf16.gmra.mrb[0].mxu0 %v301
    %v643 = vpop.f32.mrb[0].mxu0
    %v644 = vadd.f32 0.0, %v643
    %v645 = vpop.f32.mrb[0].mxu0
    %v646 = vadd.f32 0.0, %v645
    %v647 = vpop.f32.mrb[0].mxu0
    %v648 = vadd.f32 0.0, %v647
    %v649 = vpop.f32.mrb[0].mxu0
    %v650 = vadd.f32 0.0, %v649
    %651 = vmatprep.mubr.bf16.mxu0 %v304
    %652 = vmatmul.mubr.bf16.gmra.mrb[0].mxu0 %v303
    %v653 = vpop.f32.mrb[0].mxu0
    %v654 = vadd.f32 0.0, %v653
    %v655 = vpop.f32.mrb[0].mxu0
    %v656 = vadd.f32 0.0, %v655
    %v657 = vpop.f32.mrb[0].mxu0
    %v658 = vadd.f32 0.0, %v657
    %v659 = vpop.f32.mrb[0].mxu0
    %v660 = vadd.f32 0.0, %v659
    %661 = vmatprep.mubr.bf16.mxu0 %v306
    %662 = vmatmul.mubr.bf16.gmra.mrb[0].mxu0 %v305
    %v663 = vpop.f32.mrb[0].mxu0
    %v664 = vadd.f32 0.0, %v663
    %v665 = vpop.f32.mrb[0].mxu0
    %v666 = vadd.f32 0.0, %v665
    %v667 = vpop.f32.mrb[0].mxu0
    %v668 = vadd.f32 0.0, %v667
    %v669 = vpop.f32.mrb[0].mxu0
    %v670 = vadd.f32 0.0, %v669
    %671 = vmatprep.mubr.bf16.mxu0 %v308
    %672 = vmatmul.mubr.bf16.gmra.mrb[0].mxu0 %v307
    %v673 = vpop.f32.mrb[0].mxu0
    %v674 = vadd.f32 0.0, %v673
    %v675 = vpop.f32.mrb[0].mxu0
    %v676 = vadd.f32 0.0, %v675
    %v677 = vpop.f32.mrb[0].mxu0
    %v678 = vadd.f32 0.0, %v677
    %v679 = vpop.f32.mrb[0].mxu0
    %v680 = vadd.f32 0.0, %v679
    %681 = vmatprep.mubr.bf16.mxu0 %v310
    %682 = vmatmul.mubr.bf16.gmra.mrb[0].mxu0 %v309
    %v683 = vpop.f32.mrb[0].mxu0
    %v684 = vadd.f32 0.0, %v683
    %v685 = vpop.f32.mrb[0].mxu0
    %v686 = vadd.f32 0.0, %v685
    %v687 = vpop.f32.mrb[0].mxu0
    %v688 = vadd.f32 0.0, %v687
    %v689 = vpop.f32.mrb[0].mxu0
    %v690 = vadd.f32 0.0, %v689
    %691 = vmatprep.mubr.bf16.mxu0 %v312
    %692 = vmatmul.mubr.bf16.gmra.mrb[0].mxu0 %v311
    %v693 = vpop.f32.mrb[0].mxu0
    %v694 = vadd.f32 0.0, %v693
    %v695 = vpop.f32.mrb[0].mxu0
    %v696 = vadd.f32 0.0, %v695
    %v697 = vpop.f32.mrb[0].mxu0
    %v698 = vadd.f32 0.0, %v697
    %v699 = vpop.f32.mrb[0].mxu0
    %v700 = vadd.f32 0.0, %v699
    %701 = vmatprep.mubr.bf16.mxu0 %v314
    %702 = vmatmul.mubr.bf16.gmra.mrb[0].mxu0 %v313
    %v703 = vpop.f32.mrb[0].mxu0
    %v704 = vadd.f32 0.0, %v703
    %v705 = vpop.f32.mrb[0].mxu0
    %v706 = vadd.f32 0.0, %v705
    %v707 = vpop.f32.mrb[0].mxu0
    %v708 = vadd.f32 0.0, %v707
    %v709 = vpop.f32.mrb[0].mxu0
    %v710 = vadd.f32 0.0, %v709
    %711 = vmatprep.mubr.bf16.mxu0 %v316
    %712 = vmatmul.mubr.bf16.gmra.mrb[0].mxu0 %v315
    %v713 = vpop.f32.mrb[0].mxu0
    %v714 = vadd.f32 0.0, %v713
    %v715 = vpop.f32.mrb[0].mxu0
    %v716 = vadd.f32 0.0, %v715
    %v717 = vpop.f32.mrb[0].mxu0
    %v718 = vadd.f32 0.0, %v717
    %v719 = vpop.f32.mrb[0].mxu0
    %v720 = vadd.f32 0.0, %v719
    %721 = vmatprep.mubr.bf16.mxu0 %v318
    %722 = vmatmul.mubr.bf16.gmra.mrb[0].mxu0 %v317
    %v723 = vpop.f32.mrb[0].mxu0
    %v724 = vadd.f32 0.0, %v723
    %v725 = vpop.f32.mrb[0].mxu0
    %v726 = vadd.f32 0.0, %v725
    %v727 = vpop.f32.mrb[0].mxu0
    %v728 = vadd.f32 0.0, %v727
    %v729 = vpop.f32.mrb[0].mxu0
    %v730 = vadd.f32 0.0, %v729
    %731 = vmatprep.mubr.bf16.mxu0 %v320
    %732 = vmatmul.mubr.bf16.gmra.mrb[0].mxu0 %v319
    %v733 = vpop.f32.mrb[0].mxu0
    %v734 = vadd.f32 0.0, %v733
    %v735 = vpop.f32.mrb[0].mxu0
    %v736 = vadd.f32 0.0, %v735
    %v737 = vpop.f32.mrb[0].mxu0
    %v738 = vadd.f32 0.0, %v737
    %v739 = vpop.f32.mrb[0].mxu0
    %v740 = vadd.f32 0.0, %v739
    %741 = vmatprep.mubr.bf16.mxu0 %v322
    %742 = vmatmul.mubr.bf16.gmra.mrb[0].mxu0 %v321
    %v743 = vpop.f32.mrb[0].mxu0
    %v744 = vadd.f32 0.0, %v743
    %v745 = vpop.f32.mrb[0].mxu0
    %v746 = vadd.f32 0.0, %v745
    %v747 = vpop.f32.mrb[0].mxu0
    %v748 = vadd.f32 0.0, %v747
    %v749 = vpop.f32.mrb[0].mxu0
    %v750 = vadd.f32 0.0, %v749
    %751 = vmatprep.mubr.bf16.mxu0 %v324
    %752 = vmatmul.mubr.bf16.gmra.mrb[0].mxu0 %v323
    %v753 = vpop.f32.mrb[0].mxu0
    %v754 = vadd.f32 0.0, %v753
    %v755 = vpop.f32.mrb[0].mxu0
    %v756 = vadd.f32 0.0, %v755
    %v757 = vpop.f32.mrb[0].mxu0
    %v758 = vadd.f32 0.0, %v757
    %v759 = vpop.f32.mrb[0].mxu0
    %v760 = vadd.f32 0.0, %v759
    %761 = vmatprep.mubr.bf16.mxu0 %v326
    %762 = vmatmul.mubr.bf16.gmra.mrb[0].mxu0 %v325
    %v763 = vpop.f32.mrb[0].mxu0
    %v764 = vadd.f32 0.0, %v763
    %v765 = vpop.f32.mrb[0].mxu0
    %v766 = vadd.f32 0.0, %v765
    %v767 = vpop.f32.mrb[0].mxu0
    %v768 = vadd.f32 0.0, %v767
    %v769 = vpop.f32.mrb[0].mxu0
    %v770 = vadd.f32 0.0, %v769
    %771 = vmatprep.mubr.bf16.mxu0 %v328
    %772 = vmatmul.mubr.bf16.gmra.mrb[0].mxu0 %v327
    %v773 = vpop.f32.mrb[0].mxu0
    %v774 = vadd.f32 0.0, %v773
    %v775 = vpop.f32.mrb[0].mxu0
    %v776 = vadd.f32 0.0, %v775
    %v777 = vpop.f32.mrb[0].mxu0
    %v778 = vadd.f32 0.0, %v777
    %v779 = vpop.f32.mrb[0].mxu0
    %v780 = vadd.f32 0.0, %v779
    %781 = vmatprep.mubr.bf16.mxu0 %v330
    %782 = vmatmul.mubr.bf16.gmra.mrb[0].mxu0 %v329
    %v783 = vpop.f32.mrb[0].mxu0
    %v784 = vadd.f32 0.0, %v783
    %v785 = vpop.f32.mrb[0].mxu0
    %v786 = vadd.f32 0.0, %v785
    %v787 = vpop.f32.mrb[0].mxu0
    %v788 = vadd.f32 0.0, %v787
    %v789 = vpop.f32.mrb[0].mxu0
    %v790 = vadd.f32 0.0, %v789
    %791 = vmatprep.mubr.bf16.mxu0 %v332
    %792 = vmatmul.mubr.bf16.gmra.mrb[0].mxu0 %v331
    %v793 = vpop.f32.mrb[0].mxu0
    %v794 = vadd.f32 0.0, %v793
    %v795 = vpop.f32.mrb[0].mxu0
    %v796 = vadd.f32 0.0, %v795
    %v797 = vpop.f32.mrb[0].mxu0
    %v798 = vadd.f32 0.0, %v797
    %v799 = vpop.f32.mrb[0].mxu0
    %v800 = vadd.f32 0.0, %v799
    %801 = vmatprep.mubr.bf16.mxu0 %v334
    %802 = vmatmul.mubr.bf16.gmra.mrb[0].mxu0 %v333
    %v803 = vpop.f32.mrb[0].mxu0
    %v804 = vadd.f32 0.0, %v803
    %v805 = vpop.f32.mrb[0].mxu0
    %v806 = vadd.f32 0.0, %v805
    %v807 = vpop.f32.mrb[0].mxu0
    %v808 = vadd.f32 0.0, %v807
    %v809 = vpop.f32.mrb[0].mxu0
    %v810 = vadd.f32 0.0, %v809
    %811 = vmatprep.mubr.bf16.mxu0 %v336
    %812 = vmatmul.mubr.bf16.gmra.mrb[0].mxu0 %v335
    %v813 = vpop.f32.mrb[0].mxu0
    %v814 = vadd.f32 0.0, %v813
    %v815 = vpop.f32.mrb[0].mxu0
    %v816 = vadd.f32 0.0, %v815
    %v817 = vpop.f32.mrb[0].mxu0
    %v818 = vadd.f32 0.0, %v817
    %v819 = vpop.f32.mrb[0].mxu0
    %v820 = vadd.f32 0.0, %v819
    %821 = vmatprep.mubr.bf16.mxu0 %v338
    %822 = vmatmul.mubr.bf16.gmra.mrb[0].mxu0 %v337
    %v823 = vpop.f32.mrb[0].mxu0
    %v824 = vadd.f32 0.0, %v823
    %v825 = vpop.f32.mrb[0].mxu0
    %v826 = vadd.f32 0.0, %v825
    %v827 = vpop.f32.mrb[0].mxu0
    %v828 = vadd.f32 0.0, %v827
    %v829 = vpop.f32.mrb[0].mxu0
    %v830 = vadd.f32 0.0, %v829
    %831 = vmatprep.mubr.bf16.mxu0 %v340
    %832 = vmatmul.mubr.bf16.gmra.mrb[0].mxu0 %v339
    %v833 = vpop.f32.mrb[0].mxu0
    %v834 = vadd.f32 0.0, %v833
    %v835 = vpop.f32.mrb[0].mxu0
    %v836 = vadd.f32 0.0, %v835
    %v837 = vpop.f32.mrb[0].mxu0
    %v838 = vadd.f32 0.0, %v837
    %v839 = vpop.f32.mrb[0].mxu0
    %v840 = vadd.f32 0.0, %v839
    %841 = vmatprep.mubr.bf16.mxu0 %v342
    %842 = vmatmul.mubr.bf16.gmra.mrb[0].mxu0 %v341
    %v843 = vpop.f32.mrb[0].mxu0
    %v844 = vadd.f32 0.0, %v843
    %v845 = vpop.f32.mrb[0].mxu0
    %v846 = vadd.f32 0.0, %v845
    %v847 = vpop.f32.mrb[0].mxu0
    %v848 = vadd.f32 0.0, %v847
    %v849 = vpop.f32.mrb[0].mxu0
    %v850 = vadd.f32 0.0, %v849
    %851 = vmatprep.mubr.bf16.mxu0 %v344
    %852 = vmatmul.mubr.bf16.gmra.mrb[0].mxu0 %v343
    %v853 = vpop.f32.mrb[0].mxu0
    %v854 = vadd.f32 0.0, %v853
    %v855 = vpop.f32.mrb[0].mxu0
    %v856 = vadd.f32 0.0, %v855
    %v857 = vpop.f32.mrb[0].mxu0
    %v858 = vadd.f32 0.0, %v857
    %v859 = vpop.f32.mrb[0].mxu0
    %v860 = vadd.f32 0.0, %v859
    %861 = vmatprep.mubr.bf16.mxu0 %v346
    %862 = vmatmul.mubr.bf16.gmra.mrb[0].mxu0 %v345
    %v863 = vpop.f32.mrb[0].mxu0
    %v864 = vadd.f32 0.0, %v863
    %v865 = vpop.f32.mrb[0].mxu0
    %v866 = vadd.f32 0.0, %v865
    %v867 = vpop.f32.mrb[0].mxu0
    %v868 = vadd.f32 0.0, %v867
    %v869 = vpop.f32.mrb[0].mxu0
    %v870 = vadd.f32 0.0, %v869
    %871 = vdwg.mxu0
    %v872 = vpack.c.bf16 %v578, %v574
    %v873 = vpack.c.bf16 %v580, %v576
    %v874 = vpack.c.bf16 %v588, %v584
    %v875 = vpack.c.bf16 %v590, %v586
    %v876 = vpack.c.bf16 %v598, %v594
    %v877 = vpack.c.bf16 %v600, %v596
    %v878 = vpack.c.bf16 %v608, %v604
    %v879 = vpack.c.bf16 %v610, %v606
    %v880 = vpack.c.bf16 %v618, %v614
    %v881 = vpack.c.bf16 %v620, %v616
    %v882 = vpack.c.bf16 %v628, %v624
    %v883 = vpack.c.bf16 %v630, %v626
    %v884 = vpack.c.bf16 %v638, %v634
    %v885 = vpack.c.bf16 %v640, %v636
    %v886 = vpack.c.bf16 %v648, %v644
    %v887 = vpack.c.bf16 %v650, %v646
    %v888 = vpack.c.bf16 %v658, %v654
    %v889 = vpack.c.bf16 %v660, %v656
    %v890 = vpack.c.bf16 %v668, %v664
    %v891 = vpack.c.bf16 %v670, %v666
    %v892 = vpack.c.bf16 %v678, %v674
    %v893 = vpack.c.bf16 %v680, %v676
    %v894 = vpack.c.bf16 %v688, %v684
    %v895 = vpack.c.bf16 %v690, %v686
    %v896 = vpack.c.bf16 %v698, %v694
    %v897 = vpack.c.bf16 %v700, %v696
    %v898 = vpack.c.bf16 %v708, %v704
    %v899 = vpack.c.bf16 %v710, %v706
    %v900 = vpack.c.bf16 %v718, %v714
    %v901 = vpack.c.bf16 %v720, %v716
    %v902 = vpack.c.bf16 %v728, %v724
    %v903 = vpack.c.bf16 %v730, %v726
    %v904 = vpack.c.bf16 %v738, %v734
    %v905 = vpack.c.bf16 %v740, %v736
    %v906 = vpack.c.bf16 %v748, %v744
    %v907 = vpack.c.bf16 %v750, %v746
    %v908 = vpack.c.bf16 %v758, %v754
    %v909 = vpack.c.bf16 %v760, %v756
    %v910 = vpack.c.bf16 %v768, %v764
    %v911 = vpack.c.bf16 %v770, %v766
    %v912 = vpack.c.bf16 %v778, %v774
    %v913 = vpack.c.bf16 %v780, %v776
    %v914 = vpack.c.bf16 %v788, %v784
    %v915 = vpack.c.bf16 %v790, %v786
    %v916 = vpack.c.bf16 %v798, %v794
    %v917 = vpack.c.bf16 %v800, %v796
    %v918 = vpack.c.bf16 %v808, %v804
    %v919 = vpack.c.bf16 %v810, %v806
    %v920 = vpack.c.bf16 %v818, %v814
    %v921 = vpack.c.bf16 %v820, %v816
    %v922 = vpack.c.bf16 %v828, %v824
    %v923 = vpack.c.bf16 %v830, %v826
    %v924 = vpack.c.bf16 %v838, %v834
    %v925 = vpack.c.bf16 %v840, %v836
    %v926 = vpack.c.bf16 %v848, %v844
    %v927 = vpack.c.bf16 %v850, %v846
    %v928 = vpack.c.bf16 %v858, %v854
    %v929 = vpack.c.bf16 %v860, %v856
    %v930 = vpack.c.bf16 %v868, %v864
    %v931 = vpack.c.bf16 %v870, %v866
    %v932 = vld [vmem:[%s3] sm:$0xf]
    %v933 = vld [vmem:[%s3 + $0x4] sm:$0xf]
    %v934 = vld [vmem:[%s3 + $0x8] sm:$0xf]
    %v935 = vld [vmem:[%s3 + $0xc] sm:$0xf]
    %v936 = vld [vmem:[%s3 + $0x10] sm:$0xf]
    %v937 = vld [vmem:[%s3 + $0x14] sm:$0xf]
    %v938 = vld [vmem:[%s3 + $0x18] sm:$0xf]
    %v939 = vld [vmem:[%s3 + $0x1c] sm:$0xf]
    %v940 = vld [vmem:[%s3 + $0x20] sm:$0xf]
    %v941 = vld [vmem:[%s3 + $0x24] sm:$0xf]
    %v942 = vld [vmem:[%s3 + $0x28] sm:$0xf]
    %v943 = vld [vmem:[%s3 + $0x2c] sm:$0xf]
    %v944 = vld [vmem:[%s3 + $0x30] sm:$0xf]
    %v945 = vld [vmem:[%s3 + $0x34] sm:$0xf]
    %v946 = vld [vmem:[%s3 + $0x38] sm:$0xf]
    %v947 = vld [vmem:[%s3 + $0x3c] sm:$0xf]
    %v948 = vld [vmem:[%s3 + $0x40] sm:$0xf]
    %v949 = vld [vmem:[%s3 + $0x44] sm:$0xf]
    %v950 = vld [vmem:[%s3 + $0x48] sm:$0xf]
    %v951 = vld [vmem:[%s3 + $0x4c] sm:$0xf]
    %v952 = vld [vmem:[%s3 + $0x50] sm:$0xf]
    %v953 = vld [vmem:[%s3 + $0x54] sm:$0xf]
    %v954 = vld [vmem:[%s3 + $0x58] sm:$0xf]
    %v955 = vld [vmem:[%s3 + $0x5c] sm:$0xf]
    %v956 = vld [vmem:[%s3 + $0x60] sm:$0xf]
    %v957 = vld [vmem:[%s3 + $0x64] sm:$0xf]
    %v958 = vld [vmem:[%s3 + $0x68] sm:$0xf]
    %v959 = vld [vmem:[%s3 + $0x6c] sm:$0xf]
    %v960 = vld [vmem:[%s3 + $0x70] sm:$0xf]
    %v961 = vld [vmem:[%s3 + $0x74] sm:$0xf]
    %v962 = vld [vmem:[%s3 + $0x78] sm:$0xf]
    %v963 = vld [vmem:[%s3 + $0x7c] sm:$0xf]
    %v964 = vld [vmem:[%s3 + $0x80] sm:$0xf]
    %v965 = vld [vmem:[%s3 + $0x84] sm:$0xf]
    %v966 = vld [vmem:[%s3 + $0x88] sm:$0xf]
    %v967 = vld [vmem:[%s3 + $0x8c] sm:$0xf]
    %v968 = vld [vmem:[%s3 + $0x90] sm:$0xf]
    %v969 = vld [vmem:[%s3 + $0x94] sm:$0xf]
    %v970 = vld [vmem:[%s3 + $0x98] sm:$0xf]
    %v971 = vld [vmem:[%s3 + $0x9c] sm:$0xf]
    %v972 = vld [vmem:[%s3 + $0xa0] sm:$0xf]
    %v973 = vld [vmem:[%s3 + $0xa4] sm:$0xf]
    %v974 = vld [vmem:[%s3 + $0xa8] sm:$0xf]
    %v975 = vld [vmem:[%s3 + $0xac] sm:$0xf]
    %v976 = vld [vmem:[%s3 + $0xb0] sm:$0xf]
    %v977 = vld [vmem:[%s3 + $0xb4] sm:$0xf]
    %v978 = vld [vmem:[%s3 + $0xb8] sm:$0xf]
    %v979 = vld [vmem:[%s3 + $0xbc] sm:$0xf]
    %v980 = vld [vmem:[%s3 + $0xc0] sm:$0xf]
    %v981 = vld [vmem:[%s3 + $0xc4] sm:$0xf]
    %v982 = vld [vmem:[%s3 + $0xc8] sm:$0xf]
    %v983 = vld [vmem:[%s3 + $0xcc] sm:$0xf]
    %v984 = vld [vmem:[%s3 + $0xd0] sm:$0xf]
    %v985 = vld [vmem:[%s3 + $0xd4] sm:$0xf]
    %v986 = vld [vmem:[%s3 + $0xd8] sm:$0xf]
    %v987 = vld [vmem:[%s3 + $0xdc] sm:$0xf]
    %v988 = vld [vmem:[%s3 + $0xe0] sm:$0xf]
    %v989 = vld [vmem:[%s3 + $0xe4] sm:$0xf]
    %v990 = vld [vmem:[%s3 + $0xe8] sm:$0xf]
    %v991 = vld [vmem:[%s3 + $0xec] sm:$0xf]
    %v994 = vunpack.c.l.b16 %v932
    %v995 = vunpack.c.l.b16 %v933
    %v996 = vpack.c.b16 %v995, %v994
    %vm997 = vcmask 130048
    %v999 = vsel %vm997, %v996, 0
    %1001 = vmatprep.subr.bf16.mxu0 %v873
    %1002 = vmatpush1.bf16.msra.mxu0 %v872
    %1003 = vmatprep.subr.bf16.mxu0 0
    %1004 = vmatpush1.bf16.msra.mxu0 0
    %1005 = vmatprep.subr.bf16.mxu0 0
    %1006 = vmatpush1.bf16.msra.mxu0 0
    %1007 = vmatprep.subr.bf16.mxu0 0
    %1008 = vmatpush1.bf16.msra.mxu0 0
    %1009 = vmatprep.subr.bf16.mxu0 0
    %1010 = vmatpush1.bf16.msra.mxu0 0
    %1011 = vmatprep.subr.bf16.mxu0 0
    %1012 = vmatpush1.bf16.msra.mxu0 0
    %1013 = vmatprep.subr.bf16.mxu0 0
    %1014 = vmatpush1.bf16.msra.mxu0 0
    %1015 = vmatprep.subr.bf16.mxu0 0
    %1016 = vmatpush1.bf16.msra.mxu0 0
    %1017 = vmatprep.subr.bf16.mxu0 0
    %1018 = vmatpush1.bf16.msra.mxu0 0
    %1019 = vmatprep.subr.bf16.mxu0 0
    %1020 = vmatpush1.bf16.msra.mxu0 0
    %1021 = vmatprep.subr.bf16.mxu0 0
    %1022 = vmatpush1.bf16.msra.mxu0 0
    %1023 = vmatprep.subr.bf16.mxu0 0
    %1024 = vmatpush1.bf16.msra.mxu0 0
    %1025 = vmatprep.subr.bf16.mxu0 0
    %1026 = vmatpush1.bf16.msra.mxu0 0
    %1027 = vmatprep.subr.bf16.mxu0 0
    %1028 = vmatpush1.bf16.msra.mxu0 0
    %1029 = vmatprep.subr.bf16.mxu0 0
    %1030 = vmatpush1.bf16.msra.mxu0 0
    %1031 = vmatprep.subr.bf16.mxu0 0
    %1032 = vmatpush1.bf16.msra.mxu0 0
    %1033 = vmatprep.mubr.bf16.mxu0 0
    %1034 = vmatmul.mubr.bf16.gmra.mrb[0].mxu0 %v999
    %v1035 = vpop.f32.mrb[0].mxu0
    %v1036 = vadd.f32 0.0, %v1035
    %v1037 = vpop.f32.mrb[0].mxu0
    %v1038 = vadd.f32 0.0, %v1037
    %v1039 = vpop.f32.mrb[0].mxu0
    %v1040 = vadd.f32 0.0, %v1039
    %v1041 = vpop.f32.mrb[0].mxu0
    %v1042 = vadd.f32 0.0, %v1041
    %1043 = vdwg.mxu0
    %v1046 = vunpack.c.l.b16 %v934
    %v1047 = vunpack.c.l.b16 %v935
    %v1048 = vpack.c.b16 %v1047, %v1046
    %v1050 = vsel %vm997, %v1048, 0
    %1052 = vmatprep.subr.bf16.mxu0 %v875
    %1053 = vmatpush1.bf16.msra.mxu0 %v874
    %1054 = vmatprep.subr.bf16.mxu0 0
    %1055 = vmatpush1.bf16.msra.mxu0 0
    %1056 = vmatprep.subr.bf16.mxu0 0
    %1057 = vmatpush1.bf16.msra.mxu0 0
    %1058 = vmatprep.subr.bf16.mxu0 0
    %1059 = vmatpush1.bf16.msra.mxu0 0
    %1060 = vmatprep.subr.bf16.mxu0 0
    %1061 = vmatpush1.bf16.msra.mxu0 0
    %1062 = vmatprep.subr.bf16.mxu0 0
    %1063 = vmatpush1.bf16.msra.mxu0 0
    %1064 = vmatprep.subr.bf16.mxu0 0
    %1065 = vmatpush1.bf16.msra.mxu0 0
    %1066 = vmatprep.subr.bf16.mxu0 0
    %1067 = vmatpush1.bf16.msra.mxu0 0
    %1068 = vmatprep.subr.bf16.mxu0 0
    %1069 = vmatpush1.bf16.msra.mxu0 0
    %1070 = vmatprep.subr.bf16.mxu0 0
    %1071 = vmatpush1.bf16.msra.mxu0 0
    %1072 = vmatprep.subr.bf16.mxu0 0
    %1073 = vmatpush1.bf16.msra.mxu0 0
    %1074 = vmatprep.subr.bf16.mxu0 0
    %1075 = vmatpush1.bf16.msra.mxu0 0
    %1076 = vmatprep.subr.bf16.mxu0 0
    %1077 = vmatpush1.bf16.msra.mxu0 0
    %1078 = vmatprep.subr.bf16.mxu0 0
    %1079 = vmatpush1.bf16.msra.mxu0 0
    %1080 = vmatprep.subr.bf16.mxu0 0
    %1081 = vmatpush1.bf16.msra.mxu0 0
    %1082 = vmatprep.subr.bf16.mxu0 0
    %1083 = vmatpush1.bf16.msra.mxu0 0
    %1084 = vmatprep.mubr.bf16.mxu0 0
    %1085 = vmatmul.mubr.bf16.gmra.mrb[0].mxu0 %v1050
    %v1086 = vpop.f32.mrb[0].mxu0
    %v1087 = vadd.f32 0.0, %v1086
    %v1088 = vpop.f32.mrb[0].mxu0
    %v1089 = vadd.f32 0.0, %v1088
    %v1090 = vpop.f32.mrb[0].mxu0
    %v1091 = vadd.f32 0.0, %v1090
    %v1092 = vpop.f32.mrb[0].mxu0
    %v1093 = vadd.f32 0.0, %v1092
    %1094 = vdwg.mxu0
    %v1097 = vunpack.c.l.b16 %v936
    %v1098 = vunpack.c.l.b16 %v937
    %v1099 = vpack.c.b16 %v1098, %v1097
    %v1101 = vsel %vm997, %v1099, 0
    %1103 = vmatprep.subr.bf16.mxu0 %v877
    %1104 = vmatpush1.bf16.msra.mxu0 %v876
    %1105 = vmatprep.subr.bf16.mxu0 0
    %1106 = vmatpush1.bf16.msra.mxu0 0
    %1107 = vmatprep.subr.bf16.mxu0 0
    %1108 = vmatpush1.bf16.msra.mxu0 0
    %1109 = vmatprep.subr.bf16.mxu0 0
    %1110 = vmatpush1.bf16.msra.mxu0 0
    %1111 = vmatprep.subr.bf16.mxu0 0
    %1112 = vmatpush1.bf16.msra.mxu0 0
    %1113 = vmatprep.subr.bf16.mxu0 0
    %1114 = vmatpush1.bf16.msra.mxu0 0
    %1115 = vmatprep.subr.bf16.mxu0 0
    %1116 = vmatpush1.bf16.msra.mxu0 0
    %1117 = vmatprep.subr.bf16.mxu0 0
    %1118 = vmatpush1.bf16.msra.mxu0 0
    %1119 = vmatprep.subr.bf16.mxu0 0
    %1120 = vmatpush1.bf16.msra.mxu0 0
    %1121 = vmatprep.subr.bf16.mxu0 0
    %1122 = vmatpush1.bf16.msra.mxu0 0
    %1123 = vmatprep.subr.bf16.mxu0 0
    %1124 = vmatpush1.bf16.msra.mxu0 0
    %1125 = vmatprep.subr.bf16.mxu0 0
    %1126 = vmatpush1.bf16.msra.mxu0 0
    %1127 = vmatprep.subr.bf16.mxu0 0
    %1128 = vmatpush1.bf16.msra.mxu0 0
    %1129 = vmatprep.subr.bf16.mxu0 0
    %1130 = vmatpush1.bf16.msra.mxu0 0
    %1131 = vmatprep.subr.bf16.mxu0 0
    %1132 = vmatpush1.bf16.msra.mxu0 0
    %1133 = vmatprep.subr.bf16.mxu0 0
    %1134 = vmatpush1.bf16.msra.mxu0 0
    %1135 = vmatprep.mubr.bf16.mxu0 0
    %1136 = vmatmul.mubr.bf16.gmra.mrb[0].mxu0 %v1101
    %v1137 = vpop.f32.mrb[0].mxu0
    %v1138 = vadd.f32 0.0, %v1137
    %v1139 = vpop.f32.mrb[0].mxu0
    %v1140 = vadd.f32 0.0, %v1139
    %v1141 = vpop.f32.mrb[0].mxu0
    %v1142 = vadd.f32 0.0, %v1141
    %v1143 = vpop.f32.mrb[0].mxu0
    %v1144 = vadd.f32 0.0, %v1143
    %1145 = vdwg.mxu0
    %v1148 = vunpack.c.l.b16 %v938
    %v1149 = vunpack.c.l.b16 %v939
    %v1150 = vpack.c.b16 %v1149, %v1148
    %v1152 = vsel %vm997, %v1150, 0
    %1154 = vmatprep.subr.bf16.mxu0 %v879
    %1155 = vmatpush1.bf16.msra.mxu0 %v878
    %1156 = vmatprep.subr.bf16.mxu0 0
    %1157 = vmatpush1.bf16.msra.mxu0 0
    %1158 = vmatprep.subr.bf16.mxu0 0
    %1159 = vmatpush1.bf16.msra.mxu0 0
    %1160 = vmatprep.subr.bf16.mxu0 0
    %1161 = vmatpush1.bf16.msra.mxu0 0
    %1162 = vmatprep.subr.bf16.mxu0 0
    %1163 = vmatpush1.bf16.msra.mxu0 0
    %1164 = vmatprep.subr.bf16.mxu0 0
    %1165 = vmatpush1.bf16.msra.mxu0 0
    %1166 = vmatprep.subr.bf16.mxu0 0
    %1167 = vmatpush1.bf16.msra.mxu0 0
    %1168 = vmatprep.subr.bf16.mxu0 0
    %1169 = vmatpush1.bf16.msra.mxu0 0
    %1170 = vmatprep.subr.bf16.mxu0 0
    %1171 = vmatpush1.bf16.msra.mxu0 0
    %1172 = vmatprep.subr.bf16.mxu0 0
    %1173 = vmatpush1.bf16.msra.mxu0 0
    %1174 = vmatprep.subr.bf16.mxu0 0
    %1175 = vmatpush1.bf16.msra.mxu0 0
    %1176 = vmatprep.subr.bf16.mxu0 0
    %1177 = vmatpush1.bf16.msra.mxu0 0
    %1178 = vmatprep.subr.bf16.mxu0 0
    %1179 = vmatpush1.bf16.msra.mxu0 0
    %1180 = vmatprep.subr.bf16.mxu0 0
    %1181 = vmatpush1.bf16.msra.mxu0 0
    %1182 = vmatprep.subr.bf16.mxu0 0
    %1183 = vmatpush1.bf16.msra.mxu0 0
    %1184 = vmatprep.subr.bf16.mxu0 0
    %1185 = vmatpush1.bf16.msra.mxu0 0
    %1186 = vmatprep.mubr.bf16.mxu0 0
    %1187 = vmatmul.mubr.bf16.gmra.mrb[0].mxu0 %v1152
    %v1188 = vpop.f32.mrb[0].mxu0
    %v1189 = vadd.f32 0.0, %v1188
    %v1190 = vpop.f32.mrb[0].mxu0
    %v1191 = vadd.f32 0.0, %v1190
    %v1192 = vpop.f32.mrb[0].mxu0
    %v1193 = vadd.f32 0.0, %v1192
    %v1194 = vpop.f32.mrb[0].mxu0
    %v1195 = vadd.f32 0.0, %v1194
    %1196 = vdwg.mxu0
    %v1199 = vunpack.c.l.b16 %v940
    %v1200 = vunpack.c.l.b16 %v941
    %v1201 = vpack.c.b16 %v1200, %v1199
    %v1203 = vsel %vm997, %v1201, 0
    %1205 = vmatprep.subr.bf16.mxu0 %v881
    %1206 = vmatpush1.bf16.msra.mxu0 %v880
    %1207 = vmatprep.subr.bf16.mxu0 0
    %1208 = vmatpush1.bf16.msra.mxu0 0
    %1209 = vmatprep.subr.bf16.mxu0 0
    %1210 = vmatpush1.bf16.msra.mxu0 0
    %1211 = vmatprep.subr.bf16.mxu0 0
    %1212 = vmatpush1.bf16.msra.mxu0 0
    %1213 = vmatprep.subr.bf16.mxu0 0
    %1214 = vmatpush1.bf16.msra.mxu0 0
    %1215 = vmatprep.subr.bf16.mxu0 0
    %1216 = vmatpush1.bf16.msra.mxu0 0
    %1217 = vmatprep.subr.bf16.mxu0 0
    %1218 = vmatpush1.bf16.msra.mxu0 0
    %1219 = vmatprep.subr.bf16.mxu0 0
    %1220 = vmatpush1.bf16.msra.mxu0 0
    %1221 = vmatprep.subr.bf16.mxu0 0
    %1222 = vmatpush1.bf16.msra.mxu0 0
    %1223 = vmatprep.subr.bf16.mxu0 0
    %1224 = vmatpush1.bf16.msra.mxu0 0
    %1225 = vmatprep.subr.bf16.mxu0 0
    %1226 = vmatpush1.bf16.msra.mxu0 0
    %1227 = vmatprep.subr.bf16.mxu0 0
    %1228 = vmatpush1.bf16.msra.mxu0 0
    %1229 = vmatprep.subr.bf16.mxu0 0
    %1230 = vmatpush1.bf16.msra.mxu0 0
    %1231 = vmatprep.subr.bf16.mxu0 0
    %1232 = vmatpush1.bf16.msra.mxu0 0
    %1233 = vmatprep.subr.bf16.mxu0 0
    %1234 = vmatpush1.bf16.msra.mxu0 0
    %1235 = vmatprep.subr.bf16.mxu0 0
    %1236 = vmatpush1.bf16.msra.mxu0 0
    %1237 = vmatprep.mubr.bf16.mxu0 0
    %1238 = vmatmul.mubr.bf16.gmra.mrb[0].mxu0 %v1203
    %v1239 = vpop.f32.mrb[0].mxu0
    %v1240 = vadd.f32 0.0, %v1239
    %v1241 = vpop.f32.mrb[0].mxu0
    %v1242 = vadd.f32 0.0, %v1241
    %v1243 = vpop.f32.mrb[0].mxu0
    %v1244 = vadd.f32 0.0, %v1243
    %v1245 = vpop.f32.mrb[0].mxu0
    %v1246 = vadd.f32 0.0, %v1245
    %1247 = vdwg.mxu0
    %v1250 = vunpack.c.l.b16 %v942
    %v1251 = vunpack.c.l.b16 %v943
    %v1252 = vpack.c.b16 %v1251, %v1250
    %v1254 = vsel %vm997, %v1252, 0
    %1256 = vmatprep.subr.bf16.mxu0 %v883
    %1257 = vmatpush1.bf16.msra.mxu0 %v882
    %1258 = vmatprep.subr.bf16.mxu0 0
    %1259 = vmatpush1.bf16.msra.mxu0 0
    %1260 = vmatprep.subr.bf16.mxu0 0
    %1261 = vmatpush1.bf16.msra.mxu0 0
    %1262 = vmatprep.subr.bf16.mxu0 0
    %1263 = vmatpush1.bf16.msra.mxu0 0
    %1264 = vmatprep.subr.bf16.mxu0 0
    %1265 = vmatpush1.bf16.msra.mxu0 0
    %1266 = vmatprep.subr.bf16.mxu0 0
    %1267 = vmatpush1.bf16.msra.mxu0 0
    %1268 = vmatprep.subr.bf16.mxu0 0
    %1269 = vmatpush1.bf16.msra.mxu0 0
    %1270 = vmatprep.subr.bf16.mxu0 0
    %1271 = vmatpush1.bf16.msra.mxu0 0
    %1272 = vmatprep.subr.bf16.mxu0 0
    %1273 = vmatpush1.bf16.msra.mxu0 0
    %1274 = vmatprep.subr.bf16.mxu0 0
    %1275 = vmatpush1.bf16.msra.mxu0 0
    %1276 = vmatprep.subr.bf16.mxu0 0
    %1277 = vmatpush1.bf16.msra.mxu0 0
    %1278 = vmatprep.subr.bf16.mxu0 0
    %1279 = vmatpush1.bf16.msra.mxu0 0
    %1280 = vmatprep.subr.bf16.mxu0 0
    %1281 = vmatpush1.bf16.msra.mxu0 0
    %1282 = vmatprep.subr.bf16.mxu0 0
    %1283 = vmatpush1.bf16.msra.mxu0 0
    %1284 = vmatprep.subr.bf16.mxu0 0
    %1285 = vmatpush1.bf16.msra.mxu0 0
    %1286 = vmatprep.subr.bf16.mxu0 0
    %1287 = vmatpush1.bf16.msra.mxu0 0
    %1288 = vmatprep.mubr.bf16.mxu0 0
    %1289 = vmatmul.mubr.bf16.gmra.mrb[0].mxu0 %v1254
    %v1290 = vpop.f32.mrb[0].mxu0
    %v1291 = vadd.f32 0.0, %v1290
    %v1292 = vpop.f32.mrb[0].mxu0
    %v1293 = vadd.f32 0.0, %v1292
    %v1294 = vpop.f32.mrb[0].mxu0
    %v1295 = vadd.f32 0.0, %v1294
    %v1296 = vpop.f32.mrb[0].mxu0
    %v1297 = vadd.f32 0.0, %v1296
    %1298 = vdwg.mxu0
    %v1301 = vunpack.c.l.b16 %v944
    %v1302 = vunpack.c.l.b16 %v945
    %v1303 = vpack.c.b16 %v1302, %v1301
    %v1305 = vsel %vm997, %v1303, 0
    %1307 = vmatprep.subr.bf16.mxu0 %v885
    %1308 = vmatpush1.bf16.msra.mxu0 %v884
    %1309 = vmatprep.subr.bf16.mxu0 0
    %1310 = vmatpush1.bf16.msra.mxu0 0
    %1311 = vmatprep.subr.bf16.mxu0 0
    %1312 = vmatpush1.bf16.msra.mxu0 0
    %1313 = vmatprep.subr.bf16.mxu0 0
    %1314 = vmatpush1.bf16.msra.mxu0 0
    %1315 = vmatprep.subr.bf16.mxu0 0
    %1316 = vmatpush1.bf16.msra.mxu0 0
    %1317 = vmatprep.subr.bf16.mxu0 0
    %1318 = vmatpush1.bf16.msra.mxu0 0
    %1319 = vmatprep.subr.bf16.mxu0 0
    %1320 = vmatpush1.bf16.msra.mxu0 0
    %1321 = vmatprep.subr.bf16.mxu0 0
    %1322 = vmatpush1.bf16.msra.mxu0 0
    %1323 = vmatprep.subr.bf16.mxu0 0
    %1324 = vmatpush1.bf16.msra.mxu0 0
    %1325 = vmatprep.subr.bf16.mxu0 0
    %1326 = vmatpush1.bf16.msra.mxu0 0
    %1327 = vmatprep.subr.bf16.mxu0 0
    %1328 = vmatpush1.bf16.msra.mxu0 0
    %1329 = vmatprep.subr.bf16.mxu0 0
    %1330 = vmatpush1.bf16.msra.mxu0 0
    %1331 = vmatprep.subr.bf16.mxu0 0
    %1332 = vmatpush1.bf16.msra.mxu0 0
    %1333 = vmatprep.subr.bf16.mxu0 0
    %1334 = vmatpush1.bf16.msra.mxu0 0
    %1335 = vmatprep.subr.bf16.mxu0 0
    %1336 = vmatpush1.bf16.msra.mxu0 0
    %1337 = vmatprep.subr.bf16.mxu0 0
    %1338 = vmatpush1.bf16.msra.mxu0 0
    %1339 = vmatprep.mubr.bf16.mxu0 0
    %1340 = vmatmul.mubr.bf16.gmra.mrb[0].mxu0 %v1305
    %v1341 = vpop.f32.mrb[0].mxu0
    %v1342 = vadd.f32 0.0, %v1341
    %v1343 = vpop.f32.mrb[0].mxu0
    %v1344 = vadd.f32 0.0, %v1343
    %v1345 = vpop.f32.mrb[0].mxu0
    %v1346 = vadd.f32 0.0, %v1345
    %v1347 = vpop.f32.mrb[0].mxu0
    %v1348 = vadd.f32 0.0, %v1347
    %1349 = vdwg.mxu0
    %v1352 = vunpack.c.l.b16 %v946
    %v1353 = vunpack.c.l.b16 %v947
    %v1354 = vpack.c.b16 %v1353, %v1352
    %v1356 = vsel %vm997, %v1354, 0
    %1358 = vmatprep.subr.bf16.mxu0 %v887
    %1359 = vmatpush1.bf16.msra.mxu0 %v886
    %1360 = vmatprep.subr.bf16.mxu0 0
    %1361 = vmatpush1.bf16.msra.mxu0 0
    %1362 = vmatprep.subr.bf16.mxu0 0
    %1363 = vmatpush1.bf16.msra.mxu0 0
    %1364 = vmatprep.subr.bf16.mxu0 0
    %1365 = vmatpush1.bf16.msra.mxu0 0
    %1366 = vmatprep.subr.bf16.mxu0 0
    %1367 = vmatpush1.bf16.msra.mxu0 0
    %1368 = vmatprep.subr.bf16.mxu0 0
    %1369 = vmatpush1.bf16.msra.mxu0 0
    %1370 = vmatprep.subr.bf16.mxu0 0
    %1371 = vmatpush1.bf16.msra.mxu0 0
    %1372 = vmatprep.subr.bf16.mxu0 0
    %1373 = vmatpush1.bf16.msra.mxu0 0
    %1374 = vmatprep.subr.bf16.mxu0 0
    %1375 = vmatpush1.bf16.msra.mxu0 0
    %1376 = vmatprep.subr.bf16.mxu0 0
    %1377 = vmatpush1.bf16.msra.mxu0 0
    %1378 = vmatprep.subr.bf16.mxu0 0
    %1379 = vmatpush1.bf16.msra.mxu0 0
    %1380 = vmatprep.subr.bf16.mxu0 0
    %1381 = vmatpush1.bf16.msra.mxu0 0
    %1382 = vmatprep.subr.bf16.mxu0 0
    %1383 = vmatpush1.bf16.msra.mxu0 0
    %1384 = vmatprep.subr.bf16.mxu0 0
    %1385 = vmatpush1.bf16.msra.mxu0 0
    %1386 = vmatprep.subr.bf16.mxu0 0
    %1387 = vmatpush1.bf16.msra.mxu0 0
    %1388 = vmatprep.subr.bf16.mxu0 0
    %1389 = vmatpush1.bf16.msra.mxu0 0
    %1390 = vmatprep.mubr.bf16.mxu0 0
    %1391 = vmatmul.mubr.bf16.gmra.mrb[0].mxu0 %v1356
    %v1392 = vpop.f32.mrb[0].mxu0
    %v1393 = vadd.f32 0.0, %v1392
    %v1394 = vpop.f32.mrb[0].mxu0
    %v1395 = vadd.f32 0.0, %v1394
    %v1396 = vpop.f32.mrb[0].mxu0
    %v1397 = vadd.f32 0.0, %v1396
    %v1398 = vpop.f32.mrb[0].mxu0
    %v1399 = vadd.f32 0.0, %v1398
    %1400 = vdwg.mxu0
    %v1403 = vunpack.c.l.b16 %v948
    %v1404 = vunpack.c.l.b16 %v949
    %v1405 = vpack.c.b16 %v1404, %v1403
    %v1407 = vsel %vm997, %v1405, 0
    %1409 = vmatprep.subr.bf16.mxu0 %v889
    %1410 = vmatpush1.bf16.msra.mxu0 %v888
    %1411 = vmatprep.subr.bf16.mxu0 0
    %1412 = vmatpush1.bf16.msra.mxu0 0
    %1413 = vmatprep.subr.bf16.mxu0 0
    %1414 = vmatpush1.bf16.msra.mxu0 0
    %1415 = vmatprep.subr.bf16.mxu0 0
    %1416 = vmatpush1.bf16.msra.mxu0 0
    %1417 = vmatprep.subr.bf16.mxu0 0
    %1418 = vmatpush1.bf16.msra.mxu0 0
    %1419 = vmatprep.subr.bf16.mxu0 0
    %1420 = vmatpush1.bf16.msra.mxu0 0
    %1421 = vmatprep.subr.bf16.mxu0 0
    %1422 = vmatpush1.bf16.msra.mxu0 0
    %1423 = vmatprep.subr.bf16.mxu0 0
    %1424 = vmatpush1.bf16.msra.mxu0 0
    %1425 = vmatprep.subr.bf16.mxu0 0
    %1426 = vmatpush1.bf16.msra.mxu0 0
    %1427 = vmatprep.subr.bf16.mxu0 0
    %1428 = vmatpush1.bf16.msra.mxu0 0
    %1429 = vmatprep.subr.bf16.mxu0 0
    %1430 = vmatpush1.bf16.msra.mxu0 0
    %1431 = vmatprep.subr.bf16.mxu0 0
    %1432 = vmatpush1.bf16.msra.mxu0 0
    %1433 = vmatprep.subr.bf16.mxu0 0
    %1434 = vmatpush1.bf16.msra.mxu0 0
    %1435 = vmatprep.subr.bf16.mxu0 0
    %1436 = vmatpush1.bf16.msra.mxu0 0
    %1437 = vmatprep.subr.bf16.mxu0 0
    %1438 = vmatpush1.bf16.msra.mxu0 0
    %1439 = vmatprep.subr.bf16.mxu0 0
    %1440 = vmatpush1.bf16.msra.mxu0 0
    %1441 = vmatprep.mubr.bf16.mxu0 0
    %1442 = vmatmul.mubr.bf16.gmra.mrb[0].mxu0 %v1407
    %v1443 = vpop.f32.mrb[0].mxu0
    %v1444 = vadd.f32 0.0, %v1443
    %v1445 = vpop.f32.mrb[0].mxu0
    %v1446 = vadd.f32 0.0, %v1445
    %v1447 = vpop.f32.mrb[0].mxu0
    %v1448 = vadd.f32 0.0, %v1447
    %v1449 = vpop.f32.mrb[0].mxu0
    %v1450 = vadd.f32 0.0, %v1449
    %1451 = vdwg.mxu0
    %v1454 = vunpack.c.l.b16 %v950
    %v1455 = vunpack.c.l.b16 %v951
    %v1456 = vpack.c.b16 %v1455, %v1454
    %v1458 = vsel %vm997, %v1456, 0
    %1460 = vmatprep.subr.bf16.mxu0 %v891
    %1461 = vmatpush1.bf16.msra.mxu0 %v890
    %1462 = vmatprep.subr.bf16.mxu0 0
    %1463 = vmatpush1.bf16.msra.mxu0 0
    %1464 = vmatprep.subr.bf16.mxu0 0
    %1465 = vmatpush1.bf16.msra.mxu0 0
    %1466 = vmatprep.subr.bf16.mxu0 0
    %1467 = vmatpush1.bf16.msra.mxu0 0
    %1468 = vmatprep.subr.bf16.mxu0 0
    %1469 = vmatpush1.bf16.msra.mxu0 0
    %1470 = vmatprep.subr.bf16.mxu0 0
    %1471 = vmatpush1.bf16.msra.mxu0 0
    %1472 = vmatprep.subr.bf16.mxu0 0
    %1473 = vmatpush1.bf16.msra.mxu0 0
    %1474 = vmatprep.subr.bf16.mxu0 0
    %1475 = vmatpush1.bf16.msra.mxu0 0
    %1476 = vmatprep.subr.bf16.mxu0 0
    %1477 = vmatpush1.bf16.msra.mxu0 0
    %1478 = vmatprep.subr.bf16.mxu0 0
    %1479 = vmatpush1.bf16.msra.mxu0 0
    %1480 = vmatprep.subr.bf16.mxu0 0
    %1481 = vmatpush1.bf16.msra.mxu0 0
    %1482 = vmatprep.subr.bf16.mxu0 0
    %1483 = vmatpush1.bf16.msra.mxu0 0
    %1484 = vmatprep.subr.bf16.mxu0 0
    %1485 = vmatpush1.bf16.msra.mxu0 0
    %1486 = vmatprep.subr.bf16.mxu0 0
    %1487 = vmatpush1.bf16.msra.mxu0 0
    %1488 = vmatprep.subr.bf16.mxu0 0
    %1489 = vmatpush1.bf16.msra.mxu0 0
    %1490 = vmatprep.subr.bf16.mxu0 0
    %1491 = vmatpush1.bf16.msra.mxu0 0
    %1492 = vmatprep.mubr.bf16.mxu0 0
    %1493 = vmatmul.mubr.bf16.gmra.mrb[0].mxu0 %v1458
    %v1494 = vpop.f32.mrb[0].mxu0
    %v1495 = vadd.f32 0.0, %v1494
    %v1496 = vpop.f32.mrb[0].mxu0
    %v1497 = vadd.f32 0.0, %v1496
    %v1498 = vpop.f32.mrb[0].mxu0
    %v1499 = vadd.f32 0.0, %v1498
    %v1500 = vpop.f32.mrb[0].mxu0
    %v1501 = vadd.f32 0.0, %v1500
    %1502 = vdwg.mxu0
    %v1505 = vunpack.c.l.b16 %v952
    %v1506 = vunpack.c.l.b16 %v953
    %v1507 = vpack.c.b16 %v1506, %v1505
    %v1509 = vsel %vm997, %v1507, 0
    %1511 = vmatprep.subr.bf16.mxu0 %v893
    %1512 = vmatpush1.bf16.msra.mxu0 %v892
    %1513 = vmatprep.subr.bf16.mxu0 0
    %1514 = vmatpush1.bf16.msra.mxu0 0
    %1515 = vmatprep.subr.bf16.mxu0 0
    %1516 = vmatpush1.bf16.msra.mxu0 0
    %1517 = vmatprep.subr.bf16.mxu0 0
    %1518 = vmatpush1.bf16.msra.mxu0 0
    %1519 = vmatprep.subr.bf16.mxu0 0
    %1520 = vmatpush1.bf16.msra.mxu0 0
    %1521 = vmatprep.subr.bf16.mxu0 0
    %1522 = vmatpush1.bf16.msra.mxu0 0
    %1523 = vmatprep.subr.bf16.mxu0 0
    %1524 = vmatpush1.bf16.msra.mxu0 0
    %1525 = vmatprep.subr.bf16.mxu0 0
    %1526 = vmatpush1.bf16.msra.mxu0 0
    %1527 = vmatprep.subr.bf16.mxu0 0
    %1528 = vmatpush1.bf16.msra.mxu0 0
    %1529 = vmatprep.subr.bf16.mxu0 0
    %1530 = vmatpush1.bf16.msra.mxu0 0
    %1531 = vmatprep.subr.bf16.mxu0 0
    %1532 = vmatpush1.bf16.msra.mxu0 0
    %1533 = vmatprep.subr.bf16.mxu0 0
    %1534 = vmatpush1.bf16.msra.mxu0 0
    %1535 = vmatprep.subr.bf16.mxu0 0
    %1536 = vmatpush1.bf16.msra.mxu0 0
    %1537 = vmatprep.subr.bf16.mxu0 0
    %1538 = vmatpush1.bf16.msra.mxu0 0
    %1539 = vmatprep.subr.bf16.mxu0 0
    %1540 = vmatpush1.bf16.msra.mxu0 0
    %1541 = vmatprep.subr.bf16.mxu0 0
    %1542 = vmatpush1.bf16.msra.mxu0 0
    %1543 = vmatprep.mubr.bf16.mxu0 0
    %1544 = vmatmul.mubr.bf16.gmra.mrb[0].mxu0 %v1509
    %v1545 = vpop.f32.mrb[0].mxu0
    %v1546 = vadd.f32 0.0, %v1545
    %v1547 = vpop.f32.mrb[0].mxu0
    %v1548 = vadd.f32 0.0, %v1547
    %v1549 = vpop.f32.mrb[0].mxu0
    %v1550 = vadd.f32 0.0, %v1549
    %v1551 = vpop.f32.mrb[0].mxu0
    %v1552 = vadd.f32 0.0, %v1551
    %1553 = vdwg.mxu0
    %v1556 = vunpack.c.l.b16 %v954
    %v1557 = vunpack.c.l.b16 %v955
    %v1558 = vpack.c.b16 %v1557, %v1556
    %v1560 = vsel %vm997, %v1558, 0
    %1562 = vmatprep.subr.bf16.mxu0 %v895
    %1563 = vmatpush1.bf16.msra.mxu0 %v894
    %1564 = vmatprep.subr.bf16.mxu0 0
    %1565 = vmatpush1.bf16.msra.mxu0 0
    %1566 = vmatprep.subr.bf16.mxu0 0
    %1567 = vmatpush1.bf16.msra.mxu0 0
    %1568 = vmatprep.subr.bf16.mxu0 0
    %1569 = vmatpush1.bf16.msra.mxu0 0
    %1570 = vmatprep.subr.bf16.mxu0 0
    %1571 = vmatpush1.bf16.msra.mxu0 0
    %1572 = vmatprep.subr.bf16.mxu0 0
    %1573 = vmatpush1.bf16.msra.mxu0 0
    %1574 = vmatprep.subr.bf16.mxu0 0
    %1575 = vmatpush1.bf16.msra.mxu0 0
    %1576 = vmatprep.subr.bf16.mxu0 0
    %1577 = vmatpush1.bf16.msra.mxu0 0
    %1578 = vmatprep.subr.bf16.mxu0 0
    %1579 = vmatpush1.bf16.msra.mxu0 0
    %1580 = vmatprep.subr.bf16.mxu0 0
    %1581 = vmatpush1.bf16.msra.mxu0 0
    %1582 = vmatprep.subr.bf16.mxu0 0
    %1583 = vmatpush1.bf16.msra.mxu0 0
    %1584 = vmatprep.subr.bf16.mxu0 0
    %1585 = vmatpush1.bf16.msra.mxu0 0
    %1586 = vmatprep.subr.bf16.mxu0 0
    %1587 = vmatpush1.bf16.msra.mxu0 0
    %1588 = vmatprep.subr.bf16.mxu0 0
    %1589 = vmatpush1.bf16.msra.mxu0 0
    %1590 = vmatprep.subr.bf16.mxu0 0
    %1591 = vmatpush1.bf16.msra.mxu0 0
    %1592 = vmatprep.subr.bf16.mxu0 0
    %1593 = vmatpush1.bf16.msra.mxu0 0
    %1594 = vmatprep.mubr.bf16.mxu0 0
    %1595 = vmatmul.mubr.bf16.gmra.mrb[0].mxu0 %v1560
    %v1596 = vpop.f32.mrb[0].mxu0
    %v1597 = vadd.f32 0.0, %v1596
    %v1598 = vpop.f32.mrb[0].mxu0
    %v1599 = vadd.f32 0.0, %v1598
    %v1600 = vpop.f32.mrb[0].mxu0
    %v1601 = vadd.f32 0.0, %v1600
    %v1602 = vpop.f32.mrb[0].mxu0
    %v1603 = vadd.f32 0.0, %v1602
    %1604 = vdwg.mxu0
    %v1607 = vunpack.c.l.b16 %v956
    %v1608 = vunpack.c.l.b16 %v957
    %v1609 = vpack.c.b16 %v1608, %v1607
    %v1611 = vsel %vm997, %v1609, 0
    %1613 = vmatprep.subr.bf16.mxu0 %v897
    %1614 = vmatpush1.bf16.msra.mxu0 %v896
    %1615 = vmatprep.subr.bf16.mxu0 0
    %1616 = vmatpush1.bf16.msra.mxu0 0
    %1617 = vmatprep.subr.bf16.mxu0 0
    %1618 = vmatpush1.bf16.msra.mxu0 0
    %1619 = vmatprep.subr.bf16.mxu0 0
    %1620 = vmatpush1.bf16.msra.mxu0 0
    %1621 = vmatprep.subr.bf16.mxu0 0
    %1622 = vmatpush1.bf16.msra.mxu0 0
    %1623 = vmatprep.subr.bf16.mxu0 0
    %1624 = vmatpush1.bf16.msra.mxu0 0
    %1625 = vmatprep.subr.bf16.mxu0 0
    %1626 = vmatpush1.bf16.msra.mxu0 0
    %1627 = vmatprep.subr.bf16.mxu0 0
    %1628 = vmatpush1.bf16.msra.mxu0 0
    %1629 = vmatprep.subr.bf16.mxu0 0
    %1630 = vmatpush1.bf16.msra.mxu0 0
    %1631 = vmatprep.subr.bf16.mxu0 0
    %1632 = vmatpush1.bf16.msra.mxu0 0
    %1633 = vmatprep.subr.bf16.mxu0 0
    %1634 = vmatpush1.bf16.msra.mxu0 0
    %1635 = vmatprep.subr.bf16.mxu0 0
    %1636 = vmatpush1.bf16.msra.mxu0 0
    %1637 = vmatprep.subr.bf16.mxu0 0
    %1638 = vmatpush1.bf16.msra.mxu0 0
    %1639 = vmatprep.subr.bf16.mxu0 0
    %1640 = vmatpush1.bf16.msra.mxu0 0
    %1641 = vmatprep.subr.bf16.mxu0 0
    %1642 = vmatpush1.bf16.msra.mxu0 0
    %1643 = vmatprep.subr.bf16.mxu0 0
    %1644 = vmatpush1.bf16.msra.mxu0 0
    %1645 = vmatprep.mubr.bf16.mxu0 0
    %1646 = vmatmul.mubr.bf16.gmra.mrb[0].mxu0 %v1611
    %v1647 = vpop.f32.mrb[0].mxu0
    %v1648 = vadd.f32 0.0, %v1647
    %v1649 = vpop.f32.mrb[0].mxu0
    %v1650 = vadd.f32 0.0, %v1649
    %v1651 = vpop.f32.mrb[0].mxu0
    %v1652 = vadd.f32 0.0, %v1651
    %v1653 = vpop.f32.mrb[0].mxu0
    %v1654 = vadd.f32 0.0, %v1653
    %1655 = vdwg.mxu0
    %v1658 = vunpack.c.l.b16 %v958
    %v1659 = vunpack.c.l.b16 %v959
    %v1660 = vpack.c.b16 %v1659, %v1658
    %v1662 = vsel %vm997, %v1660, 0
    %1664 = vmatprep.subr.bf16.mxu0 %v899
    %1665 = vmatpush1.bf16.msra.mxu0 %v898
    %1666 = vmatprep.subr.bf16.mxu0 0
    %1667 = vmatpush1.bf16.msra.mxu0 0
    %1668 = vmatprep.subr.bf16.mxu0 0
    %1669 = vmatpush1.bf16.msra.mxu0 0
    %1670 = vmatprep.subr.bf16.mxu0 0
    %1671 = vmatpush1.bf16.msra.mxu0 0
    %1672 = vmatprep.subr.bf16.mxu0 0
    %1673 = vmatpush1.bf16.msra.mxu0 0
    %1674 = vmatprep.subr.bf16.mxu0 0
    %1675 = vmatpush1.bf16.msra.mxu0 0
    %1676 = vmatprep.subr.bf16.mxu0 0
    %1677 = vmatpush1.bf16.msra.mxu0 0
    %1678 = vmatprep.subr.bf16.mxu0 0
    %1679 = vmatpush1.bf16.msra.mxu0 0
    %1680 = vmatprep.subr.bf16.mxu0 0
    %1681 = vmatpush1.bf16.msra.mxu0 0
    %1682 = vmatprep.subr.bf16.mxu0 0
    %1683 = vmatpush1.bf16.msra.mxu0 0
    %1684 = vmatprep.subr.bf16.mxu0 0
    %1685 = vmatpush1.bf16.msra.mxu0 0
    %1686 = vmatprep.subr.bf16.mxu0 0
    %1687 = vmatpush1.bf16.msra.mxu0 0
    %1688 = vmatprep.subr.bf16.mxu0 0
    %1689 = vmatpush1.bf16.msra.mxu0 0
    %1690 = vmatprep.subr.bf16.mxu0 0
    %1691 = vmatpush1.bf16.msra.mxu0 0
    %1692 = vmatprep.subr.bf16.mxu0 0
    %1693 = vmatpush1.bf16.msra.mxu0 0
    %1694 = vmatprep.subr.bf16.mxu0 0
    %1695 = vmatpush1.bf16.msra.mxu0 0
    %1696 = vmatprep.mubr.bf16.mxu0 0
    %1697 = vmatmul.mubr.bf16.gmra.mrb[0].mxu0 %v1662
    %v1698 = vpop.f32.mrb[0].mxu0
    %v1699 = vadd.f32 0.0, %v1698
    %v1700 = vpop.f32.mrb[0].mxu0
    %v1701 = vadd.f32 0.0, %v1700
    %v1702 = vpop.f32.mrb[0].mxu0
    %v1703 = vadd.f32 0.0, %v1702
    %v1704 = vpop.f32.mrb[0].mxu0
    %v1705 = vadd.f32 0.0, %v1704
    %1706 = vdwg.mxu0
    %v1709 = vunpack.c.l.b16 %v960
    %v1710 = vunpack.c.l.b16 %v961
    %v1711 = vpack.c.b16 %v1710, %v1709
    %v1713 = vsel %vm997, %v1711, 0
    %1715 = vmatprep.subr.bf16.mxu0 %v901
    %1716 = vmatpush1.bf16.msra.mxu0 %v900
    %1717 = vmatprep.subr.bf16.mxu0 0
    %1718 = vmatpush1.bf16.msra.mxu0 0
    %1719 = vmatprep.subr.bf16.mxu0 0
    %1720 = vmatpush1.bf16.msra.mxu0 0
    %1721 = vmatprep.subr.bf16.mxu0 0
    %1722 = vmatpush1.bf16.msra.mxu0 0
    %1723 = vmatprep.subr.bf16.mxu0 0
    %1724 = vmatpush1.bf16.msra.mxu0 0
    %1725 = vmatprep.subr.bf16.mxu0 0
    %1726 = vmatpush1.bf16.msra.mxu0 0
    %1727 = vmatprep.subr.bf16.mxu0 0
    %1728 = vmatpush1.bf16.msra.mxu0 0
    %1729 = vmatprep.subr.bf16.mxu0 0
    %1730 = vmatpush1.bf16.msra.mxu0 0
    %1731 = vmatprep.subr.bf16.mxu0 0
    %1732 = vmatpush1.bf16.msra.mxu0 0
    %1733 = vmatprep.subr.bf16.mxu0 0
    %1734 = vmatpush1.bf16.msra.mxu0 0
    %1735 = vmatprep.subr.bf16.mxu0 0
    %1736 = vmatpush1.bf16.msra.mxu0 0
    %1737 = vmatprep.subr.bf16.mxu0 0
    %1738 = vmatpush1.bf16.msra.mxu0 0
    %1739 = vmatprep.subr.bf16.mxu0 0
    %1740 = vmatpush1.bf16.msra.mxu0 0
    %1741 = vmatprep.subr.bf16.mxu0 0
    %1742 = vmatpush1.bf16.msra.mxu0 0
    %1743 = vmatprep.subr.bf16.mxu0 0
    %1744 = vmatpush1.bf16.msra.mxu0 0
    %1745 = vmatprep.subr.bf16.mxu0 0
    %1746 = vmatpush1.bf16.msra.mxu0 0
    %1747 = vmatprep.mubr.bf16.mxu0 0
    %1748 = vmatmul.mubr.bf16.gmra.mrb[0].mxu0 %v1713
    %v1749 = vpop.f32.mrb[0].mxu0
    %v1750 = vadd.f32 0.0, %v1749
    %v1751 = vpop.f32.mrb[0].mxu0
    %v1752 = vadd.f32 0.0, %v1751
    %v1753 = vpop.f32.mrb[0].mxu0
    %v1754 = vadd.f32 0.0, %v1753
    %v1755 = vpop.f32.mrb[0].mxu0
    %v1756 = vadd.f32 0.0, %v1755
    %1757 = vdwg.mxu0
    %v1760 = vunpack.c.l.b16 %v962
    %v1761 = vunpack.c.l.b16 %v963
    %v1762 = vpack.c.b16 %v1761, %v1760
    %v1764 = vsel %vm997, %v1762, 0
    %1766 = vmatprep.subr.bf16.mxu0 %v903
    %1767 = vmatpush1.bf16.msra.mxu0 %v902
    %1768 = vmatprep.subr.bf16.mxu0 0
    %1769 = vmatpush1.bf16.msra.mxu0 0
    %1770 = vmatprep.subr.bf16.mxu0 0
    %1771 = vmatpush1.bf16.msra.mxu0 0
    %1772 = vmatprep.subr.bf16.mxu0 0
    %1773 = vmatpush1.bf16.msra.mxu0 0
    %1774 = vmatprep.subr.bf16.mxu0 0
    %1775 = vmatpush1.bf16.msra.mxu0 0
    %1776 = vmatprep.subr.bf16.mxu0 0
    %1777 = vmatpush1.bf16.msra.mxu0 0
    %1778 = vmatprep.subr.bf16.mxu0 0
    %1779 = vmatpush1.bf16.msra.mxu0 0
    %1780 = vmatprep.subr.bf16.mxu0 0
    %1781 = vmatpush1.bf16.msra.mxu0 0
    %1782 = vmatprep.subr.bf16.mxu0 0
    %1783 = vmatpush1.bf16.msra.mxu0 0
    %1784 = vmatprep.subr.bf16.mxu0 0
    %1785 = vmatpush1.bf16.msra.mxu0 0
    %1786 = vmatprep.subr.bf16.mxu0 0
    %1787 = vmatpush1.bf16.msra.mxu0 0
    %1788 = vmatprep.subr.bf16.mxu0 0
    %1789 = vmatpush1.bf16.msra.mxu0 0
    %1790 = vmatprep.subr.bf16.mxu0 0
    %1791 = vmatpush1.bf16.msra.mxu0 0
    %1792 = vmatprep.subr.bf16.mxu0 0
    %1793 = vmatpush1.bf16.msra.mxu0 0
    %1794 = vmatprep.subr.bf16.mxu0 0
    %1795 = vmatpush1.bf16.msra.mxu0 0
    %1796 = vmatprep.subr.bf16.mxu0 0
    %1797 = vmatpush1.bf16.msra.mxu0 0
    %1798 = vmatprep.mubr.bf16.mxu0 0
    %1799 = vmatmul.mubr.bf16.gmra.mrb[0].mxu0 %v1764
    %v1800 = vpop.f32.mrb[0].mxu0
    %v1801 = vadd.f32 0.0, %v1800
    %v1802 = vpop.f32.mrb[0].mxu0
    %v1803 = vadd.f32 0.0, %v1802
    %v1804 = vpop.f32.mrb[0].mxu0
    %v1805 = vadd.f32 0.0, %v1804
    %v1806 = vpop.f32.mrb[0].mxu0
    %v1807 = vadd.f32 0.0, %v1806
    %1808 = vdwg.mxu0
    %v1811 = vunpack.c.l.b16 %v964
    %v1812 = vunpack.c.l.b16 %v965
    %v1813 = vpack.c.b16 %v1812, %v1811
    %v1815 = vsel %vm997, %v1813, 0
    %1817 = vmatprep.subr.bf16.mxu0 %v905
    %1818 = vmatpush1.bf16.msra.mxu0 %v904
    %1819 = vmatprep.subr.bf16.mxu0 0
    %1820 = vmatpush1.bf16.msra.mxu0 0
    %1821 = vmatprep.subr.bf16.mxu0 0
    %1822 = vmatpush1.bf16.msra.mxu0 0
    %1823 = vmatprep.subr.bf16.mxu0 0
    %1824 = vmatpush1.bf16.msra.mxu0 0
    %1825 = vmatprep.subr.bf16.mxu0 0
    %1826 = vmatpush1.bf16.msra.mxu0 0
    %1827 = vmatprep.subr.bf16.mxu0 0
    %1828 = vmatpush1.bf16.msra.mxu0 0
    %1829 = vmatprep.subr.bf16.mxu0 0
    %1830 = vmatpush1.bf16.msra.mxu0 0
    %1831 = vmatprep.subr.bf16.mxu0 0
    %1832 = vmatpush1.bf16.msra.mxu0 0
    %1833 = vmatprep.subr.bf16.mxu0 0
    %1834 = vmatpush1.bf16.msra.mxu0 0
    %1835 = vmatprep.subr.bf16.mxu0 0
    %1836 = vmatpush1.bf16.msra.mxu0 0
    %1837 = vmatprep.subr.bf16.mxu0 0
    %1838 = vmatpush1.bf16.msra.mxu0 0
    %1839 = vmatprep.subr.bf16.mxu0 0
    %1840 = vmatpush1.bf16.msra.mxu0 0
    %1841 = vmatprep.subr.bf16.mxu0 0
    %1842 = vmatpush1.bf16.msra.mxu0 0
    %1843 = vmatprep.subr.bf16.mxu0 0
    %1844 = vmatpush1.bf16.msra.mxu0 0
    %1845 = vmatprep.subr.bf16.mxu0 0
    %1846 = vmatpush1.bf16.msra.mxu0 0
    %1847 = vmatprep.subr.bf16.mxu0 0
    %1848 = vmatpush1.bf16.msra.mxu0 0
    %1849 = vmatprep.mubr.bf16.mxu0 0
    %1850 = vmatmul.mubr.bf16.gmra.mrb[0].mxu0 %v1815
    %v1851 = vpop.f32.mrb[0].mxu0
    %v1852 = vadd.f32 0.0, %v1851
    %v1853 = vpop.f32.mrb[0].mxu0
    %v1854 = vadd.f32 0.0, %v1853
    %v1855 = vpop.f32.mrb[0].mxu0
    %v1856 = vadd.f32 0.0, %v1855
    %v1857 = vpop.f32.mrb[0].mxu0
    %v1858 = vadd.f32 0.0, %v1857
    %1859 = vdwg.mxu0
    %v1862 = vunpack.c.l.b16 %v966
    %v1863 = vunpack.c.l.b16 %v967
    %v1864 = vpack.c.b16 %v1863, %v1862
    %v1866 = vsel %vm997, %v1864, 0
    %1868 = vmatprep.subr.bf16.mxu0 %v907
    %1869 = vmatpush1.bf16.msra.mxu0 %v906
    %1870 = vmatprep.subr.bf16.mxu0 0
    %1871 = vmatpush1.bf16.msra.mxu0 0
    %1872 = vmatprep.subr.bf16.mxu0 0
    %1873 = vmatpush1.bf16.msra.mxu0 0
    %1874 = vmatprep.subr.bf16.mxu0 0
    %1875 = vmatpush1.bf16.msra.mxu0 0
    %1876 = vmatprep.subr.bf16.mxu0 0
    %1877 = vmatpush1.bf16.msra.mxu0 0
    %1878 = vmatprep.subr.bf16.mxu0 0
    %1879 = vmatpush1.bf16.msra.mxu0 0
    %1880 = vmatprep.subr.bf16.mxu0 0
    %1881 = vmatpush1.bf16.msra.mxu0 0
    %1882 = vmatprep.subr.bf16.mxu0 0
    %1883 = vmatpush1.bf16.msra.mxu0 0
    %1884 = vmatprep.subr.bf16.mxu0 0
    %1885 = vmatpush1.bf16.msra.mxu0 0
    %1886 = vmatprep.subr.bf16.mxu0 0
    %1887 = vmatpush1.bf16.msra.mxu0 0
    %1888 = vmatprep.subr.bf16.mxu0 0
    %1889 = vmatpush1.bf16.msra.mxu0 0
    %1890 = vmatprep.subr.bf16.mxu0 0
    %1891 = vmatpush1.bf16.msra.mxu0 0
    %1892 = vmatprep.subr.bf16.mxu0 0
    %1893 = vmatpush1.bf16.msra.mxu0 0
    %1894 = vmatprep.subr.bf16.mxu0 0
    %1895 = vmatpush1.bf16.msra.mxu0 0
    %1896 = vmatprep.subr.bf16.mxu0 0
    %1897 = vmatpush1.bf16.msra.mxu0 0
    %1898 = vmatprep.subr.bf16.mxu0 0
    %1899 = vmatpush1.bf16.msra.mxu0 0
    %1900 = vmatprep.mubr.bf16.mxu0 0
    %1901 = vmatmul.mubr.bf16.gmra.mrb[0].mxu0 %v1866
    %v1902 = vpop.f32.mrb[0].mxu0
    %v1903 = vadd.f32 0.0, %v1902
    %v1904 = vpop.f32.mrb[0].mxu0
    %v1905 = vadd.f32 0.0, %v1904
    %v1906 = vpop.f32.mrb[0].mxu0
    %v1907 = vadd.f32 0.0, %v1906
    %v1908 = vpop.f32.mrb[0].mxu0
    %v1909 = vadd.f32 0.0, %v1908
    %1910 = vdwg.mxu0
    %v1913 = vunpack.c.l.b16 %v968
    %v1914 = vunpack.c.l.b16 %v969
    %v1915 = vpack.c.b16 %v1914, %v1913
    %v1917 = vsel %vm997, %v1915, 0
    %1919 = vmatprep.subr.bf16.mxu0 %v909
    %1920 = vmatpush1.bf16.msra.mxu0 %v908
    %1921 = vmatprep.subr.bf16.mxu0 0
    %1922 = vmatpush1.bf16.msra.mxu0 0
    %1923 = vmatprep.subr.bf16.mxu0 0
    %1924 = vmatpush1.bf16.msra.mxu0 0
    %1925 = vmatprep.subr.bf16.mxu0 0
    %1926 = vmatpush1.bf16.msra.mxu0 0
    %1927 = vmatprep.subr.bf16.mxu0 0
    %1928 = vmatpush1.bf16.msra.mxu0 0
    %1929 = vmatprep.subr.bf16.mxu0 0
    %1930 = vmatpush1.bf16.msra.mxu0 0
    %1931 = vmatprep.subr.bf16.mxu0 0
    %1932 = vmatpush1.bf16.msra.mxu0 0
    %1933 = vmatprep.subr.bf16.mxu0 0
    %1934 = vmatpush1.bf16.msra.mxu0 0
    %1935 = vmatprep.subr.bf16.mxu0 0
    %1936 = vmatpush1.bf16.msra.mxu0 0
    %1937 = vmatprep.subr.bf16.mxu0 0
    %1938 = vmatpush1.bf16.msra.mxu0 0
    %1939 = vmatprep.subr.bf16.mxu0 0
    %1940 = vmatpush1.bf16.msra.mxu0 0
    %1941 = vmatprep.subr.bf16.mxu0 0
    %1942 = vmatpush1.bf16.msra.mxu0 0
    %1943 = vmatprep.subr.bf16.mxu0 0
    %1944 = vmatpush1.bf16.msra.mxu0 0
    %1945 = vmatprep.subr.bf16.mxu0 0
    %1946 = vmatpush1.bf16.msra.mxu0 0
    %1947 = vmatprep.subr.bf16.mxu0 0
    %1948 = vmatpush1.bf16.msra.mxu0 0
    %1949 = vmatprep.subr.bf16.mxu0 0
    %1950 = vmatpush1.bf16.msra.mxu0 0
    %1951 = vmatprep.mubr.bf16.mxu0 0
    %1952 = vmatmul.mubr.bf16.gmra.mrb[0].mxu0 %v1917
    %v1953 = vpop.f32.mrb[0].mxu0
    %v1954 = vadd.f32 0.0, %v1953
    %v1955 = vpop.f32.mrb[0].mxu0
    %v1956 = vadd.f32 0.0, %v1955
    %v1957 = vpop.f32.mrb[0].mxu0
    %v1958 = vadd.f32 0.0, %v1957
    %v1959 = vpop.f32.mrb[0].mxu0
    %v1960 = vadd.f32 0.0, %v1959
    %1961 = vdwg.mxu0
    %v1964 = vunpack.c.l.b16 %v970
    %v1965 = vunpack.c.l.b16 %v971
    %v1966 = vpack.c.b16 %v1965, %v1964
    %v1968 = vsel %vm997, %v1966, 0
    %1970 = vmatprep.subr.bf16.mxu0 %v911
    %1971 = vmatpush1.bf16.msra.mxu0 %v910
    %1972 = vmatprep.subr.bf16.mxu0 0
    %1973 = vmatpush1.bf16.msra.mxu0 0
    %1974 = vmatprep.subr.bf16.mxu0 0
    %1975 = vmatpush1.bf16.msra.mxu0 0
    %1976 = vmatprep.subr.bf16.mxu0 0
    %1977 = vmatpush1.bf16.msra.mxu0 0
    %1978 = vmatprep.subr.bf16.mxu0 0
    %1979 = vmatpush1.bf16.msra.mxu0 0
    %1980 = vmatprep.subr.bf16.mxu0 0
    %1981 = vmatpush1.bf16.msra.mxu0 0
    %1982 = vmatprep.subr.bf16.mxu0 0
    %1983 = vmatpush1.bf16.msra.mxu0 0
    %1984 = vmatprep.subr.bf16.mxu0 0
    %1985 = vmatpush1.bf16.msra.mxu0 0
    %1986 = vmatprep.subr.bf16.mxu0 0
    %1987 = vmatpush1.bf16.msra.mxu0 0
    %1988 = vmatprep.subr.bf16.mxu0 0
    %1989 = vmatpush1.bf16.msra.mxu0 0
    %1990 = vmatprep.subr.bf16.mxu0 0
    %1991 = vmatpush1.bf16.msra.mxu0 0
    %1992 = vmatprep.subr.bf16.mxu0 0
    %1993 = vmatpush1.bf16.msra.mxu0 0
    %1994 = vmatprep.subr.bf16.mxu0 0
    %1995 = vmatpush1.bf16.msra.mxu0 0
    %1996 = vmatprep.subr.bf16.mxu0 0
    %1997 = vmatpush1.bf16.msra.mxu0 0
    %1998 = vmatprep.subr.bf16.mxu0 0
    %1999 = vmatpush1.bf16.msra.mxu0 0
    %2000 = vmatprep.subr.bf16.mxu0 0
    %2001 = vmatpush1.bf16.msra.mxu0 0
    %2002 = vmatprep.mubr.bf16.mxu0 0
    %2003 = vmatmul.mubr.bf16.gmra.mrb[0].mxu0 %v1968
    %v2004 = vpop.f32.mrb[0].mxu0
    %v2005 = vadd.f32 0.0, %v2004
    %v2006 = vpop.f32.mrb[0].mxu0
    %v2007 = vadd.f32 0.0, %v2006
    %v2008 = vpop.f32.mrb[0].mxu0
    %v2009 = vadd.f32 0.0, %v2008
    %v2010 = vpop.f32.mrb[0].mxu0
    %v2011 = vadd.f32 0.0, %v2010
    %2012 = vdwg.mxu0
    %v2015 = vunpack.c.l.b16 %v972
    %v2016 = vunpack.c.l.b16 %v973
    %v2017 = vpack.c.b16 %v2016, %v2015
    %v2019 = vsel %vm997, %v2017, 0
    %2021 = vmatprep.subr.bf16.mxu0 %v913
    %2022 = vmatpush1.bf16.msra.mxu0 %v912
    %2023 = vmatprep.subr.bf16.mxu0 0
    %2024 = vmatpush1.bf16.msra.mxu0 0
    %2025 = vmatprep.subr.bf16.mxu0 0
    %2026 = vmatpush1.bf16.msra.mxu0 0
    %2027 = vmatprep.subr.bf16.mxu0 0
    %2028 = vmatpush1.bf16.msra.mxu0 0
    %2029 = vmatprep.subr.bf16.mxu0 0
    %2030 = vmatpush1.bf16.msra.mxu0 0
    %2031 = vmatprep.subr.bf16.mxu0 0
    %2032 = vmatpush1.bf16.msra.mxu0 0
    %2033 = vmatprep.subr.bf16.mxu0 0
    %2034 = vmatpush1.bf16.msra.mxu0 0
    %2035 = vmatprep.subr.bf16.mxu0 0
    %2036 = vmatpush1.bf16.msra.mxu0 0
    %2037 = vmatprep.subr.bf16.mxu0 0
    %2038 = vmatpush1.bf16.msra.mxu0 0
    %2039 = vmatprep.subr.bf16.mxu0 0
    %2040 = vmatpush1.bf16.msra.mxu0 0
    %2041 = vmatprep.subr.bf16.mxu0 0
    %2042 = vmatpush1.bf16.msra.mxu0 0
    %2043 = vmatprep.subr.bf16.mxu0 0
    %2044 = vmatpush1.bf16.msra.mxu0 0
    %2045 = vmatprep.subr.bf16.mxu0 0
    %2046 = vmatpush1.bf16.msra.mxu0 0
    %2047 = vmatprep.subr.bf16.mxu0 0
    %2048 = vmatpush1.bf16.msra.mxu0 0
    %2049 = vmatprep.subr.bf16.mxu0 0
    %2050 = vmatpush1.bf16.msra.mxu0 0
    %2051 = vmatprep.subr.bf16.mxu0 0
    %2052 = vmatpush1.bf16.msra.mxu0 0
    %2053 = vmatprep.mubr.bf16.mxu0 0
    %2054 = vmatmul.mubr.bf16.gmra.mrb[0].mxu0 %v2019
    %v2055 = vpop.f32.mrb[0].mxu0
    %v2056 = vadd.f32 0.0, %v2055
    %v2057 = vpop.f32.mrb[0].mxu0
    %v2058 = vadd.f32 0.0, %v2057
    %v2059 = vpop.f32.mrb[0].mxu0
    %v2060 = vadd.f32 0.0, %v2059
    %v2061 = vpop.f32.mrb[0].mxu0
    %v2062 = vadd.f32 0.0, %v2061
    %2063 = vdwg.mxu0
    %v2066 = vunpack.c.l.b16 %v974
    %v2067 = vunpack.c.l.b16 %v975
    %v2068 = vpack.c.b16 %v2067, %v2066
    %v2070 = vsel %vm997, %v2068, 0
    %2072 = vmatprep.subr.bf16.mxu0 %v915
    %2073 = vmatpush1.bf16.msra.mxu0 %v914
    %2074 = vmatprep.subr.bf16.mxu0 0
    %2075 = vmatpush1.bf16.msra.mxu0 0
    %2076 = vmatprep.subr.bf16.mxu0 0
    %2077 = vmatpush1.bf16.msra.mxu0 0
    %2078 = vmatprep.subr.bf16.mxu0 0
    %2079 = vmatpush1.bf16.msra.mxu0 0
    %2080 = vmatprep.subr.bf16.mxu0 0
    %2081 = vmatpush1.bf16.msra.mxu0 0
    %2082 = vmatprep.subr.bf16.mxu0 0
    %2083 = vmatpush1.bf16.msra.mxu0 0
    %2084 = vmatprep.subr.bf16.mxu0 0
    %2085 = vmatpush1.bf16.msra.mxu0 0
    %2086 = vmatprep.subr.bf16.mxu0 0
    %2087 = vmatpush1.bf16.msra.mxu0 0
    %2088 = vmatprep.subr.bf16.mxu0 0
    %2089 = vmatpush1.bf16.msra.mxu0 0
    %2090 = vmatprep.subr.bf16.mxu0 0
    %2091 = vmatpush1.bf16.msra.mxu0 0
    %2092 = vmatprep.subr.bf16.mxu0 0
    %2093 = vmatpush1.bf16.msra.mxu0 0
    %2094 = vmatprep.subr.bf16.mxu0 0
    %2095 = vmatpush1.bf16.msra.mxu0 0
    %2096 = vmatprep.subr.bf16.mxu0 0
    %2097 = vmatpush1.bf16.msra.mxu0 0
    %2098 = vmatprep.subr.bf16.mxu0 0
    %2099 = vmatpush1.bf16.msra.mxu0 0
    %2100 = vmatprep.subr.bf16.mxu0 0
    %2101 = vmatpush1.bf16.msra.mxu0 0
    %2102 = vmatprep.subr.bf16.mxu0 0
    %2103 = vmatpush1.bf16.msra.mxu0 0
    %2104 = vmatprep.mubr.bf16.mxu0 0
    %2105 = vmatmul.mubr.bf16.gmra.mrb[0].mxu0 %v2070
    %v2106 = vpop.f32.mrb[0].mxu0
    %v2107 = vadd.f32 0.0, %v2106
    %v2108 = vpop.f32.mrb[0].mxu0
    %v2109 = vadd.f32 0.0, %v2108
    %v2110 = vpop.f32.mrb[0].mxu0
    %v2111 = vadd.f32 0.0, %v2110
    %v2112 = vpop.f32.mrb[0].mxu0
    %v2113 = vadd.f32 0.0, %v2112
    %2114 = vdwg.mxu0
    %v2117 = vunpack.c.l.b16 %v976
    %v2118 = vunpack.c.l.b16 %v977
    %v2119 = vpack.c.b16 %v2118, %v2117
    %v2121 = vsel %vm997, %v2119, 0
    %2123 = vmatprep.subr.bf16.mxu0 %v917
    %2124 = vmatpush1.bf16.msra.mxu0 %v916
    %2125 = vmatprep.subr.bf16.mxu0 0
    %2126 = vmatpush1.bf16.msra.mxu0 0
    %2127 = vmatprep.subr.bf16.mxu0 0
    %2128 = vmatpush1.bf16.msra.mxu0 0
    %2129 = vmatprep.subr.bf16.mxu0 0
    %2130 = vmatpush1.bf16.msra.mxu0 0
    %2131 = vmatprep.subr.bf16.mxu0 0
    %2132 = vmatpush1.bf16.msra.mxu0 0
    %2133 = vmatprep.subr.bf16.mxu0 0
    %2134 = vmatpush1.bf16.msra.mxu0 0
    %2135 = vmatprep.subr.bf16.mxu0 0
    %2136 = vmatpush1.bf16.msra.mxu0 0
    %2137 = vmatprep.subr.bf16.mxu0 0
    %2138 = vmatpush1.bf16.msra.mxu0 0
    %2139 = vmatprep.subr.bf16.mxu0 0
    %2140 = vmatpush1.bf16.msra.mxu0 0
    %2141 = vmatprep.subr.bf16.mxu0 0
    %2142 = vmatpush1.bf16.msra.mxu0 0
    %2143 = vmatprep.subr.bf16.mxu0 0
    %2144 = vmatpush1.bf16.msra.mxu0 0
    %2145 = vmatprep.subr.bf16.mxu0 0
    %2146 = vmatpush1.bf16.msra.mxu0 0
    %2147 = vmatprep.subr.bf16.mxu0 0
    %2148 = vmatpush1.bf16.msra.mxu0 0
    %2149 = vmatprep.subr.bf16.mxu0 0
    %2150 = vmatpush1.bf16.msra.mxu0 0
    %2151 = vmatprep.subr.bf16.mxu0 0
    %2152 = vmatpush1.bf16.msra.mxu0 0
    %2153 = vmatprep.subr.bf16.mxu0 0
    %2154 = vmatpush1.bf16.msra.mxu0 0
    %2155 = vmatprep.mubr.bf16.mxu0 0
    %2156 = vmatmul.mubr.bf16.gmra.mrb[0].mxu0 %v2121
    %v2157 = vpop.f32.mrb[0].mxu0
    %v2158 = vadd.f32 0.0, %v2157
    %v2159 = vpop.f32.mrb[0].mxu0
    %v2160 = vadd.f32 0.0, %v2159
    %v2161 = vpop.f32.mrb[0].mxu0
    %v2162 = vadd.f32 0.0, %v2161
    %v2163 = vpop.f32.mrb[0].mxu0
    %v2164 = vadd.f32 0.0, %v2163
    %2165 = vdwg.mxu0
    %v2168 = vunpack.c.l.b16 %v978
    %v2169 = vunpack.c.l.b16 %v979
    %v2170 = vpack.c.b16 %v2169, %v2168
    %v2172 = vsel %vm997, %v2170, 0
    %2174 = vmatprep.subr.bf16.mxu0 %v919
    %2175 = vmatpush1.bf16.msra.mxu0 %v918
    %2176 = vmatprep.subr.bf16.mxu0 0
    %2177 = vmatpush1.bf16.msra.mxu0 0
    %2178 = vmatprep.subr.bf16.mxu0 0
    %2179 = vmatpush1.bf16.msra.mxu0 0
    %2180 = vmatprep.subr.bf16.mxu0 0
    %2181 = vmatpush1.bf16.msra.mxu0 0
    %2182 = vmatprep.subr.bf16.mxu0 0
    %2183 = vmatpush1.bf16.msra.mxu0 0
    %2184 = vmatprep.subr.bf16.mxu0 0
    %2185 = vmatpush1.bf16.msra.mxu0 0
    %2186 = vmatprep.subr.bf16.mxu0 0
    %2187 = vmatpush1.bf16.msra.mxu0 0
    %2188 = vmatprep.subr.bf16.mxu0 0
    %2189 = vmatpush1.bf16.msra.mxu0 0
    %2190 = vmatprep.subr.bf16.mxu0 0
    %2191 = vmatpush1.bf16.msra.mxu0 0
    %2192 = vmatprep.subr.bf16.mxu0 0
    %2193 = vmatpush1.bf16.msra.mxu0 0
    %2194 = vmatprep.subr.bf16.mxu0 0
    %2195 = vmatpush1.bf16.msra.mxu0 0
    %2196 = vmatprep.subr.bf16.mxu0 0
    %2197 = vmatpush1.bf16.msra.mxu0 0
    %2198 = vmatprep.subr.bf16.mxu0 0
    %2199 = vmatpush1.bf16.msra.mxu0 0
    %2200 = vmatprep.subr.bf16.mxu0 0
    %2201 = vmatpush1.bf16.msra.mxu0 0
    %2202 = vmatprep.subr.bf16.mxu0 0
    %2203 = vmatpush1.bf16.msra.mxu0 0
    %2204 = vmatprep.subr.bf16.mxu0 0
    %2205 = vmatpush1.bf16.msra.mxu0 0
    %2206 = vmatprep.mubr.bf16.mxu0 0
    %2207 = vmatmul.mubr.bf16.gmra.mrb[0].mxu0 %v2172
    %v2208 = vpop.f32.mrb[0].mxu0
    %v2209 = vadd.f32 0.0, %v2208
    %v2210 = vpop.f32.mrb[0].mxu0
    %v2211 = vadd.f32 0.0, %v2210
    %v2212 = vpop.f32.mrb[0].mxu0
    %v2213 = vadd.f32 0.0, %v2212
    %v2214 = vpop.f32.mrb[0].mxu0
    %v2215 = vadd.f32 0.0, %v2214
    %2216 = vdwg.mxu0
    %v2219 = vunpack.c.l.b16 %v980
    %v2220 = vunpack.c.l.b16 %v981
    %v2221 = vpack.c.b16 %v2220, %v2219
    %v2223 = vsel %vm997, %v2221, 0
    %2225 = vmatprep.subr.bf16.mxu0 %v921
    %2226 = vmatpush1.bf16.msra.mxu0 %v920
    %2227 = vmatprep.subr.bf16.mxu0 0
    %2228 = vmatpush1.bf16.msra.mxu0 0
    %2229 = vmatprep.subr.bf16.mxu0 0
    %2230 = vmatpush1.bf16.msra.mxu0 0
    %2231 = vmatprep.subr.bf16.mxu0 0
    %2232 = vmatpush1.bf16.msra.mxu0 0
    %2233 = vmatprep.subr.bf16.mxu0 0
    %2234 = vmatpush1.bf16.msra.mxu0 0
    %2235 = vmatprep.subr.bf16.mxu0 0
    %2236 = vmatpush1.bf16.msra.mxu0 0
    %2237 = vmatprep.subr.bf16.mxu0 0
    %2238 = vmatpush1.bf16.msra.mxu0 0
    %2239 = vmatprep.subr.bf16.mxu0 0
    %2240 = vmatpush1.bf16.msra.mxu0 0
    %2241 = vmatprep.subr.bf16.mxu0 0
    %2242 = vmatpush1.bf16.msra.mxu0 0
    %2243 = vmatprep.subr.bf16.mxu0 0
    %2244 = vmatpush1.bf16.msra.mxu0 0
    %2245 = vmatprep.subr.bf16.mxu0 0
    %2246 = vmatpush1.bf16.msra.mxu0 0
    %2247 = vmatprep.subr.bf16.mxu0 0
    %2248 = vmatpush1.bf16.msra.mxu0 0
    %2249 = vmatprep.subr.bf16.mxu0 0
    %2250 = vmatpush1.bf16.msra.mxu0 0
    %2251 = vmatprep.subr.bf16.mxu0 0
    %2252 = vmatpush1.bf16.msra.mxu0 0
    %2253 = vmatprep.subr.bf16.mxu0 0
    %2254 = vmatpush1.bf16.msra.mxu0 0
    %2255 = vmatprep.subr.bf16.mxu0 0
    %2256 = vmatpush1.bf16.msra.mxu0 0
    %2257 = vmatprep.mubr.bf16.mxu0 0
    %2258 = vmatmul.mubr.bf16.gmra.mrb[0].mxu0 %v2223
    %v2259 = vpop.f32.mrb[0].mxu0
    %v2260 = vadd.f32 0.0, %v2259
    %v2261 = vpop.f32.mrb[0].mxu0
    %v2262 = vadd.f32 0.0, %v2261
    %v2263 = vpop.f32.mrb[0].mxu0
    %v2264 = vadd.f32 0.0, %v2263
    %v2265 = vpop.f32.mrb[0].mxu0
    %v2266 = vadd.f32 0.0, %v2265
    %2267 = vdwg.mxu0
    %v2270 = vunpack.c.l.b16 %v982
    %v2271 = vunpack.c.l.b16 %v983
    %v2272 = vpack.c.b16 %v2271, %v2270
    %v2274 = vsel %vm997, %v2272, 0
    %2276 = vmatprep.subr.bf16.mxu0 %v923
    %2277 = vmatpush1.bf16.msra.mxu0 %v922
    %2278 = vmatprep.subr.bf16.mxu0 0
    %2279 = vmatpush1.bf16.msra.mxu0 0
    %2280 = vmatprep.subr.bf16.mxu0 0
    %2281 = vmatpush1.bf16.msra.mxu0 0
    %2282 = vmatprep.subr.bf16.mxu0 0
    %2283 = vmatpush1.bf16.msra.mxu0 0
    %2284 = vmatprep.subr.bf16.mxu0 0
    %2285 = vmatpush1.bf16.msra.mxu0 0
    %2286 = vmatprep.subr.bf16.mxu0 0
    %2287 = vmatpush1.bf16.msra.mxu0 0
    %2288 = vmatprep.subr.bf16.mxu0 0
    %2289 = vmatpush1.bf16.msra.mxu0 0
    %2290 = vmatprep.subr.bf16.mxu0 0
    %2291 = vmatpush1.bf16.msra.mxu0 0
    %2292 = vmatprep.subr.bf16.mxu0 0
    %2293 = vmatpush1.bf16.msra.mxu0 0
    %2294 = vmatprep.subr.bf16.mxu0 0
    %2295 = vmatpush1.bf16.msra.mxu0 0
    %2296 = vmatprep.subr.bf16.mxu0 0
    %2297 = vmatpush1.bf16.msra.mxu0 0
    %2298 = vmatprep.subr.bf16.mxu0 0
    %2299 = vmatpush1.bf16.msra.mxu0 0
    %2300 = vmatprep.subr.bf16.mxu0 0
    %2301 = vmatpush1.bf16.msra.mxu0 0
    %2302 = vmatprep.subr.bf16.mxu0 0
    %2303 = vmatpush1.bf16.msra.mxu0 0
    %2304 = vmatprep.subr.bf16.mxu0 0
    %2305 = vmatpush1.bf16.msra.mxu0 0
    %2306 = vmatprep.subr.bf16.mxu0 0
    %2307 = vmatpush1.bf16.msra.mxu0 0
    %2308 = vmatprep.mubr.bf16.mxu0 0
    %2309 = vmatmul.mubr.bf16.gmra.mrb[0].mxu0 %v2274
    %v2310 = vpop.f32.mrb[0].mxu0
    %v2311 = vadd.f32 0.0, %v2310
    %v2312 = vpop.f32.mrb[0].mxu0
    %v2313 = vadd.f32 0.0, %v2312
    %v2314 = vpop.f32.mrb[0].mxu0
    %v2315 = vadd.f32 0.0, %v2314
    %v2316 = vpop.f32.mrb[0].mxu0
    %v2317 = vadd.f32 0.0, %v2316
    %2318 = vdwg.mxu0
    %v2321 = vunpack.c.l.b16 %v984
    %v2322 = vunpack.c.l.b16 %v985
    %v2323 = vpack.c.b16 %v2322, %v2321
    %v2325 = vsel %vm997, %v2323, 0
    %2327 = vmatprep.subr.bf16.mxu0 %v925
    %2328 = vmatpush1.bf16.msra.mxu0 %v924
    %2329 = vmatprep.subr.bf16.mxu0 0
    %2330 = vmatpush1.bf16.msra.mxu0 0
    %2331 = vmatprep.subr.bf16.mxu0 0
    %2332 = vmatpush1.bf16.msra.mxu0 0
    %2333 = vmatprep.subr.bf16.mxu0 0
    %2334 = vmatpush1.bf16.msra.mxu0 0
    %2335 = vmatprep.subr.bf16.mxu0 0
    %2336 = vmatpush1.bf16.msra.mxu0 0
    %2337 = vmatprep.subr.bf16.mxu0 0
    %2338 = vmatpush1.bf16.msra.mxu0 0
    %2339 = vmatprep.subr.bf16.mxu0 0
    %2340 = vmatpush1.bf16.msra.mxu0 0
    %2341 = vmatprep.subr.bf16.mxu0 0
    %2342 = vmatpush1.bf16.msra.mxu0 0
    %2343 = vmatprep.subr.bf16.mxu0 0
    %2344 = vmatpush1.bf16.msra.mxu0 0
    %2345 = vmatprep.subr.bf16.mxu0 0
    %2346 = vmatpush1.bf16.msra.mxu0 0
    %2347 = vmatprep.subr.bf16.mxu0 0
    %2348 = vmatpush1.bf16.msra.mxu0 0
    %2349 = vmatprep.subr.bf16.mxu0 0
    %2350 = vmatpush1.bf16.msra.mxu0 0
    %2351 = vmatprep.subr.bf16.mxu0 0
    %2352 = vmatpush1.bf16.msra.mxu0 0
    %2353 = vmatprep.subr.bf16.mxu0 0
    %2354 = vmatpush1.bf16.msra.mxu0 0
    %2355 = vmatprep.subr.bf16.mxu0 0
    %2356 = vmatpush1.bf16.msra.mxu0 0
    %2357 = vmatprep.subr.bf16.mxu0 0
    %2358 = vmatpush1.bf16.msra.mxu0 0
    %2359 = vmatprep.mubr.bf16.mxu0 0
    %2360 = vmatmul.mubr.bf16.gmra.mrb[0].mxu0 %v2325
    %v2361 = vpop.f32.mrb[0].mxu0
    %v2362 = vadd.f32 0.0, %v2361
    %v2363 = vpop.f32.mrb[0].mxu0
    %v2364 = vadd.f32 0.0, %v2363
    %v2365 = vpop.f32.mrb[0].mxu0
    %v2366 = vadd.f32 0.0, %v2365
    %v2367 = vpop.f32.mrb[0].mxu0
    %v2368 = vadd.f32 0.0, %v2367
    %2369 = vdwg.mxu0
    %v2372 = vunpack.c.l.b16 %v986
    %v2373 = vunpack.c.l.b16 %v987
    %v2374 = vpack.c.b16 %v2373, %v2372
    %v2376 = vsel %vm997, %v2374, 0
    %2378 = vmatprep.subr.bf16.mxu0 %v927
    %2379 = vmatpush1.bf16.msra.mxu0 %v926
    %2380 = vmatprep.subr.bf16.mxu0 0
    %2381 = vmatpush1.bf16.msra.mxu0 0
    %2382 = vmatprep.subr.bf16.mxu0 0
    %2383 = vmatpush1.bf16.msra.mxu0 0
    %2384 = vmatprep.subr.bf16.mxu0 0
    %2385 = vmatpush1.bf16.msra.mxu0 0
    %2386 = vmatprep.subr.bf16.mxu0 0
    %2387 = vmatpush1.bf16.msra.mxu0 0
    %2388 = vmatprep.subr.bf16.mxu0 0
    %2389 = vmatpush1.bf16.msra.mxu0 0
    %2390 = vmatprep.subr.bf16.mxu0 0
    %2391 = vmatpush1.bf16.msra.mxu0 0
    %2392 = vmatprep.subr.bf16.mxu0 0
    %2393 = vmatpush1.bf16.msra.mxu0 0
    %2394 = vmatprep.subr.bf16.mxu0 0
    %2395 = vmatpush1.bf16.msra.mxu0 0
    %2396 = vmatprep.subr.bf16.mxu0 0
    %2397 = vmatpush1.bf16.msra.mxu0 0
    %2398 = vmatprep.subr.bf16.mxu0 0
    %2399 = vmatpush1.bf16.msra.mxu0 0
    %2400 = vmatprep.subr.bf16.mxu0 0
    %2401 = vmatpush1.bf16.msra.mxu0 0
    %2402 = vmatprep.subr.bf16.mxu0 0
    %2403 = vmatpush1.bf16.msra.mxu0 0
    %2404 = vmatprep.subr.bf16.mxu0 0
    %2405 = vmatpush1.bf16.msra.mxu0 0
    %2406 = vmatprep.subr.bf16.mxu0 0
    %2407 = vmatpush1.bf16.msra.mxu0 0
    %2408 = vmatprep.subr.bf16.mxu0 0
    %2409 = vmatpush1.bf16.msra.mxu0 0
    %2410 = vmatprep.mubr.bf16.mxu0 0
    %2411 = vmatmul.mubr.bf16.gmra.mrb[0].mxu0 %v2376
    %v2412 = vpop.f32.mrb[0].mxu0
    %v2413 = vadd.f32 0.0, %v2412
    %v2414 = vpop.f32.mrb[0].mxu0
    %v2415 = vadd.f32 0.0, %v2414
    %v2416 = vpop.f32.mrb[0].mxu0
    %v2417 = vadd.f32 0.0, %v2416
    %v2418 = vpop.f32.mrb[0].mxu0
    %v2419 = vadd.f32 0.0, %v2418
    %2420 = vdwg.mxu0
    %v2423 = vunpack.c.l.b16 %v988
    %v2424 = vunpack.c.l.b16 %v989
    %v2425 = vpack.c.b16 %v2424, %v2423
    %v2427 = vsel %vm997, %v2425, 0
    %2429 = vmatprep.subr.bf16.mxu0 %v929
    %2430 = vmatpush1.bf16.msra.mxu0 %v928
    %2431 = vmatprep.subr.bf16.mxu0 0
    %2432 = vmatpush1.bf16.msra.mxu0 0
    %2433 = vmatprep.subr.bf16.mxu0 0
    %2434 = vmatpush1.bf16.msra.mxu0 0
    %2435 = vmatprep.subr.bf16.mxu0 0
    %2436 = vmatpush1.bf16.msra.mxu0 0
    %2437 = vmatprep.subr.bf16.mxu0 0
    %2438 = vmatpush1.bf16.msra.mxu0 0
    %2439 = vmatprep.subr.bf16.mxu0 0
    %2440 = vmatpush1.bf16.msra.mxu0 0
    %2441 = vmatprep.subr.bf16.mxu0 0
    %2442 = vmatpush1.bf16.msra.mxu0 0
    %2443 = vmatprep.subr.bf16.mxu0 0
    %2444 = vmatpush1.bf16.msra.mxu0 0
    %2445 = vmatprep.subr.bf16.mxu0 0
    %2446 = vmatpush1.bf16.msra.mxu0 0
    %2447 = vmatprep.subr.bf16.mxu0 0
    %2448 = vmatpush1.bf16.msra.mxu0 0
    %2449 = vmatprep.subr.bf16.mxu0 0
    %2450 = vmatpush1.bf16.msra.mxu0 0
    %2451 = vmatprep.subr.bf16.mxu0 0
    %2452 = vmatpush1.bf16.msra.mxu0 0
    %2453 = vmatprep.subr.bf16.mxu0 0
    %2454 = vmatpush1.bf16.msra.mxu0 0
    %2455 = vmatprep.subr.bf16.mxu0 0
    %2456 = vmatpush1.bf16.msra.mxu0 0
    %2457 = vmatprep.subr.bf16.mxu0 0
    %2458 = vmatpush1.bf16.msra.mxu0 0
    %2459 = vmatprep.subr.bf16.mxu0 0
    %2460 = vmatpush1.bf16.msra.mxu0 0
    %2461 = vmatprep.mubr.bf16.mxu0 0
    %2462 = vmatmul.mubr.bf16.gmra.mrb[0].mxu0 %v2427
    %v2463 = vpop.f32.mrb[0].mxu0
    %v2464 = vadd.f32 0.0, %v2463
    %v2465 = vpop.f32.mrb[0].mxu0
    %v2466 = vadd.f32 0.0, %v2465
    %v2467 = vpop.f32.mrb[0].mxu0
    %v2468 = vadd.f32 0.0, %v2467
    %v2469 = vpop.f32.mrb[0].mxu0
    %v2470 = vadd.f32 0.0, %v2469
    %2471 = vdwg.mxu0
    %v2474 = vunpack.c.l.b16 %v990
    %v2475 = vunpack.c.l.b16 %v991
    %v2476 = vpack.c.b16 %v2475, %v2474
    %v2478 = vsel %vm997, %v2476, 0
    %2480 = vmatprep.subr.bf16.mxu0 %v931
    %2481 = vmatpush1.bf16.msra.mxu0 %v930
    %2482 = vmatprep.subr.bf16.mxu0 0
    %2483 = vmatpush1.bf16.msra.mxu0 0
    %2484 = vmatprep.subr.bf16.mxu0 0
    %2485 = vmatpush1.bf16.msra.mxu0 0
    %2486 = vmatprep.subr.bf16.mxu0 0
    %2487 = vmatpush1.bf16.msra.mxu0 0
    %2488 = vmatprep.subr.bf16.mxu0 0
    %2489 = vmatpush1.bf16.msra.mxu0 0
    %2490 = vmatprep.subr.bf16.mxu0 0
    %2491 = vmatpush1.bf16.msra.mxu0 0
    %2492 = vmatprep.subr.bf16.mxu0 0
    %2493 = vmatpush1.bf16.msra.mxu0 0
    %2494 = vmatprep.subr.bf16.mxu0 0
    %2495 = vmatpush1.bf16.msra.mxu0 0
    %2496 = vmatprep.subr.bf16.mxu0 0
    %2497 = vmatpush1.bf16.msra.mxu0 0
    %2498 = vmatprep.subr.bf16.mxu0 0
    %2499 = vmatpush1.bf16.msra.mxu0 0
    %2500 = vmatprep.subr.bf16.mxu0 0
    %2501 = vmatpush1.bf16.msra.mxu0 0
    %2502 = vmatprep.subr.bf16.mxu0 0
    %2503 = vmatpush1.bf16.msra.mxu0 0
    %2504 = vmatprep.subr.bf16.mxu0 0
    %2505 = vmatpush1.bf16.msra.mxu0 0
    %2506 = vmatprep.subr.bf16.mxu0 0
    %2507 = vmatpush1.bf16.msra.mxu0 0
    %2508 = vmatprep.subr.bf16.mxu0 0
    %2509 = vmatpush1.bf16.msra.mxu0 0
    %2510 = vmatprep.subr.bf16.mxu0 0
    %2511 = vmatpush1.bf16.msra.mxu0 0
    %2512 = vmatprep.mubr.bf16.mxu0 0
    %2513 = vmatmul.mubr.bf16.gmra.mrb[0].mxu0 %v2478
    %v2514 = vpop.f32.mrb[0].mxu0
    %v2515 = vadd.f32 0.0, %v2514
    %v2516 = vpop.f32.mrb[0].mxu0
    %v2517 = vadd.f32 0.0, %v2516
    %v2518 = vpop.f32.mrb[0].mxu0
    %v2519 = vadd.f32 0.0, %v2518
    %v2520 = vpop.f32.mrb[0].mxu0
    %v2521 = vadd.f32 0.0, %v2520
    %2522 = vdwg.mxu0
    %v2523 = vmul.f32 %v1036, %v1036
    %v2524 = vmul.f32 %v1038, %v1038
    %v2525 = vmul.f32 %v1040, %v1040
    %v2526 = vmul.f32 %v1042, %v1042
    %v2527 = vmul.f32 %v1087, %v1087
    %v2528 = vmul.f32 %v1089, %v1089
    %v2529 = vmul.f32 %v1091, %v1091
    %v2530 = vmul.f32 %v1093, %v1093
    %v2531 = vmul.f32 %v1138, %v1138
    %v2532 = vmul.f32 %v1140, %v1140
    %v2533 = vmul.f32 %v1142, %v1142
    %v2534 = vmul.f32 %v1144, %v1144
    %v2535 = vmul.f32 %v1189, %v1189
    %v2536 = vmul.f32 %v1191, %v1191
    %v2537 = vmul.f32 %v1193, %v1193
    %v2538 = vmul.f32 %v1195, %v1195
    %v2539 = vmul.f32 %v1240, %v1240
    %v2540 = vmul.f32 %v1242, %v1242
    %v2541 = vmul.f32 %v1244, %v1244
    %v2542 = vmul.f32 %v1246, %v1246
    %v2543 = vmul.f32 %v1291, %v1291
    %v2544 = vmul.f32 %v1293, %v1293
    %v2545 = vmul.f32 %v1295, %v1295
    %v2546 = vmul.f32 %v1297, %v1297
    %v2547 = vmul.f32 %v1342, %v1342
    %v2548 = vmul.f32 %v1344, %v1344
    %v2549 = vmul.f32 %v1346, %v1346
    %v2550 = vmul.f32 %v1348, %v1348
    %v2551 = vmul.f32 %v1393, %v1393
    %v2552 = vmul.f32 %v1395, %v1395
    %v2553 = vmul.f32 %v1397, %v1397
    %v2554 = vmul.f32 %v1399, %v1399
    %v2555 = vmul.f32 %v1444, %v1444
    %v2556 = vmul.f32 %v1446, %v1446
    %v2557 = vmul.f32 %v1448, %v1448
    %v2558 = vmul.f32 %v1450, %v1450
    %v2559 = vmul.f32 %v1495, %v1495
    %v2560 = vmul.f32 %v1497, %v1497
    %v2561 = vmul.f32 %v1499, %v1499
    %v2562 = vmul.f32 %v1501, %v1501
    %v2563 = vmul.f32 %v1546, %v1546
    %v2564 = vmul.f32 %v1548, %v1548
    %v2565 = vmul.f32 %v1550, %v1550
    %v2566 = vmul.f32 %v1552, %v1552
    %v2567 = vmul.f32 %v1597, %v1597
    %v2568 = vmul.f32 %v1599, %v1599
    %v2569 = vmul.f32 %v1601, %v1601
    %v2570 = vmul.f32 %v1603, %v1603
    %v2571 = vmul.f32 %v1036, %v1342
    %v2572 = vmul.f32 %v1038, %v1344
    %v2573 = vmul.f32 %v1040, %v1346
    %v2574 = vmul.f32 %v1042, %v1348
    %v2575 = vmul.f32 %v1087, %v1393
    %v2576 = vmul.f32 %v1089, %v1395
    %v2577 = vmul.f32 %v1091, %v1397
    %v2578 = vmul.f32 %v1093, %v1399
    %v2579 = vmul.f32 %v1138, %v1444
    %v2580 = vmul.f32 %v1140, %v1446
    %v2581 = vmul.f32 %v1142, %v1448
    %v2582 = vmul.f32 %v1144, %v1450
    %v2583 = vmul.f32 %v1189, %v1495
    %v2584 = vmul.f32 %v1191, %v1497
    %v2585 = vmul.f32 %v1193, %v1499
    %v2586 = vmul.f32 %v1195, %v1501
    %v2587 = vmul.f32 %v1240, %v1546
    %v2588 = vmul.f32 %v1242, %v1548
    %v2589 = vmul.f32 %v1244, %v1550
    %v2590 = vmul.f32 %v1246, %v1552
    %v2591 = vmul.f32 %v1291, %v1597
    %v2592 = vmul.f32 %v1293, %v1599
    %v2593 = vmul.f32 %v1295, %v1601
    %v2594 = vmul.f32 %v1297, %v1603
    %v2595 = vsub.f32 %v1648, %v2523
    %v2596 = vsub.f32 %v1650, %v2524
    %v2597 = vsub.f32 %v1652, %v2525
    %v2598 = vsub.f32 %v1654, %v2526
    %v2599 = vsub.f32 %v1699, %v2527
    %v2600 = vsub.f32 %v1701, %v2528
    %v2601 = vsub.f32 %v1703, %v2529
    %v2602 = vsub.f32 %v1705, %v2530
    %v2603 = vsub.f32 %v1750, %v2531
    %v2604 = vsub.f32 %v1752, %v2532
    %v2605 = vsub.f32 %v1754, %v2533
    %v2606 = vsub.f32 %v1756, %v2534
    %v2607 = vsub.f32 %v1801, %v2535
    %v2608 = vsub.f32 %v1803, %v2536
    %v2609 = vsub.f32 %v1805, %v2537
    %v2610 = vsub.f32 %v1807, %v2538
    %v2611 = vsub.f32 %v1852, %v2539
    %v2612 = vsub.f32 %v1854, %v2540
    %v2613 = vsub.f32 %v1856, %v2541
    %v2614 = vsub.f32 %v1858, %v2542
    %v2615 = vsub.f32 %v1903, %v2543
    %v2616 = vsub.f32 %v1905, %v2544
    %v2617 = vsub.f32 %v1907, %v2545
    %v2618 = vsub.f32 %v1909, %v2546
    %v2619 = vsub.f32 %v1954, %v2547
    %v2620 = vsub.f32 %v1956, %v2548
    %v2621 = vsub.f32 %v1958, %v2549
    %v2622 = vsub.f32 %v1960, %v2550
    %v2623 = vsub.f32 %v2005, %v2551
    %v2624 = vsub.f32 %v2007, %v2552
    %v2625 = vsub.f32 %v2009, %v2553
    %v2626 = vsub.f32 %v2011, %v2554
    %v2627 = vsub.f32 %v2056, %v2555
    %v2628 = vsub.f32 %v2058, %v2556
    %v2629 = vsub.f32 %v2060, %v2557
    %v2630 = vsub.f32 %v2062, %v2558
    %v2631 = vsub.f32 %v2107, %v2559
    %v2632 = vsub.f32 %v2109, %v2560
    %v2633 = vsub.f32 %v2111, %v2561
    %v2634 = vsub.f32 %v2113, %v2562
    %v2635 = vsub.f32 %v2158, %v2563
    %v2636 = vsub.f32 %v2160, %v2564
    %v2637 = vsub.f32 %v2162, %v2565
    %v2638 = vsub.f32 %v2164, %v2566
    %v2639 = vsub.f32 %v2209, %v2567
    %v2640 = vsub.f32 %v2211, %v2568
    %v2641 = vsub.f32 %v2213, %v2569
    %v2642 = vsub.f32 %v2215, %v2570
    %v2643 = vsub.f32 %v2260, %v2571
    %v2644 = vsub.f32 %v2262, %v2572
    %v2645 = vsub.f32 %v2264, %v2573
    %v2646 = vsub.f32 %v2266, %v2574
    %v2647 = vsub.f32 %v2311, %v2575
    %v2648 = vsub.f32 %v2313, %v2576
    %v2649 = vsub.f32 %v2315, %v2577
    %v2650 = vsub.f32 %v2317, %v2578
    %v2651 = vsub.f32 %v2362, %v2579
    %v2652 = vsub.f32 %v2364, %v2580
    %v2653 = vsub.f32 %v2366, %v2581
    %v2654 = vsub.f32 %v2368, %v2582
    %v2655 = vsub.f32 %v2413, %v2583
    %v2656 = vsub.f32 %v2415, %v2584
    %v2657 = vsub.f32 %v2417, %v2585
    %v2658 = vsub.f32 %v2419, %v2586
    %v2659 = vsub.f32 %v2464, %v2587
    %v2660 = vsub.f32 %v2466, %v2588
    %v2661 = vsub.f32 %v2468, %v2589
    %v2662 = vsub.f32 %v2470, %v2590
    %v2663 = vsub.f32 %v2515, %v2591
    %v2664 = vsub.f32 %v2517, %v2592
    %v2665 = vsub.f32 %v2519, %v2593
    %v2666 = vsub.f32 %v2521, %v2594
    %v2667 = vmul.f32 %v2571, 2.0
    %v2668 = vmul.f32 %v2572, 2.0
    %v2669 = vmul.f32 %v2573, 2.0
    %v2670 = vmul.f32 %v2574, 2.0
    %v2671 = vmul.f32 %v2575, 2.0
    %v2672 = vmul.f32 %v2576, 2.0
    %v2673 = vmul.f32 %v2577, 2.0
    %v2674 = vmul.f32 %v2578, 2.0
    %v2675 = vmul.f32 %v2579, 2.0
    %v2676 = vmul.f32 %v2580, 2.0
    %v2677 = vmul.f32 %v2581, 2.0
    %v2678 = vmul.f32 %v2582, 2.0
    %v2679 = vmul.f32 %v2583, 2.0
    %v2680 = vmul.f32 %v2584, 2.0
    %v2681 = vmul.f32 %v2585, 2.0
    %v2682 = vmul.f32 %v2586, 2.0
    %v2683 = vmul.f32 %v2587, 2.0
    %v2684 = vmul.f32 %v2588, 2.0
    %v2685 = vmul.f32 %v2589, 2.0
    %v2686 = vmul.f32 %v2590, 2.0
    %v2687 = vmul.f32 %v2591, 2.0
    %v2688 = vmul.f32 %v2592, 2.0
    %v2689 = vmul.f32 %v2593, 2.0
    %v2690 = vmul.f32 %v2594, 2.0
    %v2691 = vadd.f32 %v2667, 0.0001
    %v2692 = vadd.f32 %v2668, 0.0001
    %v2693 = vadd.f32 %v2669, 0.0001
    %v2694 = vadd.f32 %v2670, 0.0001
    %v2695 = vadd.f32 %v2671, 0.0001
    %v2696 = vadd.f32 %v2672, 0.0001
    %v2697 = vadd.f32 %v2673, 0.0001
    %v2698 = vadd.f32 %v2674, 0.0001
    %v2699 = vadd.f32 %v2675, 0.0001
    %v2700 = vadd.f32 %v2676, 0.0001
    %v2701 = vadd.f32 %v2677, 0.0001
    %v2702 = vadd.f32 %v2678, 0.0001
    %v2703 = vadd.f32 %v2679, 0.0001
    %v2704 = vadd.f32 %v2680, 0.0001
    %v2705 = vadd.f32 %v2681, 0.0001
    %v2706 = vadd.f32 %v2682, 0.0001
    %v2707 = vadd.f32 %v2683, 0.0001
    %v2708 = vadd.f32 %v2684, 0.0001
    %v2709 = vadd.f32 %v2685, 0.0001
    %v2710 = vadd.f32 %v2686, 0.0001
    %v2711 = vadd.f32 %v2687, 0.0001
    %v2712 = vadd.f32 %v2688, 0.0001
    %v2713 = vadd.f32 %v2689, 0.0001
    %v2714 = vadd.f32 %v2690, 0.0001
    %v2715 = vmul.f32 %v2643, 2.0
    %v2716 = vmul.f32 %v2644, 2.0
    %v2717 = vmul.f32 %v2645, 2.0
    %v2718 = vmul.f32 %v2646, 2.0
    %v2719 = vmul.f32 %v2647, 2.0
    %v2720 = vmul.f32 %v2648, 2.0
    %v2721 = vmul.f32 %v2649, 2.0
    %v2722 = vmul.f32 %v2650, 2.0
    %v2723 = vmul.f32 %v2651, 2.0
    %v2724 = vmul.f32 %v2652, 2.0
    %v2725 = vmul.f32 %v2653, 2.0
    %v2726 = vmul.f32 %v2654, 2.0
    %v2727 = vmul.f32 %v2655, 2.0
    %v2728 = vmul.f32 %v2656, 2.0
    %v2729 = vmul.f32 %v2657, 2.0
    %v2730 = vmul.f32 %v2658, 2.0
    %v2731 = vmul.f32 %v2659, 2.0
    %v2732 = vmul.f32 %v2660, 2.0
    %v2733 = vmul.f32 %v2661, 2.0
    %v2734 = vmul.f32 %v2662, 2.0
    %v2735 = vmul.f32 %v2663, 2.0
    %v2736 = vmul.f32 %v2664, 2.0
    %v2737 = vmul.f32 %v2665, 2.0
    %v2738 = vmul.f32 %v2666, 2.0
    %v2739 = vadd.f32 %v2715, 0.0009
    %v2740 = vadd.f32 %v2716, 0.0009
    %v2741 = vadd.f32 %v2717, 0.0009
    %v2742 = vadd.f32 %v2718, 0.0009
    %v2743 = vadd.f32 %v2719, 0.0009
    %v2744 = vadd.f32 %v2720, 0.0009
    %v2745 = vadd.f32 %v2721, 0.0009
    %v2746 = vadd.f32 %v2722, 0.0009
    %v2747 = vadd.f32 %v2723, 0.0009
    %v2748 = vadd.f32 %v2724, 0.0009
    %v2749 = vadd.f32 %v2725, 0.0009
    %v2750 = vadd.f32 %v2726, 0.0009
    %v2751 = vadd.f32 %v2727, 0.0009
    %v2752 = vadd.f32 %v2728, 0.0009
    %v2753 = vadd.f32 %v2729, 0.0009
    %v2754 = vadd.f32 %v2730, 0.0009
    %v2755 = vadd.f32 %v2731, 0.0009
    %v2756 = vadd.f32 %v2732, 0.0009
    %v2757 = vadd.f32 %v2733, 0.0009
    %v2758 = vadd.f32 %v2734, 0.0009
    %v2759 = vadd.f32 %v2735, 0.0009
    %v2760 = vadd.f32 %v2736, 0.0009
    %v2761 = vadd.f32 %v2737, 0.0009
    %v2762 = vadd.f32 %v2738, 0.0009
    %v2763 = vmul.f32 %v2691, %v2739
    %v2764 = vmul.f32 %v2692, %v2740
    %v2765 = vmul.f32 %v2693, %v2741
    %v2766 = vmul.f32 %v2694, %v2742
    %v2767 = vmul.f32 %v2695, %v2743
    %v2768 = vmul.f32 %v2696, %v2744
    %v2769 = vmul.f32 %v2697, %v2745
    %v2770 = vmul.f32 %v2698, %v2746
    %v2771 = vmul.f32 %v2699, %v2747
    %v2772 = vmul.f32 %v2700, %v2748
    %v2773 = vmul.f32 %v2701, %v2749
    %v2774 = vmul.f32 %v2702, %v2750
    %v2775 = vmul.f32 %v2703, %v2751
    %v2776 = vmul.f32 %v2704, %v2752
    %v2777 = vmul.f32 %v2705, %v2753
    %v2778 = vmul.f32 %v2706, %v2754
    %v2779 = vmul.f32 %v2707, %v2755
    %v2780 = vmul.f32 %v2708, %v2756
    %v2781 = vmul.f32 %v2709, %v2757
    %v2782 = vmul.f32 %v2710, %v2758
    %v2783 = vmul.f32 %v2711, %v2759
    %v2784 = vmul.f32 %v2712, %v2760
    %v2785 = vmul.f32 %v2713, %v2761
    %v2786 = vmul.f32 %v2714, %v2762
    %v2787 = vadd.f32 %v2523, %v2547
    %v2788 = vadd.f32 %v2524, %v2548
    %v2789 = vadd.f32 %v2525, %v2549
    %v2790 = vadd.f32 %v2526, %v2550
    %v2791 = vadd.f32 %v2527, %v2551
    %v2792 = vadd.f32 %v2528, %v2552
    %v2793 = vadd.f32 %v2529, %v2553
    %v2794 = vadd.f32 %v2530, %v2554
    %v2795 = vadd.f32 %v2531, %v2555
    %v2796 = vadd.f32 %v2532, %v2556
    %v2797 = vadd.f32 %v2533, %v2557
    %v2798 = vadd.f32 %v2534, %v2558
    %v2799 = vadd.f32 %v2535, %v2559
    %v2800 = vadd.f32 %v2536, %v2560
    %v2801 = vadd.f32 %v2537, %v2561
    %v2802 = vadd.f32 %v2538, %v2562
    %v2803 = vadd.f32 %v2539, %v2563
    %v2804 = vadd.f32 %v2540, %v2564
    %v2805 = vadd.f32 %v2541, %v2565
    %v2806 = vadd.f32 %v2542, %v2566
    %v2807 = vadd.f32 %v2543, %v2567
    %v2808 = vadd.f32 %v2544, %v2568
    %v2809 = vadd.f32 %v2545, %v2569
    %v2810 = vadd.f32 %v2546, %v2570
    %v2811 = vadd.f32 %v2787, 0.0001
    %v2812 = vadd.f32 %v2788, 0.0001
    %v2813 = vadd.f32 %v2789, 0.0001
    %v2814 = vadd.f32 %v2790, 0.0001
    %v2815 = vadd.f32 %v2791, 0.0001
    %v2816 = vadd.f32 %v2792, 0.0001
    %v2817 = vadd.f32 %v2793, 0.0001
    %v2818 = vadd.f32 %v2794, 0.0001
    %v2819 = vadd.f32 %v2795, 0.0001
    %v2820 = vadd.f32 %v2796, 0.0001
    %v2821 = vadd.f32 %v2797, 0.0001
    %v2822 = vadd.f32 %v2798, 0.0001
    %v2823 = vadd.f32 %v2799, 0.0001
    %v2824 = vadd.f32 %v2800, 0.0001
    %v2825 = vadd.f32 %v2801, 0.0001
    %v2826 = vadd.f32 %v2802, 0.0001
    %v2827 = vadd.f32 %v2803, 0.0001
    %v2828 = vadd.f32 %v2804, 0.0001
    %v2829 = vadd.f32 %v2805, 0.0001
    %v2830 = vadd.f32 %v2806, 0.0001
    %v2831 = vadd.f32 %v2807, 0.0001
    %v2832 = vadd.f32 %v2808, 0.0001
    %v2833 = vadd.f32 %v2809, 0.0001
    %v2834 = vadd.f32 %v2810, 0.0001
    %v2835 = vadd.f32 %v2595, %v2619
    %v2836 = vadd.f32 %v2596, %v2620
    %v2837 = vadd.f32 %v2597, %v2621
    %v2838 = vadd.f32 %v2598, %v2622
    %v2839 = vadd.f32 %v2599, %v2623
    %v2840 = vadd.f32 %v2600, %v2624
    %v2841 = vadd.f32 %v2601, %v2625
    %v2842 = vadd.f32 %v2602, %v2626
    %v2843 = vadd.f32 %v2603, %v2627
    %v2844 = vadd.f32 %v2604, %v2628
    %v2845 = vadd.f32 %v2605, %v2629
    %v2846 = vadd.f32 %v2606, %v2630
    %v2847 = vadd.f32 %v2607, %v2631
    %v2848 = vadd.f32 %v2608, %v2632
    %v2849 = vadd.f32 %v2609, %v2633
    %v2850 = vadd.f32 %v2610, %v2634
    %v2851 = vadd.f32 %v2611, %v2635
    %v2852 = vadd.f32 %v2612, %v2636
    %v2853 = vadd.f32 %v2613, %v2637
    %v2854 = vadd.f32 %v2614, %v2638
    %v2855 = vadd.f32 %v2615, %v2639
    %v2856 = vadd.f32 %v2616, %v2640
    %v2857 = vadd.f32 %v2617, %v2641
    %v2858 = vadd.f32 %v2618, %v2642
    %v2859 = vadd.f32 %v2835, 0.0009
    %v2860 = vadd.f32 %v2836, 0.0009
    %v2861 = vadd.f32 %v2837, 0.0009
    %v2862 = vadd.f32 %v2838, 0.0009
    %v2863 = vadd.f32 %v2839, 0.0009
    %v2864 = vadd.f32 %v2840, 0.0009
    %v2865 = vadd.f32 %v2841, 0.0009
    %v2866 = vadd.f32 %v2842, 0.0009
    %v2867 = vadd.f32 %v2843, 0.0009
    %v2868 = vadd.f32 %v2844, 0.0009
    %v2869 = vadd.f32 %v2845, 0.0009
    %v2870 = vadd.f32 %v2846, 0.0009
    %v2871 = vadd.f32 %v2847, 0.0009
    %v2872 = vadd.f32 %v2848, 0.0009
    %v2873 = vadd.f32 %v2849, 0.0009
    %v2874 = vadd.f32 %v2850, 0.0009
    %v2875 = vadd.f32 %v2851, 0.0009
    %v2876 = vadd.f32 %v2852, 0.0009
    %v2877 = vadd.f32 %v2853, 0.0009
    %v2878 = vadd.f32 %v2854, 0.0009
    %v2879 = vadd.f32 %v2855, 0.0009
    %v2880 = vadd.f32 %v2856, 0.0009
    %v2881 = vadd.f32 %v2857, 0.0009
    %v2882 = vadd.f32 %v2858, 0.0009
    %v2883 = vmul.f32 %v2811, %v2859
    %v2884 = vmul.f32 %v2812, %v2860
    %v2885 = vmul.f32 %v2813, %v2861
    %v2886 = vmul.f32 %v2814, %v2862
    %v2887 = vmul.f32 %v2815, %v2863
    %v2888 = vmul.f32 %v2816, %v2864
    %v2889 = vmul.f32 %v2817, %v2865
    %v2890 = vmul.f32 %v2818, %v2866
    %v2891 = vmul.f32 %v2819, %v2867
    %v2892 = vmul.f32 %v2820, %v2868
    %v2893 = vmul.f32 %v2821, %v2869
    %v2894 = vmul.f32 %v2822, %v2870
    %v2895 = vmul.f32 %v2823, %v2871
    %v2896 = vmul.f32 %v2824, %v2872
    %v2897 = vmul.f32 %v2825, %v2873
    %v2898 = vmul.f32 %v2826, %v2874
    %v2899 = vmul.f32 %v2827, %v2875
    %v2900 = vmul.f32 %v2828, %v2876
    %v2901 = vmul.f32 %v2829, %v2877
    %v2902 = vmul.f32 %v2830, %v2878
    %v2903 = vmul.f32 %v2831, %v2879
    %v2904 = vmul.f32 %v2832, %v2880
    %v2905 = vmul.f32 %v2833, %v2881
    %v2906 = vmul.f32 %v2834, %v2882
    %v2907 = vrcp.pop %v2883
    %v2908 = vrcp.pop %v2884
    %v2909 = vrcp.pop %v2885
    %v2910 = vrcp.pop %v2886
    %v2911 = vrcp.pop %v2887
    %v2912 = vrcp.pop %v2888
    %v2913 = vrcp.pop %v2889
    %v2914 = vrcp.pop %v2890
    %v2915 = vrcp.pop %v2891
    %v2916 = vrcp.pop %v2892
    %v2917 = vrcp.pop %v2893
    %v2918 = vrcp.pop %v2894
    %v2919 = vrcp.pop %v2895
    %v2920 = vrcp.pop %v2896
    %v2921 = vrcp.pop %v2897
    %v2922 = vrcp.pop %v2898
    %v2923 = vrcp.pop %v2899
    %v2924 = vrcp.pop %v2900
    %v2925 = vrcp.pop %v2901
    %v2926 = vrcp.pop %v2902
    %v2927 = vrcp.pop %v2903
    %v2928 = vrcp.pop %v2904
    %v2929 = vrcp.pop %v2905
    %v2930 = vrcp.pop %v2906
    %v2931 = vmul.f32 %v2763, %v2907
    %v2932 = vmul.f32 %v2764, %v2908
    %v2933 = vmul.f32 %v2765, %v2909
    %v2934 = vmul.f32 %v2766, %v2910
    %v2935 = vmul.f32 %v2767, %v2911
    %v2936 = vmul.f32 %v2768, %v2912
    %v2937 = vmul.f32 %v2769, %v2913
    %v2938 = vmul.f32 %v2770, %v2914
    %v2939 = vmul.f32 %v2771, %v2915
    %v2940 = vmul.f32 %v2772, %v2916
    %v2941 = vmul.f32 %v2773, %v2917
    %v2942 = vmul.f32 %v2774, %v2918
    %v2943 = vmul.f32 %v2775, %v2919
    %v2944 = vmul.f32 %v2776, %v2920
    %v2945 = vmul.f32 %v2777, %v2921
    %v2946 = vmul.f32 %v2778, %v2922
    %v2947 = vmul.f32 %v2779, %v2923
    %v2948 = vmul.f32 %v2780, %v2924
    %v2949 = vmul.f32 %v2781, %v2925
    %v2950 = vmul.f32 %v2782, %v2926
    %v2951 = vmul.f32 %v2783, %v2927
    %v2952 = vmul.f32 %v2784, %v2928
    %v2953 = vmul.f32 %v2785, %v2929
    %v2954 = vmul.f32 %v2786, %v2930
    %v2955 = vadd.f32 %v2931, %v2932
    %v2956 = vadd.f32 %v2955, %v2933
    %v2957 = vadd.f32 %v2956, %v2934
    %v2958 = vadd.f32 %v2957, %v2935
    %v2959 = vadd.f32 %v2958, %v2936
    %v2960 = vadd.f32 %v2959, %v2937
    %v2961 = vadd.f32 %v2960, %v2938
    %v2962 = vadd.f32 %v2961, %v2939
    %v2963 = vadd.f32 %v2962, %v2940
    %v2964 = vadd.f32 %v2963, %v2941
    %v2965 = vadd.f32 %v2964, %v2942
    %v2966 = vadd.f32 %v2965, %v2943
    %v2967 = vadd.f32 %v2966, %v2944
    %v2968 = vadd.f32 %v2967, %v2945
    %v2969 = vadd.f32 %v2968, %v2946
    %v2970 = vadd.f32 %v2969, %v2947
    %v2971 = vadd.f32 %v2970, %v2948
    %v2972 = vadd.f32 %v2971, %v2949
    %v2973 = vadd.f32 %v2972, %v2950
    %v2974 = vadd.f32 %v2973, %v2951
    %v2975 = vadd.f32 %v2974, %v2952
    %v2976 = vadd.f32 %v2975, %v2953
    %v2977 = vadd.f32 %v2976, %v2954
    %2978 = vadd.xlane.f32.xlu0 %v2977
    %v2979 = vpop.xlane.xlu0 %2978
    %v2980 = vrot.slane %v2979, 4
    %v2981 = vadd.f32 %v2979, %v2980
    %v2982 = vrot.slane %v2981, 2
    %v2983 = vadd.f32 %v2981, %v2982
    %v2984 = vrot.slane %v2983, 1
    %v2985 = vadd.f32 %v2983, %v2984
    %s2986 = vtos %v2985
    %v2987 = vstv %s2986
    %vm2988 = vcmask 0
    %2989 = vst.msk [vmem:[#allocation8] sm:$0x1] %vm2988, %v2987
    // Predicated region
    $region26: #{tpu_custom_call.1} parent=1 // pred_check
      _
    $region27: #{tpu_custom_call.1} parent=1 // pred_check_branch
      %2991 = sbr.rel (0) target = $region29
    $region28: #{tpu_custom_call.1} parent=1 // pred_region
      %s2993 = ssub.s32 16, 16
      %2994 = vsyncadd [#allocation5], %s2993
      %s2996 = sshll.u32 [#allocation8], 4
      %s2997 = int_to_ptr.vmem [resolvable:$true] %s2996
      %2999 = dma.vmem_to_hbm [thread:$0]  %s2997, 16, %s4, [#allocation5]
    $region29: #{tpu_custom_call.1} parent=1 // pred_fallthru
      _
    // Predicated region
    $region30: #{tpu_custom_call.1} parent=1 // pred_check
      _
    $region31: #{tpu_custom_call.1} parent=1 // pred_check_branch
      %3001 = sbr.rel (0) target = $region33
    $region32: #{tpu_custom_call.1} parent=1 // pred_region
      %3002 = dma.done [#allocation5], 16
    $region33: #{tpu_custom_call.1} parent=1 // pred_fallthru
      _
    %3003 = vsyncpa [#allocation4], 1
    %3004 = vsyncpa [#allocation7], 1
    %3005 = vsyncpa [#allocation5], 1

</llo_original>
